<compile_context>
chip_gen: v6e
topology: v6e:2x2x1
jax: 0.10.0
libtpu: 0.0.40
codegen_flags: <defaults>
</compile_context>

<pallas_src>
import functools

import numpy as np
import jax
import jax.numpy as jnp
from jax.experimental import pallas as pl
from jax.experimental.pallas import tpu as pltpu


# ----------------------------------------------------------------------------
# Positional sinusoid embedding (exact replica of the reference, built on host)
# ----------------------------------------------------------------------------
def pos_sinusoid_embedding(seq_len, d_model):
    emb = np.zeros((seq_len, d_model), dtype=np.float32)
    pos = np.arange(seq_len, dtype=np.float32)
    for i in range(d_model):
        angle = pos / np.power(10000.0, 2 * (i // 2) / d_model)
        emb[:, i] = np.sin(angle) if i % 2 == 0 else np.cos(angle)
    return jnp.asarray(emb)


# Fixed ordering of the stacked per-layer parameters (kernel args follow this).
WEIGHT_ORDER = (
    "s_wqkv", "s_bqkv", "s_wo", "s_bo",
    "c_wq", "c_bq", "c_wkv", "c_bkv", "c_wo", "c_bo",
    "f_w1", "f_b1", "f_w2", "f_b2",
    "ln",
)
# Large matmul weights are streamed in bf16; biases / LN params stay f32.
BF16_KEYS = {"s_wqkv", "s_wo", "c_wq", "c_wkv", "c_wo", "f_w1", "f_w2"}


# ----------------------------------------------------------------------------
# In-kernel helpers (operate on VMEM-resident values; all f32 math)
# ----------------------------------------------------------------------------
def _mha_scores_pv(q2, k2, v2, mask, Bt, Tq, Tk, H, dk):
    """Scores + softmax + P@V, heads concatenated.

    q2: (Bt*Tq, H*dk)   k2/v2: (Bt*Tk, H*dk)   mask: (Bt, Tq, Tk)  (1.0 == masked)
    returns (Bt*Tq, H*dk) in f32.
    """
    scale = 1.0 / np.sqrt(dk)
    dn = (((1,), (1,)), ((), ()))         # q @ k.T contraction
    ctx_rows = []
    for b in range(Bt):                   # static unroll over the batch tile
        qb = q2[b * Tq:(b + 1) * Tq, :]
        kb = k2[b * Tk:(b + 1) * Tk, :]
        vb = v2[b * Tk:(b + 1) * Tk, :]
        mb = mask[b]                      # (Tq, Tk)
        head_outs = []
        for h in range(H):                # static unroll over heads (2-D matmuls)
            qh = qb[:, h * dk:(h + 1) * dk]
            kh = kb[:, h * dk:(h + 1) * dk]
            vh = vb[:, h * dk:(h + 1) * dk]
            s = jax.lax.dot_general(qh, kh, dn,
                                    preferred_element_type=jnp.float32) * scale
            s = jnp.where(mb > 0.5, -10000.0, s)
            m = jnp.max(s, axis=-1, keepdims=True)
            e = jnp.exp(s - m)
            inv = pl.reciprocal(jnp.sum(e, axis=-1, keepdims=True), approx=True)
            p = e * inv                   # softmax (dropout == identity)
            head_outs.append(jnp.dot(p, vh, preferred_element_type=jnp.float32))
        ctx_rows.append(jnp.concatenate(head_outs, axis=1))    # (Tq, H*dk)
    if Bt == 1:
        return ctx_rows[0]
    return jnp.concatenate(ctx_rows, axis=0)                   # (Bt*Tq, H*dk)


def _add_layernorm(x, y, gamma, beta):
    z = x + y
    mu = jnp.mean(z, axis=-1, keepdims=True)
    var = jnp.mean(jnp.square(z - mu), axis=-1, keepdims=True)
    return (z - mu) * jax.lax.rsqrt(var + 1e-5) * gamma + beta


# ----------------------------------------------------------------------------
# Fused decoder-stack kernel. grid = (num_batch_tiles, num_layers).
# The output block (constant index along the layer axis) carries the activation.
# ----------------------------------------------------------------------------
def decoder_stack_kernel(
    dec_in_ref, enc_ref, dmask_ref, demask_ref,
    s_wqkv_ref, s_bqkv_ref, s_wo_ref, s_bo_ref,
    c_wq_ref, c_bq_ref, c_wkv_ref, c_bkv_ref, c_wo_ref, c_bo_ref,
    f_w1_ref, f_b1_ref, f_w2_ref, f_b2_ref,
    ln_ref,
    out_ref,
    *, num_heads,
):
    layer = pl.program_id(1)
    Bt, Tq, D = out_ref.shape
    Tk = enc_ref.shape[1]
    H = num_heads
    dk = D // H
    HD = H * dk

    # First layer of each batch tile: load the embeddings into the resident block.
    @pl.when(layer == 0)
    def _():
        out_ref[...] = dec_in_ref[...]

    x2 = out_ref[...].reshape(Bt * Tq, D)            # (Bt*Tq, D)  f32
    enc2 = enc_ref[...].reshape(Bt * Tk, D)
    dmask = dmask_ref[...]                           # (Bt, Tq, Tq)
    demask = demask_ref[...]                         # (Bt, Tq, Tk)
    ln = ln_ref[0]                                   # (6, D)

    # ---- masked self attention (fused QKV projection) ----
    qkv = jnp.dot(x2.astype(jnp.bfloat16), s_wqkv_ref[0],
                  preferred_element_type=jnp.float32) + s_bqkv_ref[0]
    q2 = qkv[:, :HD]
    k2 = qkv[:, HD:2 * HD]
    v2 = qkv[:, 2 * HD:3 * HD]
    ctx = _mha_scores_pv(q2, k2, v2, dmask, Bt, Tq, Tq, H, dk)
    ctx = jnp.dot(ctx.astype(jnp.bfloat16), s_wo_ref[0],
                  preferred_element_type=jnp.float32) + s_bo_ref[0]
    x2 = _add_layernorm(x2, ctx, ln[0:1, :], ln[1:2, :])

    # ---- encoder-decoder cross attention (fused KV projection) ----
    q2 = jnp.dot(x2.astype(jnp.bfloat16), c_wq_ref[0],
                 preferred_element_type=jnp.float32) + c_bq_ref[0]
    kv = jnp.dot(enc2.astype(jnp.bfloat16), c_wkv_ref[0],
                 preferred_element_type=jnp.float32) + c_bkv_ref[0]
    k2 = kv[:, :HD]
    v2 = kv[:, HD:2 * HD]
    ctx = _mha_scores_pv(q2, k2, v2, demask, Bt, Tq, Tk, H, dk)
    ctx = jnp.dot(ctx.astype(jnp.bfloat16), c_wo_ref[0],
                  preferred_element_type=jnp.float32) + c_bo_ref[0]
    x2 = _add_layernorm(x2, ctx, ln[2:3, :], ln[3:4, :])

    # ---- position-wise FFN (Conv1d k=1 == linear over the feature axis) ----
    h1 = jnp.dot(x2.astype(jnp.bfloat16), f_w1_ref[0],
                 preferred_element_type=jnp.float32) + f_b1_ref[0]
    h1 = jnp.maximum(h1, 0.0)
    f = jnp.dot(h1.astype(jnp.bfloat16), f_w2_ref[0],
                preferred_element_type=jnp.float32) + f_b2_ref[0]
    x2 = _add_layernorm(x2, f, ln[4:5, :], ln[5:6, :])

    out_ref[...] = x2.reshape(Bt, Tq, D)             # carried to the next layer


def decoder_stack(dec_in, enc_out, dec_mask, dec_enc_mask, stack, *,
                  num_heads, batch_tile=None):
    """One pallas_call for the whole decoder stack."""
    B, Tq, D = dec_in.shape
    Tk = enc_out.shape[1]
    L = stack["s_wqkv"].shape[0]
    dff = stack["f_w1"].shape[-1]
    Bt = B if batch_tile is None else batch_tile
    assert B % Bt == 0 and D % num_heads == 0
    nb = B // Bt
    H = num_heads

    def batch_spec(shape):
        inner = tuple(shape[1:])
        return pl.BlockSpec((Bt,) + inner,
                            lambda b, l, _n=len(inner): (b,) + (0,) * _n)

    def layer_spec(shape):
        inner = tuple(shape[1:])
        return pl.BlockSpec((1,) + inner,
                            lambda b, l, _n=len(inner): (l,) + (0,) * _n)

    in_specs = [batch_spec(dec_in.shape), batch_spec(enc_out.shape),
                batch_spec(dec_mask.shape), batch_spec(dec_enc_mask.shape)]
    in_specs += [layer_spec(stack[k].shape) for k in WEIGHT_ORDER]

    # ---- advisory cost estimate (weights are fetched `nb` times each) ----
    flops_per_elem_layer = (
        2 * Tq * D * (3 * D)        # self QKV projection
        + 4 * Tq * Tq * D           # self scores + P@V
        + 2 * Tq * D * D            # self output projection
        + 2 * Tq * D * D            # cross Q
        + 2 * Tk * D * (2 * D)      # cross KV
        + 4 * Tq * Tk * D           # cross scores + P@V
        + 2 * Tq * D * D            # cross output projection
        + 4 * Tq * D * dff          # FFN
    )
    weight_layer_bytes = sum(
        int(np.prod(stack[k].shape[1:])) * stack[k].dtype.itemsize
        for k in WEIGHT_ORDER)
    act_bytes = (dec_in.size + enc_out.size + dec_mask.size
                 + dec_enc_mask.size + B * Tq * D) * 4
    cost = pl.CostEstimate(
        flops=int(B * L * flops_per_elem_layer),
        transcendentals=int(B * L * (H * Tq * (Tq + Tk) + 3 * Tq)),
        bytes_accessed=int(nb * L * weight_layer_bytes + act_bytes),
    )

    # ---- explicit VMEM budget (double-buffered blocks + attention temporaries) ----
    block_bytes = (2 * Bt * Tq * D * 4 + Bt * Tk * D * 4
                   + Bt * Tq * Tq * 4 + Bt * Tq * Tk * 4 + weight_layer_bytes)
    tmp_bytes = Bt * (Tq * (3 * D + dff) + 3 * H * Tq * max(Tq, Tk)) * 4
    vmem_limit = int(min(64 * 1024 * 1024,
                         max(32 * 1024 * 1024, 2 * block_bytes + 2 * tmp_bytes)))

    kernel = functools.partial(decoder_stack_kernel, num_heads=num_heads)
    return pl.pallas_call(
        kernel,
        out_shape=jax.ShapeDtypeStruct((B, Tq, D), jnp.float32),
        grid=(nb, L),
        in_specs=in_specs,
        out_specs=pl.BlockSpec((Bt, Tq, D), lambda b, l: (b, 0, 0)),
        compiler_params=pltpu.CompilerParams(
            dimension_semantics=("parallel", "arbitrary"),
            vmem_limit_bytes=vmem_limit),
        cost_estimate=cost,
    )(dec_in, enc_out, dec_mask, dec_enc_mask, *[stack[k] for k in WEIGHT_ORDER])


# ----------------------------------------------------------------------------
# Parameter init (deterministic; mirrors the module's shapes / init distributions)
# ----------------------------------------------------------------------------
def _init_layer(key, d_model, num_heads, d_ff):
    hdim = d_model // num_heads
    HD = num_heads * hdim
    ks = jax.random.split(key, 20)
    std_qk = np.sqrt(2.0 / (d_model + hdim))
    std_v = np.sqrt(2.0 / (d_model + hdim))
    bb = 1.0 / np.sqrt(d_model)
    bo_b = 1.0 / np.sqrt(HD)
    b1 = 1.0 / np.sqrt(d_model)
    b2 = 1.0 / np.sqrt(d_ff)

    def w(k, shape, std):
        return std * jax.random.normal(k, shape, jnp.float32)

    def u(k, shape, bound):
        return jax.random.uniform(k, shape, jnp.float32, -bound, bound)

    layer = {
        # self attention: fused QKV (head-major column grouping, as in the ref)
        "s_wqkv": jnp.concatenate([w(ks[0], (d_model, HD), std_qk),
                                   w(ks[1], (d_model, HD), std_qk),
                                   w(ks[2], (d_model, HD), std_v)], axis=1),
        "s_bqkv": jnp.concatenate([u(ks[3], (1, HD), bb),
                                   u(ks[4], (1, HD), bb),
                                   u(ks[5], (1, HD), bb)], axis=1),
        "s_wo": w(ks[6], (HD, d_model), std_v),
        "s_bo": u(ks[7], (1, d_model), bo_b),
        # cross attention: separate Q (from decoder), fused KV (from encoder)
        "c_wq": w(ks[8], (d_model, HD), std_qk),
        "c_bq": u(ks[9], (1, HD), bb),
        "c_wkv": jnp.concatenate([w(ks[10], (d_model, HD), std_qk),
                                  w(ks[11], (d_model, HD), std_v)], axis=1),
        "c_bkv": jnp.concatenate([u(ks[12], (1, HD), bb),
                                  u(ks[13], (1, HD), bb)], axis=1),
        "c_wo": w(ks[14], (HD, d_model), std_v),
        "c_bo": u(ks[15], (1, d_model), bo_b),
        # position-wise FFN (Conv1d k=1 == Linear)
        "f_w1": u(ks[16], (d_model, d_ff), b1),
        "f_b1": u(ks[17], (1, d_ff), b1),
        "f_w2": u(ks[18], (d_ff, d_model), b2),
        "f_b2": u(ks[19], (1, d_model), b2),
        # packed LayerNorm params: rows = [g1, b1, g2, b2, g3, b3]
        "ln": jnp.concatenate([jnp.ones((1, d_model), jnp.float32),
                               jnp.zeros((1, d_model), jnp.float32)] * 3, axis=0),
    }
    return layer


def init_decoder_params(key, num_layers, dec_dim, num_heads, dff, tgt_len,
                        tgt_vocab_size):
    keys = jax.random.split(key, num_layers + 1)
    per_layer = [_init_layer(keys[i + 1], dec_dim, num_heads, dff)
                 for i in range(num_layers)]
    stack = {}
    for k in WEIGHT_ORDER:
        a = jnp.stack([lp[k] for lp in per_layer], axis=0)
        if k in BF16_KEYS:
            a = a.astype(jnp.bfloat16)      # halve weight DMA / VMEM bytes
        stack[k] = a
    return {
        "tgt_emb": jax.random.normal(keys[0], (tgt_vocab_size, dec_dim), jnp.float32),
        "pos_emb": pos_sinusoid_embedding(tgt_len, dec_dim),
        "stack": stack,
    }


# ----------------------------------------------------------------------------
# Decoder forward (embedding gather stays in plain JAX; everything else fused)
# ----------------------------------------------------------------------------
def decoder_forward(params, labels, enc_out, dec_mask, dec_enc_mask, *,
                    num_heads, batch_tile=None):
    tgt_emb = params["tgt_emb"][labels]                    # (B, T, D)
    pos_emb = params["pos_emb"][: labels.shape[1]]         # (T, D)
    dec_in = tgt_emb + pos_emb[None, :, :]                 # dropout_emb == identity
    return decoder_stack(dec_in, enc_out, dec_mask, dec_enc_mask, params["stack"],
                         num_heads=num_heads, batch_tile=batch_tile)


# ----------------------------------------------------------------------------
# Pure-JAX reference (PyTorch-equivalent math) for numerical validation
# ----------------------------------------------------------------------------
def decoder_reference(params, labels, enc_out, dec_mask, dec_enc_mask, *, num_heads):
    w = {k: v.astype(jnp.float32) for k, v in params["stack"].items()}
    x = params["tgt_emb"][labels] + params["pos_emb"][: labels.shape[1]][None]
    L = w["s_wqkv"].shape[0]
    D = x.shape[-1]
    H = num_heads
    dk = D // H
    HD = H * dk

    def mha(xq, xkv, mask, wq, bq, wk, bk, wv, bv, wo, bo):
        B, Tq, _ = xq.shape
        Tk = xkv.shape[1]
        q = (xq @ wq + bq).reshape(B, Tq, H, dk).transpose(0, 2, 1, 3)
        k = (xkv @ wk + bk).reshape(B, Tk, H, dk).transpose(0, 2, 1, 3)
        v = (xkv @ wv + bv).reshape(B, Tk, H, dk).transpose(0, 2, 1, 3)
        s = jnp.einsum("bhqe,bhke->bhqk", q, k) / np.sqrt(dk)
        s = jnp.where(mask[:, None] > 0.5, -10000.0, s)
        p = jax.nn.softmax(s, axis=-1)
        o = jnp.einsum("bhqk,bhke->bhqe", p, v)
        o = o.transpose(0, 2, 1, 3).reshape(B, Tq, HD)
        return o @ wo + bo

    def ln_fn(z, g, b):
        mu = z.mean(-1, keepdims=True)
        var = ((z - mu) ** 2).mean(-1, keepdims=True)
        return (z - mu) * jax.lax.rsqrt(var + 1e-5) * g + b

    for li in range(L):
        ln = w["ln"][li]
        wqkv, bqkv = w["s_wqkv"][li], w["s_bqkv"][li]
        ctx = mha(x, x, dec_mask,
                  wqkv[:, :HD], bqkv[:, :HD],
                  wqkv[:, HD:2 * HD], bqkv[:, HD:2 * HD],
                  wqkv[:, 2 * HD:], bqkv[:, 2 * HD:],
                  w["s_wo"][li], w["s_bo"][li])
        x = ln_fn(x + ctx, ln[0], ln[1])
        wkv, bkv = w["c_wkv"][li], w["c_bkv"][li]
        ctx = mha(x, enc_out, dec_enc_mask,
                  w["c_wq"][li], w["c_bq"][li],
                  wkv[:, :HD], bkv[:, :HD],
                  wkv[:, HD:], bkv[:, HD:],
                  w["c_wo"][li], w["c_bo"][li])
        x = ln_fn(x + ctx, ln[2], ln[3])
        h = jax.nn.relu(x @ w["f_w1"][li] + w["f_b1"][li])
        f = h @ w["f_w2"][li] + w["f_b2"][li]
        x = ln_fn(x + f, ln[4], ln[5])
    return x


# ----------------------------------------------------------------------------
if __name__ == "__main__":
    B, T_DEC, T_ENC = 2, 8, 8
    DEC_DIM, NUM_HEADS, DFF = 32, 4, 64
    NUM_LAYERS, TGT_LEN, VOCAB = 2, 8, 50

    key = jax.random.PRNGKey(0)
    k_par, k_lab, k_enc = jax.random.split(key, 3)

    params = init_decoder_params(k_par, NUM_LAYERS, DEC_DIM, NUM_HEADS, DFF,
                                 TGT_LEN, VOCAB)

    labels = jax.random.randint(k_lab, (B, T_DEC), 0, VOCAB, dtype=jnp.int32)
    enc_out = jax.random.normal(k_enc, (B, T_ENC, DEC_DIM), jnp.float32)

    # causal self-attention mask (1.0 == masked) and all-visible cross mask
    causal = jnp.triu(jnp.ones((T_DEC, T_DEC), jnp.float32), k=1)
    dec_mask = jnp.broadcast_to(causal, (B, T_DEC, T_DEC))
    dec_enc_mask = jnp.zeros((B, T_DEC, T_ENC), jnp.float32)

    ref = decoder_reference(params, labels, enc_out, dec_mask, dec_enc_mask,
                            num_heads=NUM_HEADS)

    # batch_tile=1: grid=(B, L)  -> parallel axis of length 2 (v7x megacore path)
    # batch_tile=B: grid=(1, L)  -> per-layer weights fetched exactly once
    max_err = 0.0
    out = None
    for bt in (1, B):
        fwd = jax.jit(functools.partial(decoder_forward,
                                        num_heads=NUM_HEADS, batch_tile=bt))
        out = fwd(params, labels, enc_out, dec_mask, dec_enc_mask)
        jax.block_until_ready(out)
        assert out.shape == (B, T_DEC, DEC_DIM)
        assert bool(jnp.all(jnp.isfinite(out)))
        max_err = max(max_err, float(jnp.max(jnp.abs(out - ref))))

    assert max_err < 5e-2, f"max abs error vs reference: {max_err}"
    print("KERNEL_OK")
</pallas_src>

<mosaic_0001>
module attributes {stable_mosaic.version = 11 : i64} {
  func.func @decoder_stack_kernel(%arg0: i32, %arg1: i32, %arg2: memref<1x8x32xf32, #tpu.memory_space<vmem>>, %arg3: memref<1x8x32xf32, #tpu.memory_space<vmem>>, %arg4: memref<1x8x8xf32, #tpu.memory_space<vmem>>, %arg5: memref<1x8x8xf32, #tpu.memory_space<vmem>>, %arg6: memref<1x32x96xbf16, #tpu.memory_space<vmem>>, %arg7: memref<1x1x96xf32, #tpu.memory_space<vmem>>, %arg8: memref<1x32x32xbf16, #tpu.memory_space<vmem>>, %arg9: memref<1x1x32xf32, #tpu.memory_space<vmem>>, %arg10: memref<1x32x32xbf16, #tpu.memory_space<vmem>>, %arg11: memref<1x1x32xf32, #tpu.memory_space<vmem>>, %arg12: memref<1x32x64xbf16, #tpu.memory_space<vmem>>, %arg13: memref<1x1x64xf32, #tpu.memory_space<vmem>>, %arg14: memref<1x32x32xbf16, #tpu.memory_space<vmem>>, %arg15: memref<1x1x32xf32, #tpu.memory_space<vmem>>, %arg16: memref<1x32x64xbf16, #tpu.memory_space<vmem>>, %arg17: memref<1x1x64xf32, #tpu.memory_space<vmem>>, %arg18: memref<1x64x32xbf16, #tpu.memory_space<vmem>>, %arg19: memref<1x1x32xf32, #tpu.memory_space<vmem>>, %arg20: memref<1x6x32xf32, #tpu.memory_space<vmem>>, %arg21: memref<1x8x32xf32, #tpu.memory_space<vmem>>) attributes {dimension_semantics = [#tpu.dimension_semantics<parallel>, #tpu.dimension_semantics<arbitrary>], iteration_bounds = array<i64: 2, 2>, scalar_prefetch = 0 : i64, scratch_operands = 0 : i64, tpu.core_type = #tpu.core_type<tc>, window_params = [{transform_indices = @transform_0, window_bounds = array<i64: 1, 8, 32>}, {transform_indices = @transform_1, window_bounds = array<i64: 1, 8, 32>}, {transform_indices = @transform_2, window_bounds = array<i64: 1, 8, 8>}, {transform_indices = @transform_3, window_bounds = array<i64: 1, 8, 8>}, {transform_indices = @transform_4, window_bounds = array<i64: 1, 32, 96>}, {transform_indices = @transform_5, window_bounds = array<i64: 1, 1, 96>}, {transform_indices = @transform_6, window_bounds = array<i64: 1, 32, 32>}, {transform_indices = @transform_7, window_bounds = array<i64: 1, 1, 32>}, {transform_indices = @transform_8, window_bounds = array<i64: 1, 32, 32>}, {transform_indices = @transform_9, window_bounds = array<i64: 1, 1, 32>}, {transform_indices = @transform_10, window_bounds = array<i64: 1, 32, 64>}, {transform_indices = @transform_11, window_bounds = array<i64: 1, 1, 64>}, {transform_indices = @transform_12, window_bounds = array<i64: 1, 32, 32>}, {transform_indices = @transform_13, window_bounds = array<i64: 1, 1, 32>}, {transform_indices = @transform_14, window_bounds = array<i64: 1, 32, 64>}, {transform_indices = @transform_15, window_bounds = array<i64: 1, 1, 64>}, {transform_indices = @transform_16, window_bounds = array<i64: 1, 64, 32>}, {transform_indices = @transform_17, window_bounds = array<i64: 1, 1, 32>}, {transform_indices = @transform_18, window_bounds = array<i64: 1, 6, 32>}, {transform_indices = @transform_19, window_bounds = array<i64: 1, 8, 32>}]} {
    %c0_i32 = arith.constant 0 : i32
    %0 = arith.cmpi eq, %arg1, %c0_i32 : i32
    %1 = arith.extui %0 : i1 to i32
    %c0_i32_0 = arith.constant 0 : i32
    %2 = arith.cmpi ne, %1, %c0_i32_0 : i32
    scf.if %2 {
      %c0_138 = arith.constant 0 : index
      %c0_139 = arith.constant 0 : index
      %c0_140 = arith.constant 0 : index
      %323 = vector.load %arg2[%c0_138, %c0_139, %c0_140] : memref<1x8x32xf32, #tpu.memory_space<vmem>>, vector<1x8x32xf32>
      %c0_141 = arith.constant 0 : index
      %c0_142 = arith.constant 0 : index
      %c0_143 = arith.constant 0 : index
      %324 = vector.load %arg21[%c0_141, %c0_142, %c0_143] : memref<1x8x32xf32, #tpu.memory_space<vmem>>, vector<1x8x32xf32>
      tpu.vector_store %arg21[%c0_141, %c0_142, %c0_143], %323 {strides = array<i32>} : memref<1x8x32xf32, #tpu.memory_space<vmem>>, vector<1x8x32xf32>,
    } else {
    }
    %c0 = arith.constant 0 : index
    %c0_1 = arith.constant 0 : index
    %c0_2 = arith.constant 0 : index
    %3 = vector.load %arg21[%c0, %c0_1, %c0_2] : memref<1x8x32xf32, #tpu.memory_space<vmem>>, vector<1x8x32xf32>
    %4 = vector.shape_cast %3 : vector<1x8x32xf32> to vector<8x32xf32>
    %c0_3 = arith.constant 0 : index
    %c0_4 = arith.constant 0 : index
    %c0_5 = arith.constant 0 : index
    %5 = vector.load %arg3[%c0_3, %c0_4, %c0_5] : memref<1x8x32xf32, #tpu.memory_space<vmem>>, vector<1x8x32xf32>
    %6 = vector.shape_cast %5 : vector<1x8x32xf32> to vector<8x32xf32>
    %c0_6 = arith.constant 0 : index
    %c0_7 = arith.constant 0 : index
    %c0_8 = arith.constant 0 : index
    %7 = vector.load %arg4[%c0_6, %c0_7, %c0_8] : memref<1x8x8xf32, #tpu.memory_space<vmem>>, vector<1x8x8xf32>
    %c0_9 = arith.constant 0 : index
    %c0_10 = arith.constant 0 : index
    %c0_11 = arith.constant 0 : index
    %8 = vector.load %arg5[%c0_9, %c0_10, %c0_11] : memref<1x8x8xf32, #tpu.memory_space<vmem>>, vector<1x8x8xf32>
    %c0_12 = arith.constant 0 : index
    %c0_13 = arith.constant 0 : index
    %c0_14 = arith.constant 0 : index
    %9 = vector.load %arg20[%c0_12, %c0_13, %c0_14] : memref<1x6x32xf32, #tpu.memory_space<vmem>>, vector<1x6x32xf32>
    %10 = vector.shape_cast %9 : vector<1x6x32xf32> to vector<6x32xf32>
    %11 = arith.truncf %4 : vector<8x32xf32> to vector<8x32xbf16>
    %c0_15 = arith.constant 0 : index
    %c0_16 = arith.constant 0 : index
    %c0_17 = arith.constant 0 : index
    %12 = vector.load %arg6[%c0_15, %c0_16, %c0_17] : memref<1x32x96xbf16, #tpu.memory_space<vmem>>, vector<1x32x96xbf16>
    %13 = vector.shape_cast %12 : vector<1x32x96xbf16> to vector<32x96xbf16>
    %cst = arith.constant dense<0.000000e+00> : vector<8x96xf32>
    %14 = tpu.matmul %11, %13, %cst {dimension_numbers = #tpu.dot_dimension_numbers<[1], [0], [0], [1], [0, 0, 1, 1], [], []>} : vector<8x32xbf16>, vector<32x96xbf16>, vector<8x96xf32> -> vector<8x96xf32>
    %c0_18 = arith.constant 0 : index
    %c0_19 = arith.constant 0 : index
    %c0_20 = arith.constant 0 : index
    %15 = vector.load %arg7[%c0_18, %c0_19, %c0_20] : memref<1x1x96xf32, #tpu.memory_space<vmem>>, vector<1x1x96xf32>
    %16 = vector.shape_cast %15 : vector<1x1x96xf32> to vector<1x96xf32>
    %17 = vector.broadcast %16 : vector<1x96xf32> to vector<8x96xf32>
    %18 = arith.addf %14, %17 : vector<8x96xf32>
    %19 = vector.extract_strided_slice %18 {offsets = [0, 0], sizes = [8, 32], strides = [1, 1]} : vector<8x96xf32> to vector<8x32xf32>
    %20 = vector.extract_strided_slice %18 {offsets = [0, 32], sizes = [8, 32], strides = [1, 1]} : vector<8x96xf32> to vector<8x32xf32>
    %21 = vector.extract_strided_slice %18 {offsets = [0, 64], sizes = [8, 32], strides = [1, 1]} : vector<8x96xf32> to vector<8x32xf32>
    %22 = vector.shape_cast %7 : vector<1x8x8xf32> to vector<8x8xf32>
    %23 = vector.extract_strided_slice %19 {offsets = [0, 0], sizes = [8, 8], strides = [1, 1]} : vector<8x32xf32> to vector<8x8xf32>
    %24 = vector.extract_strided_slice %20 {offsets = [0, 0], sizes = [8, 8], strides = [1, 1]} : vector<8x32xf32> to vector<8x8xf32>
    %25 = vector.extract_strided_slice %21 {offsets = [0, 0], sizes = [8, 8], strides = [1, 1]} : vector<8x32xf32> to vector<8x8xf32>
    %cst_21 = arith.constant dense<0.000000e+00> : vector<8x8xf32>
    %26 = tpu.matmul %23, %24, %cst_21 {dimension_numbers = #tpu.dot_dimension_numbers<[1], [1], [0], [0], [0, 0, 1, 0], [], []>} : vector<8x8xf32>, vector<8x8xf32>, vector<8x8xf32> -> vector<8x8xf32>
    %cst_22 = arith.constant 0.353553385 : f32
    %27 = vector.broadcast %cst_22 : f32 to vector<8x8xf32>
    %28 = arith.mulf %26, %27 : vector<8x8xf32>
    %cst_23 = arith.constant 5.000000e-01 : f32
    %29 = vector.broadcast %cst_23 : f32 to vector<8x8xf32>
    %30 = arith.cmpf ogt, %22, %29 : vector<8x8xf32>
    %cst_24 = arith.constant -1.000000e+04 : f32
    %31 = vector.broadcast %cst_24 : f32 to vector<8x8xf32>
    %32 = arith.select %30, %31, %28 : vector<8x8xi1>, vector<8x8xf32>
    %cst_25 = arith.constant dense<0xFF800000> : vector<8xf32>
    %33 = vector.multi_reduction <maximumf>, %32, %cst_25 [1] : vector<8x8xf32> to vector<8xf32>
    %34 = vector.shape_cast %33 : vector<8xf32> to vector<8x1xf32>
    %35 = vector.broadcast %34 : vector<8x1xf32> to vector<8x8xf32>
    %36 = arith.subf %32, %35 : vector<8x8xf32>
    %37 = math.exp %36 : vector<8x8xf32>
    %cst_26 = arith.constant dense<0.000000e+00> : vector<8xf32>
    %38 = vector.multi_reduction <add>, %37, %cst_26 [1] : vector<8x8xf32> to vector<8xf32>
    %39 = vector.shape_cast %38 : vector<8xf32> to vector<8x1xf32>
    %40 = tpu.reciprocal %39 {approx = true} : vector<8x1xf32> -> vector<8x1xf32>
    %41 = vector.broadcast %40 : vector<8x1xf32> to vector<8x8xf32>
    %42 = arith.mulf %37, %41 : vector<8x8xf32>
    %cst_27 = arith.constant dense<0.000000e+00> : vector<8x8xf32>
    %43 = tpu.matmul %42, %25, %cst_27 {dimension_numbers = #tpu.dot_dimension_numbers<[1], [0], [0], [1], [0, 0, 1, 1], [], []>} : vector<8x8xf32>, vector<8x8xf32>, vector<8x8xf32> -> vector<8x8xf32>
    %44 = vector.extract_strided_slice %19 {offsets = [0, 8], sizes = [8, 8], strides = [1, 1]} : vector<8x32xf32> to vector<8x8xf32>
    %45 = vector.extract_strided_slice %20 {offsets = [0, 8], sizes = [8, 8], strides = [1, 1]} : vector<8x32xf32> to vector<8x8xf32>
    %46 = vector.extract_strided_slice %21 {offsets = [0, 8], sizes = [8, 8], strides = [1, 1]} : vector<8x32xf32> to vector<8x8xf32>
    %cst_28 = arith.constant dense<0.000000e+00> : vector<8x8xf32>
    %47 = tpu.matmul %44, %45, %cst_28 {dimension_numbers = #tpu.dot_dimension_numbers<[1], [1], [0], [0], [0, 0, 1, 0], [], []>} : vector<8x8xf32>, vector<8x8xf32>, vector<8x8xf32> -> vector<8x8xf32>
    %cst_29 = arith.constant 0.353553385 : f32
    %48 = vector.broadcast %cst_29 : f32 to vector<8x8xf32>
    %49 = arith.mulf %47, %48 : vector<8x8xf32>
    %cst_30 = arith.constant 5.000000e-01 : f32
    %50 = vector.broadcast %cst_30 : f32 to vector<8x8xf32>
    %51 = arith.cmpf ogt, %22, %50 : vector<8x8xf32>
    %cst_31 = arith.constant -1.000000e+04 : f32
    %52 = vector.broadcast %cst_31 : f32 to vector<8x8xf32>
    %53 = arith.select %51, %52, %49 : vector<8x8xi1>, vector<8x8xf32>
    %cst_32 = arith.constant dense<0xFF800000> : vector<8xf32>
    %54 = vector.multi_reduction <maximumf>, %53, %cst_32 [1] : vector<8x8xf32> to vector<8xf32>
    %55 = vector.shape_cast %54 : vector<8xf32> to vector<8x1xf32>
    %56 = vector.broadcast %55 : vector<8x1xf32> to vector<8x8xf32>
    %57 = arith.subf %53, %56 : vector<8x8xf32>
    %58 = math.exp %57 : vector<8x8xf32>
    %cst_33 = arith.constant dense<0.000000e+00> : vector<8xf32>
    %59 = vector.multi_reduction <add>, %58, %cst_33 [1] : vector<8x8xf32> to vector<8xf32>
    %60 = vector.shape_cast %59 : vector<8xf32> to vector<8x1xf32>
    %61 = tpu.reciprocal %60 {approx = true} : vector<8x1xf32> -> vector<8x1xf32>
    %62 = vector.broadcast %61 : vector<8x1xf32> to vector<8x8xf32>
    %63 = arith.mulf %58, %62 : vector<8x8xf32>
    %cst_34 = arith.constant dense<0.000000e+00> : vector<8x8xf32>
    %64 = tpu.matmul %63, %46, %cst_34 {dimension_numbers = #tpu.dot_dimension_numbers<[1], [0], [0], [1], [0, 0, 1, 1], [], []>} : vector<8x8xf32>, vector<8x8xf32>, vector<8x8xf32> -> vector<8x8xf32>
    %65 = vector.extract_strided_slice %19 {offsets = [0, 16], sizes = [8, 8], strides = [1, 1]} : vector<8x32xf32> to vector<8x8xf32>
    %66 = vector.extract_strided_slice %20 {offsets = [0, 16], sizes = [8, 8], strides = [1, 1]} : vector<8x32xf32> to vector<8x8xf32>
    %67 = vector.extract_strided_slice %21 {offsets = [0, 16], sizes = [8, 8], strides = [1, 1]} : vector<8x32xf32> to vector<8x8xf32>
    %cst_35 = arith.constant dense<0.000000e+00> : vector<8x8xf32>
    %68 = tpu.matmul %65, %66, %cst_35 {dimension_numbers = #tpu.dot_dimension_numbers<[1], [1], [0], [0], [0, 0, 1, 0], [], []>} : vector<8x8xf32>, vector<8x8xf32>, vector<8x8xf32> -> vector<8x8xf32>
    %cst_36 = arith.constant 0.353553385 : f32
    %69 = vector.broadcast %cst_36 : f32 to vector<8x8xf32>
    %70 = arith.mulf %68, %69 : vector<8x8xf32>
    %cst_37 = arith.constant 5.000000e-01 : f32
    %71 = vector.broadcast %cst_37 : f32 to vector<8x8xf32>
    %72 = arith.cmpf ogt, %22, %71 : vector<8x8xf32>
    %cst_38 = arith.constant -1.000000e+04 : f32
    %73 = vector.broadcast %cst_38 : f32 to vector<8x8xf32>
    %74 = arith.select %72, %73, %70 : vector<8x8xi1>, vector<8x8xf32>
    %cst_39 = arith.constant dense<0xFF800000> : vector<8xf32>
    %75 = vector.multi_reduction <maximumf>, %74, %cst_39 [1] : vector<8x8xf32> to vector<8xf32>
    %76 = vector.shape_cast %75 : vector<8xf32> to vector<8x1xf32>
    %77 = vector.broadcast %76 : vector<8x1xf32> to vector<8x8xf32>
    %78 = arith.subf %74, %77 : vector<8x8xf32>
    %79 = math.exp %78 : vector<8x8xf32>
    %cst_40 = arith.constant dense<0.000000e+00> : vector<8xf32>
    %80 = vector.multi_reduction <add>, %79, %cst_40 [1] : vector<8x8xf32> to vector<8xf32>
    %81 = vector.shape_cast %80 : vector<8xf32> to vector<8x1xf32>
    %82 = tpu.reciprocal %81 {approx = true} : vector<8x1xf32> -> vector<8x1xf32>
    %83 = vector.broadcast %82 : vector<8x1xf32> to vector<8x8xf32>
    %84 = arith.mulf %79, %83 : vector<8x8xf32>
    %cst_41 = arith.constant dense<0.000000e+00> : vector<8x8xf32>
    %85 = tpu.matmul %84, %67, %cst_41 {dimension_numbers = #tpu.dot_dimension_numbers<[1], [0], [0], [1], [0, 0, 1, 1], [], []>} : vector<8x8xf32>, vector<8x8xf32>, vector<8x8xf32> -> vector<8x8xf32>
    %86 = vector.extract_strided_slice %19 {offsets = [0, 24], sizes = [8, 8], strides = [1, 1]} : vector<8x32xf32> to vector<8x8xf32>
    %87 = vector.extract_strided_slice %20 {offsets = [0, 24], sizes = [8, 8], strides = [1, 1]} : vector<8x32xf32> to vector<8x8xf32>
    %88 = vector.extract_strided_slice %21 {offsets = [0, 24], sizes = [8, 8], strides = [1, 1]} : vector<8x32xf32> to vector<8x8xf32>
    %cst_42 = arith.constant dense<0.000000e+00> : vector<8x8xf32>
    %89 = tpu.matmul %86, %87, %cst_42 {dimension_numbers = #tpu.dot_dimension_numbers<[1], [1], [0], [0], [0, 0, 1, 0], [], []>} : vector<8x8xf32>, vector<8x8xf32>, vector<8x8xf32> -> vector<8x8xf32>
    %cst_43 = arith.constant 0.353553385 : f32
    %90 = vector.broadcast %cst_43 : f32 to vector<8x8xf32>
    %91 = arith.mulf %89, %90 : vector<8x8xf32>
    %cst_44 = arith.constant 5.000000e-01 : f32
    %92 = vector.broadcast %cst_44 : f32 to vector<8x8xf32>
    %93 = arith.cmpf ogt, %22, %92 : vector<8x8xf32>
    %cst_45 = arith.constant -1.000000e+04 : f32
    %94 = vector.broadcast %cst_45 : f32 to vector<8x8xf32>
    %95 = arith.select %93, %94, %91 : vector<8x8xi1>, vector<8x8xf32>
    %cst_46 = arith.constant dense<0xFF800000> : vector<8xf32>
    %96 = vector.multi_reduction <maximumf>, %95, %cst_46 [1] : vector<8x8xf32> to vector<8xf32>
    %97 = vector.shape_cast %96 : vector<8xf32> to vector<8x1xf32>
    %98 = vector.broadcast %97 : vector<8x1xf32> to vector<8x8xf32>
    %99 = arith.subf %95, %98 : vector<8x8xf32>
    %100 = math.exp %99 : vector<8x8xf32>
    %cst_47 = arith.constant dense<0.000000e+00> : vector<8xf32>
    %101 = vector.multi_reduction <add>, %100, %cst_47 [1] : vector<8x8xf32> to vector<8xf32>
    %102 = vector.shape_cast %101 : vector<8xf32> to vector<8x1xf32>
    %103 = tpu.reciprocal %102 {approx = true} : vector<8x1xf32> -> vector<8x1xf32>
    %104 = vector.broadcast %103 : vector<8x1xf32> to vector<8x8xf32>
    %105 = arith.mulf %100, %104 : vector<8x8xf32>
    %cst_48 = arith.constant dense<0.000000e+00> : vector<8x8xf32>
    %106 = tpu.matmul %105, %88, %cst_48 {dimension_numbers = #tpu.dot_dimension_numbers<[1], [0], [0], [1], [0, 0, 1, 1], [], []>} : vector<8x8xf32>, vector<8x8xf32>, vector<8x8xf32> -> vector<8x8xf32>
    %107 = tpu.concatenate %43, %64, %85, %106 in 1 : vector<8x8xf32>, vector<8x8xf32>, vector<8x8xf32>, vector<8x8xf32> -> vector<8x32xf32>
    %108 = arith.truncf %107 : vector<8x32xf32> to vector<8x32xbf16>
    %c0_49 = arith.constant 0 : index
    %c0_50 = arith.constant 0 : index
    %c0_51 = arith.constant 0 : index
    %109 = vector.load %arg8[%c0_49, %c0_50, %c0_51] : memref<1x32x32xbf16, #tpu.memory_space<vmem>>, vector<1x32x32xbf16>
    %110 = vector.shape_cast %109 : vector<1x32x32xbf16> to vector<32x32xbf16>
    %cst_52 = arith.constant dense<0.000000e+00> : vector<8x32xf32>
    %111 = tpu.matmul %108, %110, %cst_52 {dimension_numbers = #tpu.dot_dimension_numbers<[1], [0], [0], [1], [0, 0, 1, 1], [], []>} : vector<8x32xbf16>, vector<32x32xbf16>, vector<8x32xf32> -> vector<8x32xf32>
    %c0_53 = arith.constant 0 : index
    %c0_54 = arith.constant 0 : index
    %c0_55 = arith.constant 0 : index
    %112 = vector.load %arg9[%c0_53, %c0_54, %c0_55] : memref<1x1x32xf32, #tpu.memory_space<vmem>>, vector<1x1x32xf32>
    %113 = vector.shape_cast %112 : vector<1x1x32xf32> to vector<1x32xf32>
    %114 = vector.broadcast %113 : vector<1x32xf32> to vector<8x32xf32>
    %115 = arith.addf %111, %114 : vector<8x32xf32>
    %116 = vector.extract_strided_slice %10 {offsets = [0, 0], sizes = [1, 32], strides = [1, 1]} : vector<6x32xf32> to vector<1x32xf32>
    %117 = vector.extract_strided_slice %10 {offsets = [1, 0], sizes = [1, 32], strides = [1, 1]} : vector<6x32xf32> to vector<1x32xf32>
    %118 = arith.addf %4, %115 : vector<8x32xf32>
    %cst_56 = arith.constant dense<0.000000e+00> : vector<8xf32>
    %119 = vector.multi_reduction <add>, %118, %cst_56 [1] : vector<8x32xf32> to vector<8xf32>
    %120 = vector.shape_cast %119 : vector<8xf32> to vector<8x1xf32>
    %cst_57 = arith.constant 3.200000e+01 : f32
    %121 = vector.broadcast %cst_57 : f32 to vector<8x1xf32>
    %122 = arith.divf %120, %121 : vector<8x1xf32>
    %123 = vector.broadcast %122 : vector<8x1xf32> to vector<8x32xf32>
    %124 = arith.subf %118, %123 : vector<8x32xf32>
    %125 = arith.mulf %124, %124 : vector<8x32xf32>
    %cst_58 = arith.constant dense<0.000000e+00> : vector<8xf32>
    %126 = vector.multi_reduction <add>, %125, %cst_58 [1] : vector<8x32xf32> to vector<8xf32>
    %127 = vector.shape_cast %126 : vector<8xf32> to vector<8x1xf32>
    %cst_59 = arith.constant 3.200000e+01 : f32
    %128 = vector.broadcast %cst_59 : f32 to vector<8x1xf32>
    %129 = arith.divf %127, %128 : vector<8x1xf32>
    %130 = vector.broadcast %122 : vector<8x1xf32> to vector<8x32xf32>
    %131 = arith.subf %118, %130 : vector<8x32xf32>
    %cst_60 = arith.constant 9.99999974E-6 : f32
    %132 = vector.broadcast %cst_60 : f32 to vector<8x1xf32>
    %133 = arith.addf %129, %132 : vector<8x1xf32>
    %134 = math.rsqrt %133 : vector<8x1xf32>
    %135 = vector.broadcast %134 : vector<8x1xf32> to vector<8x32xf32>
    %136 = arith.mulf %131, %135 : vector<8x32xf32>
    %137 = vector.broadcast %116 : vector<1x32xf32> to vector<8x32xf32>
    %138 = arith.mulf %136, %137 : vector<8x32xf32>
    %139 = vector.broadcast %117 : vector<1x32xf32> to vector<8x32xf32>
    %140 = arith.addf %138, %139 : vector<8x32xf32>
    %141 = arith.truncf %140 : vector<8x32xf32> to vector<8x32xbf16>
    %c0_61 = arith.constant 0 : index
    %c0_62 = arith.constant 0 : index
    %c0_63 = arith.constant 0 : index
    %142 = vector.load %arg10[%c0_61, %c0_62, %c0_63] : memref<1x32x32xbf16, #tpu.memory_space<vmem>>, vector<1x32x32xbf16>
    %143 = vector.shape_cast %142 : vector<1x32x32xbf16> to vector<32x32xbf16>
    %cst_64 = arith.constant dense<0.000000e+00> : vector<8x32xf32>
    %144 = tpu.matmul %141, %143, %cst_64 {dimension_numbers = #tpu.dot_dimension_numbers<[1], [0], [0], [1], [0, 0, 1, 1], [], []>} : vector<8x32xbf16>, vector<32x32xbf16>, vector<8x32xf32> -> vector<8x32xf32>
    %c0_65 = arith.constant 0 : index
    %c0_66 = arith.constant 0 : index
    %c0_67 = arith.constant 0 : index
    %145 = vector.load %arg11[%c0_65, %c0_66, %c0_67] : memref<1x1x32xf32, #tpu.memory_space<vmem>>, vector<1x1x32xf32>
    %146 = vector.shape_cast %145 : vector<1x1x32xf32> to vector<1x32xf32>
    %147 = vector.broadcast %146 : vector<1x32xf32> to vector<8x32xf32>
    %148 = arith.addf %144, %147 : vector<8x32xf32>
    %149 = arith.truncf %6 : vector<8x32xf32> to vector<8x32xbf16>
    %c0_68 = arith.constant 0 : index
    %c0_69 = arith.constant 0 : index
    %c0_70 = arith.constant 0 : index
    %150 = vector.load %arg12[%c0_68, %c0_69, %c0_70] : memref<1x32x64xbf16, #tpu.memory_space<vmem>>, vector<1x32x64xbf16>
    %151 = vector.shape_cast %150 : vector<1x32x64xbf16> to vector<32x64xbf16>
    %cst_71 = arith.constant dense<0.000000e+00> : vector<8x64xf32>
    %152 = tpu.matmul %149, %151, %cst_71 {dimension_numbers = #tpu.dot_dimension_numbers<[1], [0], [0], [1], [0, 0, 1, 1], [], []>} : vector<8x32xbf16>, vector<32x64xbf16>, vector<8x64xf32> -> vector<8x64xf32>
    %c0_72 = arith.constant 0 : index
    %c0_73 = arith.constant 0 : index
    %c0_74 = arith.constant 0 : index
    %153 = vector.load %arg13[%c0_72, %c0_73, %c0_74] : memref<1x1x64xf32, #tpu.memory_space<vmem>>, vector<1x1x64xf32>
    %154 = vector.shape_cast %153 : vector<1x1x64xf32> to vector<1x64xf32>
    %155 = vector.broadcast %154 : vector<1x64xf32> to vector<8x64xf32>
    %156 = arith.addf %152, %155 : vector<8x64xf32>
    %157 = vector.extract_strided_slice %156 {offsets = [0, 0], sizes = [8, 32], strides = [1, 1]} : vector<8x64xf32> to vector<8x32xf32>
    %158 = vector.extract_strided_slice %156 {offsets = [0, 32], sizes = [8, 32], strides = [1, 1]} : vector<8x64xf32> to vector<8x32xf32>
    %159 = vector.shape_cast %8 : vector<1x8x8xf32> to vector<8x8xf32>
    %160 = vector.extract_strided_slice %148 {offsets = [0, 0], sizes = [8, 8], strides = [1, 1]} : vector<8x32xf32> to vector<8x8xf32>
    %161 = vector.extract_strided_slice %157 {offsets = [0, 0], sizes = [8, 8], strides = [1, 1]} : vector<8x32xf32> to vector<8x8xf32>
    %162 = vector.extract_strided_slice %158 {offsets = [0, 0], sizes = [8, 8], strides = [1, 1]} : vector<8x32xf32> to vector<8x8xf32>
    %cst_75 = arith.constant dense<0.000000e+00> : vector<8x8xf32>
    %163 = tpu.matmul %160, %161, %cst_75 {dimension_numbers = #tpu.dot_dimension_numbers<[1], [1], [0], [0], [0, 0, 1, 0], [], []>} : vector<8x8xf32>, vector<8x8xf32>, vector<8x8xf32> -> vector<8x8xf32>
    %cst_76 = arith.constant 0.353553385 : f32
    %164 = vector.broadcast %cst_76 : f32 to vector<8x8xf32>
    %165 = arith.mulf %163, %164 : vector<8x8xf32>
    %cst_77 = arith.constant 5.000000e-01 : f32
    %166 = vector.broadcast %cst_77 : f32 to vector<8x8xf32>
    %167 = arith.cmpf ogt, %159, %166 : vector<8x8xf32>
    %cst_78 = arith.constant -1.000000e+04 : f32
    %168 = vector.broadcast %cst_78 : f32 to vector<8x8xf32>
    %169 = arith.select %167, %168, %165 : vector<8x8xi1>, vector<8x8xf32>
    %cst_79 = arith.constant dense<0xFF800000> : vector<8xf32>
    %170 = vector.multi_reduction <maximumf>, %169, %cst_79 [1] : vector<8x8xf32> to vector<8xf32>
    %171 = vector.shape_cast %170 : vector<8xf32> to vector<8x1xf32>
    %172 = vector.broadcast %171 : vector<8x1xf32> to vector<8x8xf32>
    %173 = arith.subf %169, %172 : vector<8x8xf32>
    %174 = math.exp %173 : vector<8x8xf32>
    %cst_80 = arith.constant dense<0.000000e+00> : vector<8xf32>
    %175 = vector.multi_reduction <add>, %174, %cst_80 [1] : vector<8x8xf32> to vector<8xf32>
    %176 = vector.shape_cast %175 : vector<8xf32> to vector<8x1xf32>
    %177 = tpu.reciprocal %176 {approx = true} : vector<8x1xf32> -> vector<8x1xf32>
    %178 = vector.broadcast %177 : vector<8x1xf32> to vector<8x8xf32>
    %179 = arith.mulf %174, %178 : vector<8x8xf32>
    %cst_81 = arith.constant dense<0.000000e+00> : vector<8x8xf32>
    %180 = tpu.matmul %179, %162, %cst_81 {dimension_numbers = #tpu.dot_dimension_numbers<[1], [0], [0], [1], [0, 0, 1, 1], [], []>} : vector<8x8xf32>, vector<8x8xf32>, vector<8x8xf32> -> vector<8x8xf32>
    %181 = vector.extract_strided_slice %148 {offsets = [0, 8], sizes = [8, 8], strides = [1, 1]} : vector<8x32xf32> to vector<8x8xf32>
    %182 = vector.extract_strided_slice %157 {offsets = [0, 8], sizes = [8, 8], strides = [1, 1]} : vector<8x32xf32> to vector<8x8xf32>
    %183 = vector.extract_strided_slice %158 {offsets = [0, 8], sizes = [8, 8], strides = [1, 1]} : vector<8x32xf32> to vector<8x8xf32>
    %cst_82 = arith.constant dense<0.000000e+00> : vector<8x8xf32>
    %184 = tpu.matmul %181, %182, %cst_82 {dimension_numbers = #tpu.dot_dimension_numbers<[1], [1], [0], [0], [0, 0, 1, 0], [], []>} : vector<8x8xf32>, vector<8x8xf32>, vector<8x8xf32> -> vector<8x8xf32>
    %cst_83 = arith.constant 0.353553385 : f32
    %185 = vector.broadcast %cst_83 : f32 to vector<8x8xf32>
    %186 = arith.mulf %184, %185 : vector<8x8xf32>
    %cst_84 = arith.constant 5.000000e-01 : f32
    %187 = vector.broadcast %cst_84 : f32 to vector<8x8xf32>
    %188 = arith.cmpf ogt, %159, %187 : vector<8x8xf32>
    %cst_85 = arith.constant -1.000000e+04 : f32
    %189 = vector.broadcast %cst_85 : f32 to vector<8x8xf32>
    %190 = arith.select %188, %189, %186 : vector<8x8xi1>, vector<8x8xf32>
    %cst_86 = arith.constant dense<0xFF800000> : vector<8xf32>
    %191 = vector.multi_reduction <maximumf>, %190, %cst_86 [1] : vector<8x8xf32> to vector<8xf32>
    %192 = vector.shape_cast %191 : vector<8xf32> to vector<8x1xf32>
    %193 = vector.broadcast %192 : vector<8x1xf32> to vector<8x8xf32>
    %194 = arith.subf %190, %193 : vector<8x8xf32>
    %195 = math.exp %194 : vector<8x8xf32>
    %cst_87 = arith.constant dense<0.000000e+00> : vector<8xf32>
    %196 = vector.multi_reduction <add>, %195, %cst_87 [1] : vector<8x8xf32> to vector<8xf32>
    %197 = vector.shape_cast %196 : vector<8xf32> to vector<8x1xf32>
    %198 = tpu.reciprocal %197 {approx = true} : vector<8x1xf32> -> vector<8x1xf32>
    %199 = vector.broadcast %198 : vector<8x1xf32> to vector<8x8xf32>
    %200 = arith.mulf %195, %199 : vector<8x8xf32>
    %cst_88 = arith.constant dense<0.000000e+00> : vector<8x8xf32>
    %201 = tpu.matmul %200, %183, %cst_88 {dimension_numbers = #tpu.dot_dimension_numbers<[1], [0], [0], [1], [0, 0, 1, 1], [], []>} : vector<8x8xf32>, vector<8x8xf32>, vector<8x8xf32> -> vector<8x8xf32>
    %202 = vector.extract_strided_slice %148 {offsets = [0, 16], sizes = [8, 8], strides = [1, 1]} : vector<8x32xf32> to vector<8x8xf32>
    %203 = vector.extract_strided_slice %157 {offsets = [0, 16], sizes = [8, 8], strides = [1, 1]} : vector<8x32xf32> to vector<8x8xf32>
    %204 = vector.extract_strided_slice %158 {offsets = [0, 16], sizes = [8, 8], strides = [1, 1]} : vector<8x32xf32> to vector<8x8xf32>
    %cst_89 = arith.constant dense<0.000000e+00> : vector<8x8xf32>
    %205 = tpu.matmul %202, %203, %cst_89 {dimension_numbers = #tpu.dot_dimension_numbers<[1], [1], [0], [0], [0, 0, 1, 0], [], []>} : vector<8x8xf32>, vector<8x8xf32>, vector<8x8xf32> -> vector<8x8xf32>
    %cst_90 = arith.constant 0.353553385 : f32
    %206 = vector.broadcast %cst_90 : f32 to vector<8x8xf32>
    %207 = arith.mulf %205, %206 : vector<8x8xf32>
    %cst_91 = arith.constant 5.000000e-01 : f32
    %208 = vector.broadcast %cst_91 : f32 to vector<8x8xf32>
    %209 = arith.cmpf ogt, %159, %208 : vector<8x8xf32>
    %cst_92 = arith.constant -1.000000e+04 : f32
    %210 = vector.broadcast %cst_92 : f32 to vector<8x8xf32>
    %211 = arith.select %209, %210, %207 : vector<8x8xi1>, vector<8x8xf32>
    %cst_93 = arith.constant dense<0xFF800000> : vector<8xf32>
    %212 = vector.multi_reduction <maximumf>, %211, %cst_93 [1] : vector<8x8xf32> to vector<8xf32>
    %213 = vector.shape_cast %212 : vector<8xf32> to vector<8x1xf32>
    %214 = vector.broadcast %213 : vector<8x1xf32> to vector<8x8xf32>
    %215 = arith.subf %211, %214 : vector<8x8xf32>
    %216 = math.exp %215 : vector<8x8xf32>
    %cst_94 = arith.constant dense<0.000000e+00> : vector<8xf32>
    %217 = vector.multi_reduction <add>, %216, %cst_94 [1] : vector<8x8xf32> to vector<8xf32>
    %218 = vector.shape_cast %217 : vector<8xf32> to vector<8x1xf32>
    %219 = tpu.reciprocal %218 {approx = true} : vector<8x1xf32> -> vector<8x1xf32>
    %220 = vector.broadcast %219 : vector<8x1xf32> to vector<8x8xf32>
    %221 = arith.mulf %216, %220 : vector<8x8xf32>
    %cst_95 = arith.constant dense<0.000000e+00> : vector<8x8xf32>
    %222 = tpu.matmul %221, %204, %cst_95 {dimension_numbers = #tpu.dot_dimension_numbers<[1], [0], [0], [1], [0, 0, 1, 1], [], []>} : vector<8x8xf32>, vector<8x8xf32>, vector<8x8xf32> -> vector<8x8xf32>
    %223 = vector.extract_strided_slice %148 {offsets = [0, 24], sizes = [8, 8], strides = [1, 1]} : vector<8x32xf32> to vector<8x8xf32>
    %224 = vector.extract_strided_slice %157 {offsets = [0, 24], sizes = [8, 8], strides = [1, 1]} : vector<8x32xf32> to vector<8x8xf32>
    %225 = vector.extract_strided_slice %158 {offsets = [0, 24], sizes = [8, 8], strides = [1, 1]} : vector<8x32xf32> to vector<8x8xf32>
    %cst_96 = arith.constant dense<0.000000e+00> : vector<8x8xf32>
    %226 = tpu.matmul %223, %224, %cst_96 {dimension_numbers = #tpu.dot_dimension_numbers<[1], [1], [0], [0], [0, 0, 1, 0], [], []>} : vector<8x8xf32>, vector<8x8xf32>, vector<8x8xf32> -> vector<8x8xf32>
    %cst_97 = arith.constant 0.353553385 : f32
    %227 = vector.broadcast %cst_97 : f32 to vector<8x8xf32>
    %228 = arith.mulf %226, %227 : vector<8x8xf32>
    %cst_98 = arith.constant 5.000000e-01 : f32
    %229 = vector.broadcast %cst_98 : f32 to vector<8x8xf32>
    %230 = arith.cmpf ogt, %159, %229 : vector<8x8xf32>
    %cst_99 = arith.constant -1.000000e+04 : f32
    %231 = vector.broadcast %cst_99 : f32 to vector<8x8xf32>
    %232 = arith.select %230, %231, %228 : vector<8x8xi1>, vector<8x8xf32>
    %cst_100 = arith.constant dense<0xFF800000> : vector<8xf32>
    %233 = vector.multi_reduction <maximumf>, %232, %cst_100 [1] : vector<8x8xf32> to vector<8xf32>
    %234 = vector.shape_cast %233 : vector<8xf32> to vector<8x1xf32>
    %235 = vector.broadcast %234 : vector<8x1xf32> to vector<8x8xf32>
    %236 = arith.subf %232, %235 : vector<8x8xf32>
    %237 = math.exp %236 : vector<8x8xf32>
    %cst_101 = arith.constant dense<0.000000e+00> : vector<8xf32>
    %238 = vector.multi_reduction <add>, %237, %cst_101 [1] : vector<8x8xf32> to vector<8xf32>
    %239 = vector.shape_cast %238 : vector<8xf32> to vector<8x1xf32>
    %240 = tpu.reciprocal %239 {approx = true} : vector<8x1xf32> -> vector<8x1xf32>
    %241 = vector.broadcast %240 : vector<8x1xf32> to vector<8x8xf32>
    %242 = arith.mulf %237, %241 : vector<8x8xf32>
    %cst_102 = arith.constant dense<0.000000e+00> : vector<8x8xf32>
    %243 = tpu.matmul %242, %225, %cst_102 {dimension_numbers = #tpu.dot_dimension_numbers<[1], [0], [0], [1], [0, 0, 1, 1], [], []>} : vector<8x8xf32>, vector<8x8xf32>, vector<8x8xf32> -> vector<8x8xf32>
    %244 = tpu.concatenate %180, %201, %222, %243 in 1 : vector<8x8xf32>, vector<8x8xf32>, vector<8x8xf32>, vector<8x8xf32> -> vector<8x32xf32>
    %245 = arith.truncf %244 : vector<8x32xf32> to vector<8x32xbf16>
    %c0_103 = arith.constant 0 : index
    %c0_104 = arith.constant 0 : index
    %c0_105 = arith.constant 0 : index
    %246 = vector.load %arg14[%c0_103, %c0_104, %c0_105] : memref<1x32x32xbf16, #tpu.memory_space<vmem>>, vector<1x32x32xbf16>
    %247 = vector.shape_cast %246 : vector<1x32x32xbf16> to vector<32x32xbf16>
    %cst_106 = arith.constant dense<0.000000e+00> : vector<8x32xf32>
    %248 = tpu.matmul %245, %247, %cst_106 {dimension_numbers = #tpu.dot_dimension_numbers<[1], [0], [0], [1], [0, 0, 1, 1], [], []>} : vector<8x32xbf16>, vector<32x32xbf16>, vector<8x32xf32> -> vector<8x32xf32>
    %c0_107 = arith.constant 0 : index
    %c0_108 = arith.constant 0 : index
    %c0_109 = arith.constant 0 : index
    %249 = vector.load %arg15[%c0_107, %c0_108, %c0_109] : memref<1x1x32xf32, #tpu.memory_space<vmem>>, vector<1x1x32xf32>
    %250 = vector.shape_cast %249 : vector<1x1x32xf32> to vector<1x32xf32>
    %251 = vector.broadcast %250 : vector<1x32xf32> to vector<8x32xf32>
    %252 = arith.addf %248, %251 : vector<8x32xf32>
    %253 = vector.extract_strided_slice %10 {offsets = [2, 0], sizes = [1, 32], strides = [1, 1]} : vector<6x32xf32> to vector<1x32xf32>
    %254 = vector.extract_strided_slice %10 {offsets = [3, 0], sizes = [1, 32], strides = [1, 1]} : vector<6x32xf32> to vector<1x32xf32>
    %255 = arith.addf %140, %252 : vector<8x32xf32>
    %cst_110 = arith.constant dense<0.000000e+00> : vector<8xf32>
    %256 = vector.multi_reduction <add>, %255, %cst_110 [1] : vector<8x32xf32> to vector<8xf32>
    %257 = vector.shape_cast %256 : vector<8xf32> to vector<8x1xf32>
    %cst_111 = arith.constant 3.200000e+01 : f32
    %258 = vector.broadcast %cst_111 : f32 to vector<8x1xf32>
    %259 = arith.divf %257, %258 : vector<8x1xf32>
    %260 = vector.broadcast %259 : vector<8x1xf32> to vector<8x32xf32>
    %261 = arith.subf %255, %260 : vector<8x32xf32>
    %262 = arith.mulf %261, %261 : vector<8x32xf32>
    %cst_112 = arith.constant dense<0.000000e+00> : vector<8xf32>
    %263 = vector.multi_reduction <add>, %262, %cst_112 [1] : vector<8x32xf32> to vector<8xf32>
    %264 = vector.shape_cast %263 : vector<8xf32> to vector<8x1xf32>
    %cst_113 = arith.constant 3.200000e+01 : f32
    %265 = vector.broadcast %cst_113 : f32 to vector<8x1xf32>
    %266 = arith.divf %264, %265 : vector<8x1xf32>
    %267 = vector.broadcast %259 : vector<8x1xf32> to vector<8x32xf32>
    %268 = arith.subf %255, %267 : vector<8x32xf32>
    %cst_114 = arith.constant 9.99999974E-6 : f32
    %269 = vector.broadcast %cst_114 : f32 to vector<8x1xf32>
    %270 = arith.addf %266, %269 : vector<8x1xf32>
    %271 = math.rsqrt %270 : vector<8x1xf32>
    %272 = vector.broadcast %271 : vector<8x1xf32> to vector<8x32xf32>
    %273 = arith.mulf %268, %272 : vector<8x32xf32>
    %274 = vector.broadcast %253 : vector<1x32xf32> to vector<8x32xf32>
    %275 = arith.mulf %273, %274 : vector<8x32xf32>
    %276 = vector.broadcast %254 : vector<1x32xf32> to vector<8x32xf32>
    %277 = arith.addf %275, %276 : vector<8x32xf32>
    %278 = arith.truncf %277 : vector<8x32xf32> to vector<8x32xbf16>
    %c0_115 = arith.constant 0 : index
    %c0_116 = arith.constant 0 : index
    %c0_117 = arith.constant 0 : index
    %279 = vector.load %arg16[%c0_115, %c0_116, %c0_117] : memref<1x32x64xbf16, #tpu.memory_space<vmem>>, vector<1x32x64xbf16>
    %280 = vector.shape_cast %279 : vector<1x32x64xbf16> to vector<32x64xbf16>
    %cst_118 = arith.constant dense<0.000000e+00> : vector<8x64xf32>
    %281 = tpu.matmul %278, %280, %cst_118 {dimension_numbers = #tpu.dot_dimension_numbers<[1], [0], [0], [1], [0, 0, 1, 1], [], []>} : vector<8x32xbf16>, vector<32x64xbf16>, vector<8x64xf32> -> vector<8x64xf32>
    %c0_119 = arith.constant 0 : index
    %c0_120 = arith.constant 0 : index
    %c0_121 = arith.constant 0 : index
    %282 = vector.load %arg17[%c0_119, %c0_120, %c0_121] : memref<1x1x64xf32, #tpu.memory_space<vmem>>, vector<1x1x64xf32>
    %283 = vector.shape_cast %282 : vector<1x1x64xf32> to vector<1x64xf32>
    %284 = vector.broadcast %283 : vector<1x64xf32> to vector<8x64xf32>
    %285 = arith.addf %281, %284 : vector<8x64xf32>
    %cst_122 = arith.constant 0.000000e+00 : f32
    %286 = vector.broadcast %cst_122 : f32 to vector<8x64xf32>
    %287 = arith.maximumf %285, %286 : vector<8x64xf32>
    %288 = arith.truncf %287 : vector<8x64xf32> to vector<8x64xbf16>
    %c0_123 = arith.constant 0 : index
    %c0_124 = arith.constant 0 : index
    %c0_125 = arith.constant 0 : index
    %289 = vector.load %arg18[%c0_123, %c0_124, %c0_125] : memref<1x64x32xbf16, #tpu.memory_space<vmem>>, vector<1x64x32xbf16>
    %290 = vector.shape_cast %289 : vector<1x64x32xbf16> to vector<64x32xbf16>
    %cst_126 = arith.constant dense<0.000000e+00> : vector<8x32xf32>
    %291 = tpu.matmul %288, %290, %cst_126 {dimension_numbers = #tpu.dot_dimension_numbers<[1], [0], [0], [1], [0, 0, 1, 1], [], []>} : vector<8x64xbf16>, vector<64x32xbf16>, vector<8x32xf32> -> vector<8x32xf32>
    %c0_127 = arith.constant 0 : index
    %c0_128 = arith.constant 0 : index
    %c0_129 = arith.constant 0 : index
    %292 = vector.load %arg19[%c0_127, %c0_128, %c0_129] : memref<1x1x32xf32, #tpu.memory_space<vmem>>, vector<1x1x32xf32>
    %293 = vector.shape_cast %292 : vector<1x1x32xf32> to vector<1x32xf32>
    %294 = vector.broadcast %293 : vector<1x32xf32> to vector<8x32xf32>
    %295 = arith.addf %291, %294 : vector<8x32xf32>
    %296 = vector.extract_strided_slice %10 {offsets = [4, 0], sizes = [1, 32], strides = [1, 1]} : vector<6x32xf32> to vector<1x32xf32>
    %297 = vector.extract_strided_slice %10 {offsets = [5, 0], sizes = [1, 32], strides = [1, 1]} : vector<6x32xf32> to vector<1x32xf32>
    %298 = arith.addf %277, %295 : vector<8x32xf32>
    %cst_130 = arith.constant dense<0.000000e+00> : vector<8xf32>
    %299 = vector.multi_reduction <add>, %298, %cst_130 [1] : vector<8x32xf32> to vector<8xf32>
    %300 = vector.shape_cast %299 : vector<8xf32> to vector<8x1xf32>
    %cst_131 = arith.constant 3.200000e+01 : f32
    %301 = vector.broadcast %cst_131 : f32 to vector<8x1xf32>
    %302 = arith.divf %300, %301 : vector<8x1xf32>
    %303 = vector.broadcast %302 : vector<8x1xf32> to vector<8x32xf32>
    %304 = arith.subf %298, %303 : vector<8x32xf32>
    %305 = arith.mulf %304, %304 : vector<8x32xf32>
    %cst_132 = arith.constant dense<0.000000e+00> : vector<8xf32>
    %306 = vector.multi_reduction <add>, %305, %cst_132 [1] : vector<8x32xf32> to vector<8xf32>
    %307 = vector.shape_cast %306 : vector<8xf32> to vector<8x1xf32>
    %cst_133 = arith.constant 3.200000e+01 : f32
    %308 = vector.broadcast %cst_133 : f32 to vector<8x1xf32>
    %309 = arith.divf %307, %308 : vector<8x1xf32>
    %310 = vector.broadcast %302 : vector<8x1xf32> to vector<8x32xf32>
    %311 = arith.subf %298, %310 : vector<8x32xf32>
    %cst_134 = arith.constant 9.99999974E-6 : f32
    %312 = vector.broadcast %cst_134 : f32 to vector<8x1xf32>
    %313 = arith.addf %309, %312 : vector<8x1xf32>
    %314 = math.rsqrt %313 : vector<8x1xf32>
    %315 = vector.broadcast %314 : vector<8x1xf32> to vector<8x32xf32>
    %316 = arith.mulf %311, %315 : vector<8x32xf32>
    %317 = vector.broadcast %296 : vector<1x32xf32> to vector<8x32xf32>
    %318 = arith.mulf %316, %317 : vector<8x32xf32>
    %319 = vector.broadcast %297 : vector<1x32xf32> to vector<8x32xf32>
    %320 = arith.addf %318, %319 : vector<8x32xf32>
    %321 = vector.shape_cast %320 : vector<8x32xf32> to vector<1x8x32xf32>
    %c0_135 = arith.constant 0 : index
    %c0_136 = arith.constant 0 : index
    %c0_137 = arith.constant 0 : index
    %322 = vector.load %arg21[%c0_135, %c0_136, %c0_137] : memref<1x8x32xf32, #tpu.memory_space<vmem>>, vector<1x8x32xf32>
    tpu.vector_store %arg21[%c0_135, %c0_136, %c0_137], %321 {strides = array<i32>} : memref<1x8x32xf32, #tpu.memory_space<vmem>>, vector<1x8x32xf32>,
    return
  }
  func.func @transform_0(%arg0: i32, %arg1: i32) -> (i32, i32, i32) {
    %c0_i32 = arith.constant 0 : i32
    %c0_i32_0 = arith.constant 0 : i32
    %c0_i32_1 = arith.constant 0 : i32
    return %arg0, %c0_i32, %c0_i32_0 : i32, i32, i32
  }
  func.func @transform_1(%arg0: i32, %arg1: i32) -> (i32, i32, i32) {
    %c0_i32 = arith.constant 0 : i32
    %c0_i32_0 = arith.constant 0 : i32
    %c0_i32_1 = arith.constant 0 : i32
    return %arg0, %c0_i32, %c0_i32_0 : i32, i32, i32
  }
  func.func @transform_2(%arg0: i32, %arg1: i32) -> (i32, i32, i32) {
    %c0_i32 = arith.constant 0 : i32
    %c0_i32_0 = arith.constant 0 : i32
    %c0_i32_1 = arith.constant 0 : i32
    return %arg0, %c0_i32, %c0_i32_0 : i32, i32, i32
  }
  func.func @transform_3(%arg0: i32, %arg1: i32) -> (i32, i32, i32) {
    %c0_i32 = arith.constant 0 : i32
    %c0_i32_0 = arith.constant 0 : i32
    %c0_i32_1 = arith.constant 0 : i32
    return %arg0, %c0_i32, %c0_i32_0 : i32, i32, i32
  }
  func.func @transform_4(%arg0: i32, %arg1: i32) -> (i32, i32, i32) {
    %c0_i32 = arith.constant 0 : i32
    %c0_i32_0 = arith.constant 0 : i32
    %c0_i32_1 = arith.constant 0 : i32
    return %arg1, %c0_i32, %c0_i32_0 : i32, i32, i32
  }
  func.func @transform_5(%arg0: i32, %arg1: i32) -> (i32, i32, i32) {
    %c0_i32 = arith.constant 0 : i32
    %c0_i32_0 = arith.constant 0 : i32
    %c0_i32_1 = arith.constant 0 : i32
    return %arg1, %c0_i32, %c0_i32_0 : i32, i32, i32
  }
  func.func @transform_6(%arg0: i32, %arg1: i32) -> (i32, i32, i32) {
    %c0_i32 = arith.constant 0 : i32
    %c0_i32_0 = arith.constant 0 : i32
    %c0_i32_1 = arith.constant 0 : i32
    return %arg1, %c0_i32, %c0_i32_0 : i32, i32, i32
  }
  func.func @transform_7(%arg0: i32, %arg1: i32) -> (i32, i32, i32) {
    %c0_i32 = arith.constant 0 : i32
    %c0_i32_0 = arith.constant 0 : i32
    %c0_i32_1 = arith.constant 0 : i32
    return %arg1, %c0_i32, %c0_i32_0 : i32, i32, i32
  }
  func.func @transform_8(%arg0: i32, %arg1: i32) -> (i32, i32, i32) {
    %c0_i32 = arith.constant 0 : i32
    %c0_i32_0 = arith.constant 0 : i32
    %c0_i32_1 = arith.constant 0 : i32
    return %arg1, %c0_i32, %c0_i32_0 : i32, i32, i32
  }
  func.func @transform_9(%arg0: i32, %arg1: i32) -> (i32, i32, i32) {
    %c0_i32 = arith.constant 0 : i32
    %c0_i32_0 = arith.constant 0 : i32
    %c0_i32_1 = arith.constant 0 : i32
    return %arg1, %c0_i32, %c0_i32_0 : i32, i32, i32
  }
  func.func @transform_10(%arg0: i32, %arg1: i32) -> (i32, i32, i32) {
    %c0_i32 = arith.constant 0 : i32
    %c0_i32_0 = arith.constant 0 : i32
    %c0_i32_1 = arith.constant 0 : i32
    return %arg1, %c0_i32, %c0_i32_0 : i32, i32, i32
  }
  func.func @transform_11(%arg0: i32, %arg1: i32) -> (i32, i32, i32) {
    %c0_i32 = arith.constant 0 : i32
    %c0_i32_0 = arith.constant 0 : i32
    %c0_i32_1 = arith.constant 0 : i32
    return %arg1, %c0_i32, %c0_i32_0 : i32, i32, i32
  }
  func.func @transform_12(%arg0: i32, %arg1: i32) -> (i32, i32, i32) {
    %c0_i32 = arith.constant 0 : i32
    %c0_i32_0 = arith.constant 0 : i32
    %c0_i32_1 = arith.constant 0 : i32
    return %arg1, %c0_i32, %c0_i32_0 : i32, i32, i32
  }
  func.func @transform_13(%arg0: i32, %arg1: i32) -> (i32, i32, i32) {
    %c0_i32 = arith.constant 0 : i32
    %c0_i32_0 = arith.constant 0 : i32
    %c0_i32_1 = arith.constant 0 : i32
    return %arg1, %c0_i32, %c0_i32_0 : i32, i32, i32
  }
  func.func @transform_14(%arg0: i32, %arg1: i32) -> (i32, i32, i32) {
    %c0_i32 = arith.constant 0 : i32
    %c0_i32_0 = arith.constant 0 : i32
    %c0_i32_1 = arith.constant 0 : i32
    return %arg1, %c0_i32, %c0_i32_0 : i32, i32, i32
  }
  func.func @transform_15(%arg0: i32, %arg1: i32) -> (i32, i32, i32) {
    %c0_i32 = arith.constant 0 : i32
    %c0_i32_0 = arith.constant 0 : i32
    %c0_i32_1 = arith.constant 0 : i32
    return %arg1, %c0_i32, %c0_i32_0 : i32, i32, i32
  }
  func.func @transform_16(%arg0: i32, %arg1: i32) -> (i32, i32, i32) {
    %c0_i32 = arith.constant 0 : i32
    %c0_i32_0 = arith.constant 0 : i32
    %c0_i32_1 = arith.constant 0 : i32
    return %arg1, %c0_i32, %c0_i32_0 : i32, i32, i32
  }
  func.func @transform_17(%arg0: i32, %arg1: i32) -> (i32, i32, i32) {
    %c0_i32 = arith.constant 0 : i32
    %c0_i32_0 = arith.constant 0 : i32
    %c0_i32_1 = arith.constant 0 : i32
    return %arg1, %c0_i32, %c0_i32_0 : i32, i32, i32
  }
  func.func @transform_18(%arg0: i32, %arg1: i32) -> (i32, i32, i32) {
    %c0_i32 = arith.constant 0 : i32
    %c0_i32_0 = arith.constant 0 : i32
    %c0_i32_1 = arith.constant 0 : i32
    return %arg1, %c0_i32, %c0_i32_0 : i32, i32, i32
  }
  func.func @transform_19(%arg0: i32, %arg1: i32) -> (i32, i32, i32) {
    %c0_i32 = arith.constant 0 : i32
    %c0_i32_0 = arith.constant 0 : i32
    %c0_i32_1 = arith.constant 0 : i32
    return %arg0, %c0_i32, %c0_i32_0 : i32, i32, i32
  }
}

</mosaic_0001>

<llo_original>
// kernel: decoder_forward.1
$region0: #{decoder_forward.1}
  #allocation0 [shape = 'u32[]', space=smem, size = 0x4, offset = 0x4, fixed_abs, tag = 'smem constant byte address 0x4 - core index']
  #allocation1 [shape = 'u32[144,128]{1,0:T(1,128)}', space=vmem, size = 0x12000, scoped, tag = 'internal scratch']
  %s0 = inlined_call_operand.vmem [shape: f32[2,8,32], index: 0, kind: input, shape index: {}]
  %s1 = inlined_call_operand.vmem [shape: f32[2,8,32], index: 1, kind: input, shape index: {}]
  %s2 = inlined_call_operand.vmem [shape: f32[2,8,8], index: 2, kind: input, shape index: {}]
  %s3 = inlined_call_operand.vmem [shape: f32[2,8,8], index: 3, kind: input, shape index: {}]
  %s4 = inlined_call_operand.vmem [shape: bf16[2,32,96], index: 4, kind: input, shape index: {}]
  %s5 = inlined_call_operand.vmem [shape: f32[2,1,96], index: 5, kind: input, shape index: {}]
  %s6 = inlined_call_operand.vmem [shape: bf16[2,32,32], index: 6, kind: input, shape index: {}]
  %s7 = inlined_call_operand.vmem [shape: f32[2,1,32], index: 7, kind: input, shape index: {}]
  %s8 = inlined_call_operand.vmem [shape: bf16[2,32,32], index: 8, kind: input, shape index: {}]
  %s9 = inlined_call_operand.vmem [shape: f32[2,1,32], index: 9, kind: input, shape index: {}]
  %s10 = inlined_call_operand.vmem [shape: bf16[2,32,64], index: 10, kind: input, shape index: {}]
  %s11 = inlined_call_operand.vmem [shape: f32[2,1,64], index: 11, kind: input, shape index: {}]
  %s12 = inlined_call_operand.vmem [shape: bf16[2,32,32], index: 12, kind: input, shape index: {}]
  %s13 = inlined_call_operand.vmem [shape: f32[2,1,32], index: 13, kind: input, shape index: {}]
  %s14 = inlined_call_operand.vmem [shape: bf16[2,32,64], index: 14, kind: input, shape index: {}]
  %s15 = inlined_call_operand.vmem [shape: f32[2,1,64], index: 15, kind: input, shape index: {}]
  %s16 = inlined_call_operand.vmem [shape: bf16[2,64,32], index: 16, kind: input, shape index: {}]
  %s17 = inlined_call_operand.vmem [shape: f32[2,1,32], index: 17, kind: input, shape index: {}]
  %s18 = inlined_call_operand.vmem [shape: f32[2,6,32], index: 18, kind: input, shape index: {}]
  %s19 = inlined_call_operand.hbm [shape: f32[2,8,32], index: 19, kind: output, shape index: {}]
  %s20 = sld [smem:[#allocation0]]
  $region113: #{decoder_forward.1} parent=0
    _
  %s22 = ssub.s32 1, %s20
  %s23 = scalar_select 0, %s22, %s20
  $region1: #{decoder_forward.1} parent=0
    #allocation2 [shape = 'u8[8192]{0}', space=vmem, size = 0x2000, scoped, tag = 'output window, operand 0']
    #allocation3 [shape = 's32[2]{0}', space=sflag, size = 0x8, scoped, tag = 'scoped memory for decoder_forward.1']
    %24 = vsyncpa [#allocation3], 0
    %s25 = scalar_lea.sflag [#allocation3], 1
    %26 = vsyncpa %s25, 0
    loop: start=0, step=1, limit=6
    $region2: #{decoder_forward.1} parent=1 // loop_pre_header
      _
    $region3: #{decoder_forward.1} parent=1 // loop_header
      %s28 = sphi 0, %s32
      %p29 = scmp.ge.s32.totalorder %s28, 6
      %s35 = sphi 0, %s47
      %s36 = sphi 0, %s43
      %s37 = sphi 0, %s35
      %s38 = sphi 0, %s36
      %s39 = sphi 0, %s37
      %s40 = sphi 0, %s38
      %s50 = sphi 0, %s52
      %s53 = sphi 0, %s50
      %s54 = sphi 0, %s53
      %s70 = sphi 0, %s54
      %s76 = sphi 0, %s78
      %s79 = sphi 0, %s76
      %s80 = sphi 0, %s79
      %s96 = sphi 0, %s80
      %s102 = sphi 0, %s104
      %s105 = sphi 0, %s102
      %s106 = sphi 0, %s105
      %s122 = sphi 0, %s106
      %s128 = sphi 0, %s130
      %s131 = sphi 0, %s128
      %s132 = sphi 0, %s131
      %s148 = sphi 0, %s132
      %s154 = sphi 0, %s156
      %s157 = sphi 0, %s154
      %s158 = sphi 0, %s157
      %s174 = sphi 0, %s158
      %s180 = sphi 0, %s182
      %s183 = sphi 0, %s180
      %s184 = sphi 0, %s183
      %s200 = sphi 0, %s184
      %s206 = sphi 0, %s208
      %s209 = sphi 0, %s206
      %s210 = sphi 0, %s209
      %s226 = sphi 0, %s210
      %s232 = sphi 0, %s234
      %s235 = sphi 0, %s232
      %s236 = sphi 0, %s235
      %s252 = sphi 0, %s236
      %s258 = sphi 0, %s260
      %s261 = sphi 0, %s258
      %s262 = sphi 0, %s261
      %s278 = sphi 0, %s262
      %s284 = sphi 0, %s286
      %s287 = sphi 0, %s284
      %s288 = sphi 0, %s287
      %s304 = sphi 0, %s288
      %s310 = sphi 0, %s312
      %s313 = sphi 0, %s310
      %s314 = sphi 0, %s313
      %s330 = sphi 0, %s314
      %s336 = sphi 0, %s338
      %s339 = sphi 0, %s336
      %s340 = sphi 0, %s339
      %s356 = sphi 0, %s340
      %s362 = sphi 0, %s364
      %s365 = sphi 0, %s362
      %s366 = sphi 0, %s365
      %s382 = sphi 0, %s366
      %s388 = sphi 0, %s390
      %s391 = sphi 0, %s388
      %s392 = sphi 0, %s391
      %s408 = sphi 0, %s392
      %s414 = sphi 0, %s416
      %s417 = sphi 0, %s414
      %s418 = sphi 0, %s417
      %s434 = sphi 0, %s418
      %s440 = sphi 0, %s442
      %s443 = sphi 0, %s440
      %s444 = sphi 0, %s443
      %s460 = sphi 0, %s444
      %s466 = sphi 0, %s468
      %s469 = sphi 0, %s466
      %s470 = sphi 0, %s469
      %s486 = sphi 0, %s470
      %s492 = sphi 0, %s494
      %s495 = sphi 0, %s492
      %s496 = sphi 0, %s495
      %s512 = sphi 0, %s496
      %s518 = sphi 0, %s520
      %s521 = sphi 0, %s518
      %s522 = sphi 0, %s521
      %s538 = sphi 0, %s522
      %s544 = sphi 0, %s546
      %s547 = sphi 0, %s544
      %s548 = sphi 0, %s547
      %s564 = sphi 0, %s548
    $region4: #{decoder_forward.1} parent=1 // loop_header_branch
      %31 = sbr.rel (%p29) target = $region8
    $region5: #{decoder_forward.1} parent=1 // loop_body
      %s33 = ssub.s32 %s28, 1
      %s34 = ssub.s32 %s28, 2
      %s41 = sadd.s32 1, %s36
      %p42 = scmp.ge.s32.totalorder %s41, 2
      %s43 = scalar_select %p42, 0, %s41
      %s44 = sadd.s32 1, %s35
      %s45 = scalar_select %p42, %s44, %s35
      %p46 = scmp.ge.s32.totalorder %s45, 2
      %s47 = scalar_select %p46, 0, %s45
      %s48 = ssub.s32 %s35, %s47
      %p49 = scmp.eq.s32.totalorder %s48, 0
      %s51 = sadd.s32 %s50, 1
      %s52 = scalar_select %p49, %s50, %s51
      %p55 = pneg %p49
      %p56 = scmp.eq.s32.totalorder %s28, 3
      %p57 = por %p55, %p56
      %p58 = scmp.ne.s32.totalorder %s50, %s53
      %p59 = scmp.eq.s32.totalorder %s28, 0
      %p60 = por %p58, %p59
      %p61 = scmp.ne.s32.totalorder %s50, %s53
      %p62 = scmp.eq.s32.totalorder %s33, 3
      %p63 = por %p61, %p62
      %p64 = scmp.ne.s32.totalorder %s53, %s54
      %p65 = scmp.eq.s32.totalorder %s33, 0
      %p66 = por %p64, %p65
      %p67 = scmp.ne.s32.totalorder %s53, %s54
      %p68 = scmp.eq.s32.totalorder %s34, 3
      %p69 = por %p67, %p68
      %p71 = scmp.ne.s32.totalorder %s54, %s70
      %p72 = scmp.eq.s32.totalorder %s34, 0
      %p73 = por %p71, %p72
      %s74 = ssub.s32 %s35, %s47
      %p75 = scmp.eq.s32.totalorder %s74, 0
      %s77 = sadd.s32 %s76, 1
      %s78 = scalar_select %p75, %s76, %s77
      %p81 = pneg %p75
      %p82 = scmp.eq.s32.totalorder %s28, 3
      %p83 = por %p81, %p82
      %p84 = scmp.ne.s32.totalorder %s76, %s79
      %p85 = scmp.eq.s32.totalorder %s28, 0
      %p86 = por %p84, %p85
      %p87 = scmp.ne.s32.totalorder %s76, %s79
      %p88 = scmp.eq.s32.totalorder %s33, 3
      %p89 = por %p87, %p88
      %p90 = scmp.ne.s32.totalorder %s79, %s80
      %p91 = scmp.eq.s32.totalorder %s33, 0
      %p92 = por %p90, %p91
      %p93 = scmp.ne.s32.totalorder %s79, %s80
      %p94 = scmp.eq.s32.totalorder %s34, 3
      %p95 = por %p93, %p94
      %p97 = scmp.ne.s32.totalorder %s80, %s96
      %p98 = scmp.eq.s32.totalorder %s34, 0
      %p99 = por %p97, %p98
      %s100 = ssub.s32 %s35, %s47
      %p101 = scmp.eq.s32.totalorder %s100, 0
      %s103 = sadd.s32 %s102, 1
      %s104 = scalar_select %p101, %s102, %s103
      %p107 = pneg %p101
      %p108 = scmp.eq.s32.totalorder %s28, 3
      %p109 = por %p107, %p108
      %p110 = scmp.ne.s32.totalorder %s102, %s105
      %p111 = scmp.eq.s32.totalorder %s28, 0
      %p112 = por %p110, %p111
      %p113 = scmp.ne.s32.totalorder %s102, %s105
      %p114 = scmp.eq.s32.totalorder %s33, 3
      %p115 = por %p113, %p114
      %p116 = scmp.ne.s32.totalorder %s105, %s106
      %p117 = scmp.eq.s32.totalorder %s33, 0
      %p118 = por %p116, %p117
      %p119 = scmp.ne.s32.totalorder %s105, %s106
      %p120 = scmp.eq.s32.totalorder %s34, 3
      %p121 = por %p119, %p120
      %p123 = scmp.ne.s32.totalorder %s106, %s122
      %p124 = scmp.eq.s32.totalorder %s34, 0
      %p125 = por %p123, %p124
      %s126 = ssub.s32 %s35, %s47
      %p127 = scmp.eq.s32.totalorder %s126, 0
      %s129 = sadd.s32 %s128, 1
      %s130 = scalar_select %p127, %s128, %s129
      %p133 = pneg %p127
      %p134 = scmp.eq.s32.totalorder %s28, 3
      %p135 = por %p133, %p134
      %p136 = scmp.ne.s32.totalorder %s128, %s131
      %p137 = scmp.eq.s32.totalorder %s28, 0
      %p138 = por %p136, %p137
      %p139 = scmp.ne.s32.totalorder %s128, %s131
      %p140 = scmp.eq.s32.totalorder %s33, 3
      %p141 = por %p139, %p140
      %p142 = scmp.ne.s32.totalorder %s131, %s132
      %p143 = scmp.eq.s32.totalorder %s33, 0
      %p144 = por %p142, %p143
      %p145 = scmp.ne.s32.totalorder %s131, %s132
      %p146 = scmp.eq.s32.totalorder %s34, 3
      %p147 = por %p145, %p146
      %p149 = scmp.ne.s32.totalorder %s132, %s148
      %p150 = scmp.eq.s32.totalorder %s34, 0
      %p151 = por %p149, %p150
      %s152 = ssub.s32 %s36, %s43
      %p153 = scmp.eq.s32.totalorder %s152, 0
      %s155 = sadd.s32 %s154, 1
      %s156 = scalar_select %p153, %s154, %s155
      %p159 = pneg %p153
      %p160 = scmp.eq.s32.totalorder %s28, 3
      %p161 = por %p159, %p160
      %p162 = scmp.ne.s32.totalorder %s154, %s157
      %p163 = scmp.eq.s32.totalorder %s28, 0
      %p164 = por %p162, %p163
      %p165 = scmp.ne.s32.totalorder %s154, %s157
      %p166 = scmp.eq.s32.totalorder %s33, 3
      %p167 = por %p165, %p166
      %p168 = scmp.ne.s32.totalorder %s157, %s158
      %p169 = scmp.eq.s32.totalorder %s33, 0
      %p170 = por %p168, %p169
      %p171 = scmp.ne.s32.totalorder %s157, %s158
      %p172 = scmp.eq.s32.totalorder %s34, 3
      %p173 = por %p171, %p172
      %p175 = scmp.ne.s32.totalorder %s158, %s174
      %p176 = scmp.eq.s32.totalorder %s34, 0
      %p177 = por %p175, %p176
      %s178 = ssub.s32 %s36, %s43
      %p179 = scmp.eq.s32.totalorder %s178, 0
      %s181 = sadd.s32 %s180, 1
      %s182 = scalar_select %p179, %s180, %s181
      %p185 = pneg %p179
      %p186 = scmp.eq.s32.totalorder %s28, 3
      %p187 = por %p185, %p186
      %p188 = scmp.ne.s32.totalorder %s180, %s183
      %p189 = scmp.eq.s32.totalorder %s28, 0
      %p190 = por %p188, %p189
      %p191 = scmp.ne.s32.totalorder %s180, %s183
      %p192 = scmp.eq.s32.totalorder %s33, 3
      %p193 = por %p191, %p192
      %p194 = scmp.ne.s32.totalorder %s183, %s184
      %p195 = scmp.eq.s32.totalorder %s33, 0
      %p196 = por %p194, %p195
      %p197 = scmp.ne.s32.totalorder %s183, %s184
      %p198 = scmp.eq.s32.totalorder %s34, 3
      %p199 = por %p197, %p198
      %p201 = scmp.ne.s32.totalorder %s184, %s200
      %p202 = scmp.eq.s32.totalorder %s34, 0
      %p203 = por %p201, %p202
      %s204 = ssub.s32 %s36, %s43
      %p205 = scmp.eq.s32.totalorder %s204, 0
      %s207 = sadd.s32 %s206, 1
      %s208 = scalar_select %p205, %s206, %s207
      %p211 = pneg %p205
      %p212 = scmp.eq.s32.totalorder %s28, 3
      %p213 = por %p211, %p212
      %p214 = scmp.ne.s32.totalorder %s206, %s209
      %p215 = scmp.eq.s32.totalorder %s28, 0
      %p216 = por %p214, %p215
      %p217 = scmp.ne.s32.totalorder %s206, %s209
      %p218 = scmp.eq.s32.totalorder %s33, 3
      %p219 = por %p217, %p218
      %p220 = scmp.ne.s32.totalorder %s209, %s210
      %p221 = scmp.eq.s32.totalorder %s33, 0
      %p222 = por %p220, %p221
      %p223 = scmp.ne.s32.totalorder %s209, %s210
      %p224 = scmp.eq.s32.totalorder %s34, 3
      %p225 = por %p223, %p224
      %p227 = scmp.ne.s32.totalorder %s210, %s226
      %p228 = scmp.eq.s32.totalorder %s34, 0
      %p229 = por %p227, %p228
      %s230 = ssub.s32 %s36, %s43
      %p231 = scmp.eq.s32.totalorder %s230, 0
      %s233 = sadd.s32 %s232, 1
      %s234 = scalar_select %p231, %s232, %s233
      %p237 = pneg %p231
      %p238 = scmp.eq.s32.totalorder %s28, 3
      %p239 = por %p237, %p238
      %p240 = scmp.ne.s32.totalorder %s232, %s235
      %p241 = scmp.eq.s32.totalorder %s28, 0
      %p242 = por %p240, %p241
      %p243 = scmp.ne.s32.totalorder %s232, %s235
      %p244 = scmp.eq.s32.totalorder %s33, 3
      %p245 = por %p243, %p244
      %p246 = scmp.ne.s32.totalorder %s235, %s236
      %p247 = scmp.eq.s32.totalorder %s33, 0
      %p248 = por %p246, %p247
      %p249 = scmp.ne.s32.totalorder %s235, %s236
      %p250 = scmp.eq.s32.totalorder %s34, 3
      %p251 = por %p249, %p250
      %p253 = scmp.ne.s32.totalorder %s236, %s252
      %p254 = scmp.eq.s32.totalorder %s34, 0
      %p255 = por %p253, %p254
      %s256 = ssub.s32 %s36, %s43
      %p257 = scmp.eq.s32.totalorder %s256, 0
      %s259 = sadd.s32 %s258, 1
      %s260 = scalar_select %p257, %s258, %s259
      %p263 = pneg %p257
      %p264 = scmp.eq.s32.totalorder %s28, 3
      %p265 = por %p263, %p264
      %p266 = scmp.ne.s32.totalorder %s258, %s261
      %p267 = scmp.eq.s32.totalorder %s28, 0
      %p268 = por %p266, %p267
      %p269 = scmp.ne.s32.totalorder %s258, %s261
      %p270 = scmp.eq.s32.totalorder %s33, 3
      %p271 = por %p269, %p270
      %p272 = scmp.ne.s32.totalorder %s261, %s262
      %p273 = scmp.eq.s32.totalorder %s33, 0
      %p274 = por %p272, %p273
      %p275 = scmp.ne.s32.totalorder %s261, %s262
      %p276 = scmp.eq.s32.totalorder %s34, 3
      %p277 = por %p275, %p276
      %p279 = scmp.ne.s32.totalorder %s262, %s278
      %p280 = scmp.eq.s32.totalorder %s34, 0
      %p281 = por %p279, %p280
      %s282 = ssub.s32 %s36, %s43
      %p283 = scmp.eq.s32.totalorder %s282, 0
      %s285 = sadd.s32 %s284, 1
      %s286 = scalar_select %p283, %s284, %s285
      %p289 = pneg %p283
      %p290 = scmp.eq.s32.totalorder %s28, 3
      %p291 = por %p289, %p290
      %p292 = scmp.ne.s32.totalorder %s284, %s287
      %p293 = scmp.eq.s32.totalorder %s28, 0
      %p294 = por %p292, %p293
      %p295 = scmp.ne.s32.totalorder %s284, %s287
      %p296 = scmp.eq.s32.totalorder %s33, 3
      %p297 = por %p295, %p296
      %p298 = scmp.ne.s32.totalorder %s287, %s288
      %p299 = scmp.eq.s32.totalorder %s33, 0
      %p300 = por %p298, %p299
      %p301 = scmp.ne.s32.totalorder %s287, %s288
      %p302 = scmp.eq.s32.totalorder %s34, 3
      %p303 = por %p301, %p302
      %p305 = scmp.ne.s32.totalorder %s288, %s304
      %p306 = scmp.eq.s32.totalorder %s34, 0
      %p307 = por %p305, %p306
      %s308 = ssub.s32 %s36, %s43
      %p309 = scmp.eq.s32.totalorder %s308, 0
      %s311 = sadd.s32 %s310, 1
      %s312 = scalar_select %p309, %s310, %s311
      %p315 = pneg %p309
      %p316 = scmp.eq.s32.totalorder %s28, 3
      %p317 = por %p315, %p316
      %p318 = scmp.ne.s32.totalorder %s310, %s313
      %p319 = scmp.eq.s32.totalorder %s28, 0
      %p320 = por %p318, %p319
      %p321 = scmp.ne.s32.totalorder %s310, %s313
      %p322 = scmp.eq.s32.totalorder %s33, 3
      %p323 = por %p321, %p322
      %p324 = scmp.ne.s32.totalorder %s313, %s314
      %p325 = scmp.eq.s32.totalorder %s33, 0
      %p326 = por %p324, %p325
      %p327 = scmp.ne.s32.totalorder %s313, %s314
      %p328 = scmp.eq.s32.totalorder %s34, 3
      %p329 = por %p327, %p328
      %p331 = scmp.ne.s32.totalorder %s314, %s330
      %p332 = scmp.eq.s32.totalorder %s34, 0
      %p333 = por %p331, %p332
      %s334 = ssub.s32 %s36, %s43
      %p335 = scmp.eq.s32.totalorder %s334, 0
      %s337 = sadd.s32 %s336, 1
      %s338 = scalar_select %p335, %s336, %s337
      %p341 = pneg %p335
      %p342 = scmp.eq.s32.totalorder %s28, 3
      %p343 = por %p341, %p342
      %p344 = scmp.ne.s32.totalorder %s336, %s339
      %p345 = scmp.eq.s32.totalorder %s28, 0
      %p346 = por %p344, %p345
      %p347 = scmp.ne.s32.totalorder %s336, %s339
      %p348 = scmp.eq.s32.totalorder %s33, 3
      %p349 = por %p347, %p348
      %p350 = scmp.ne.s32.totalorder %s339, %s340
      %p351 = scmp.eq.s32.totalorder %s33, 0
      %p352 = por %p350, %p351
      %p353 = scmp.ne.s32.totalorder %s339, %s340
      %p354 = scmp.eq.s32.totalorder %s34, 3
      %p355 = por %p353, %p354
      %p357 = scmp.ne.s32.totalorder %s340, %s356
      %p358 = scmp.eq.s32.totalorder %s34, 0
      %p359 = por %p357, %p358
      %s360 = ssub.s32 %s36, %s43
      %p361 = scmp.eq.s32.totalorder %s360, 0
      %s363 = sadd.s32 %s362, 1
      %s364 = scalar_select %p361, %s362, %s363
      %p367 = pneg %p361
      %p368 = scmp.eq.s32.totalorder %s28, 3
      %p369 = por %p367, %p368
      %p370 = scmp.ne.s32.totalorder %s362, %s365
      %p371 = scmp.eq.s32.totalorder %s28, 0
      %p372 = por %p370, %p371
      %p373 = scmp.ne.s32.totalorder %s362, %s365
      %p374 = scmp.eq.s32.totalorder %s33, 3
      %p375 = por %p373, %p374
      %p376 = scmp.ne.s32.totalorder %s365, %s366
      %p377 = scmp.eq.s32.totalorder %s33, 0
      %p378 = por %p376, %p377
      %p379 = scmp.ne.s32.totalorder %s365, %s366
      %p380 = scmp.eq.s32.totalorder %s34, 3
      %p381 = por %p379, %p380
      %p383 = scmp.ne.s32.totalorder %s366, %s382
      %p384 = scmp.eq.s32.totalorder %s34, 0
      %p385 = por %p383, %p384
      %s386 = ssub.s32 %s36, %s43
      %p387 = scmp.eq.s32.totalorder %s386, 0
      %s389 = sadd.s32 %s388, 1
      %s390 = scalar_select %p387, %s388, %s389
      %p393 = pneg %p387
      %p394 = scmp.eq.s32.totalorder %s28, 3
      %p395 = por %p393, %p394
      %p396 = scmp.ne.s32.totalorder %s388, %s391
      %p397 = scmp.eq.s32.totalorder %s28, 0
      %p398 = por %p396, %p397
      %p399 = scmp.ne.s32.totalorder %s388, %s391
      %p400 = scmp.eq.s32.totalorder %s33, 3
      %p401 = por %p399, %p400
      %p402 = scmp.ne.s32.totalorder %s391, %s392
      %p403 = scmp.eq.s32.totalorder %s33, 0
      %p404 = por %p402, %p403
      %p405 = scmp.ne.s32.totalorder %s391, %s392
      %p406 = scmp.eq.s32.totalorder %s34, 3
      %p407 = por %p405, %p406
      %p409 = scmp.ne.s32.totalorder %s392, %s408
      %p410 = scmp.eq.s32.totalorder %s34, 0
      %p411 = por %p409, %p410
      %s412 = ssub.s32 %s36, %s43
      %p413 = scmp.eq.s32.totalorder %s412, 0
      %s415 = sadd.s32 %s414, 1
      %s416 = scalar_select %p413, %s414, %s415
      %p419 = pneg %p413
      %p420 = scmp.eq.s32.totalorder %s28, 3
      %p421 = por %p419, %p420
      %p422 = scmp.ne.s32.totalorder %s414, %s417
      %p423 = scmp.eq.s32.totalorder %s28, 0
      %p424 = por %p422, %p423
      %p425 = scmp.ne.s32.totalorder %s414, %s417
      %p426 = scmp.eq.s32.totalorder %s33, 3
      %p427 = por %p425, %p426
      %p428 = scmp.ne.s32.totalorder %s417, %s418
      %p429 = scmp.eq.s32.totalorder %s33, 0
      %p430 = por %p428, %p429
      %p431 = scmp.ne.s32.totalorder %s417, %s418
      %p432 = scmp.eq.s32.totalorder %s34, 3
      %p433 = por %p431, %p432
      %p435 = scmp.ne.s32.totalorder %s418, %s434
      %p436 = scmp.eq.s32.totalorder %s34, 0
      %p437 = por %p435, %p436
      %s438 = ssub.s32 %s36, %s43
      %p439 = scmp.eq.s32.totalorder %s438, 0
      %s441 = sadd.s32 %s440, 1
      %s442 = scalar_select %p439, %s440, %s441
      %p445 = pneg %p439
      %p446 = scmp.eq.s32.totalorder %s28, 3
      %p447 = por %p445, %p446
      %p448 = scmp.ne.s32.totalorder %s440, %s443
      %p449 = scmp.eq.s32.totalorder %s28, 0
      %p450 = por %p448, %p449
      %p451 = scmp.ne.s32.totalorder %s440, %s443
      %p452 = scmp.eq.s32.totalorder %s33, 3
      %p453 = por %p451, %p452
      %p454 = scmp.ne.s32.totalorder %s443, %s444
      %p455 = scmp.eq.s32.totalorder %s33, 0
      %p456 = por %p454, %p455
      %p457 = scmp.ne.s32.totalorder %s443, %s444
      %p458 = scmp.eq.s32.totalorder %s34, 3
      %p459 = por %p457, %p458
      %p461 = scmp.ne.s32.totalorder %s444, %s460
      %p462 = scmp.eq.s32.totalorder %s34, 0
      %p463 = por %p461, %p462
      %s464 = ssub.s32 %s36, %s43
      %p465 = scmp.eq.s32.totalorder %s464, 0
      %s467 = sadd.s32 %s466, 1
      %s468 = scalar_select %p465, %s466, %s467
      %p471 = pneg %p465
      %p472 = scmp.eq.s32.totalorder %s28, 3
      %p473 = por %p471, %p472
      %p474 = scmp.ne.s32.totalorder %s466, %s469
      %p475 = scmp.eq.s32.totalorder %s28, 0
      %p476 = por %p474, %p475
      %p477 = scmp.ne.s32.totalorder %s466, %s469
      %p478 = scmp.eq.s32.totalorder %s33, 3
      %p479 = por %p477, %p478
      %p480 = scmp.ne.s32.totalorder %s469, %s470
      %p481 = scmp.eq.s32.totalorder %s33, 0
      %p482 = por %p480, %p481
      %p483 = scmp.ne.s32.totalorder %s469, %s470
      %p484 = scmp.eq.s32.totalorder %s34, 3
      %p485 = por %p483, %p484
      %p487 = scmp.ne.s32.totalorder %s470, %s486
      %p488 = scmp.eq.s32.totalorder %s34, 0
      %p489 = por %p487, %p488
      %s490 = ssub.s32 %s36, %s43
      %p491 = scmp.eq.s32.totalorder %s490, 0
      %s493 = sadd.s32 %s492, 1
      %s494 = scalar_select %p491, %s492, %s493
      %p497 = pneg %p491
      %p498 = scmp.eq.s32.totalorder %s28, 3
      %p499 = por %p497, %p498
      %p500 = scmp.ne.s32.totalorder %s492, %s495
      %p501 = scmp.eq.s32.totalorder %s28, 0
      %p502 = por %p500, %p501
      %p503 = scmp.ne.s32.totalorder %s492, %s495
      %p504 = scmp.eq.s32.totalorder %s33, 3
      %p505 = por %p503, %p504
      %p506 = scmp.ne.s32.totalorder %s495, %s496
      %p507 = scmp.eq.s32.totalorder %s33, 0
      %p508 = por %p506, %p507
      %p509 = scmp.ne.s32.totalorder %s495, %s496
      %p510 = scmp.eq.s32.totalorder %s34, 3
      %p511 = por %p509, %p510
      %p513 = scmp.ne.s32.totalorder %s496, %s512
      %p514 = scmp.eq.s32.totalorder %s34, 0
      %p515 = por %p513, %p514
      %s516 = ssub.s32 %s36, %s43
      %p517 = scmp.eq.s32.totalorder %s516, 0
      %s519 = sadd.s32 %s518, 1
      %s520 = scalar_select %p517, %s518, %s519
      %p523 = pneg %p517
      %p524 = scmp.eq.s32.totalorder %s28, 3
      %p525 = por %p523, %p524
      %p526 = scmp.ne.s32.totalorder %s518, %s521
      %p527 = scmp.eq.s32.totalorder %s28, 0
      %p528 = por %p526, %p527
      %p529 = scmp.ne.s32.totalorder %s518, %s521
      %p530 = scmp.eq.s32.totalorder %s33, 3
      %p531 = por %p529, %p530
      %p532 = scmp.ne.s32.totalorder %s521, %s522
      %p533 = scmp.eq.s32.totalorder %s33, 0
      %p534 = por %p532, %p533
      %p535 = scmp.ne.s32.totalorder %s521, %s522
      %p536 = scmp.eq.s32.totalorder %s34, 3
      %p537 = por %p535, %p536
      %p539 = scmp.ne.s32.totalorder %s522, %s538
      %p540 = scmp.eq.s32.totalorder %s34, 0
      %p541 = por %p539, %p540
      %s542 = ssub.s32 %s35, %s47
      %p543 = scmp.eq.s32.totalorder %s542, 0
      %s545 = sadd.s32 %s544, 1
      %s546 = scalar_select %p543, %s544, %s545
      %p549 = pneg %p543
      %p550 = scmp.eq.s32.totalorder %s28, 3
      %p551 = por %p549, %p550
      %p552 = scmp.ne.s32.totalorder %s544, %s547
      %p553 = scmp.eq.s32.totalorder %s28, 0
      %p554 = por %p552, %p553
      %p555 = scmp.ne.s32.totalorder %s544, %s547
      %p556 = scmp.eq.s32.totalorder %s33, 3
      %p557 = por %p555, %p556
      %p558 = scmp.ne.s32.totalorder %s547, %s548
      %p559 = scmp.eq.s32.totalorder %s33, 0
      %p560 = por %p558, %p559
      %p561 = scmp.ne.s32.totalorder %s547, %s548
      %p562 = scmp.eq.s32.totalorder %s34, 3
      %p563 = por %p561, %p562
      %p565 = scmp.ne.s32.totalorder %s548, %s564
      %p566 = scmp.eq.s32.totalorder %s34, 0
      %p567 = por %p565, %p566
      %p568 = scmp.le.s32.totalorder 1, %s28
      %p569 = scmp.lt.s32.totalorder %s28, 5
      %p570 = pnand %p568, %p569
      %p571 = pneg %p570
      // Predicated region
      $region9: #{decoder_forward.1} parent=5 // pred_check
        _
      $region10: #{decoder_forward.1} parent=5 // pred_check_branch
        %573 = sbr.rel (%p570) target = $region12
      $region11: #{decoder_forward.1} parent=5 // pred_region
        %s574 = ssub.s32 %s28, 1
      $region12: #{decoder_forward.1} parent=5 // pred_fallthru
        _
      %p575 = scmp.lt.s32.totalorder %s28, 4
      // Predicated region
      $region13: #{decoder_forward.1} parent=5 // pred_check
        %p576 = pneg %p575
      $region14: #{decoder_forward.1} parent=5 // pred_check_branch
        %578 = sbr.rel (%p576) target = $region16
      $region15: #{decoder_forward.1} parent=5 // pred_region
        // Predicated region
        $region17: #{decoder_forward.1} parent=15 // pred_check
          %p579 = pneg %p60
        $region18: #{decoder_forward.1} parent=15 // pred_check_branch
          %581 = sbr.rel (%p579) target = $region20
        $region19: #{decoder_forward.1} parent=15 // pred_region
          %p582 = scmp.lt.s32.totalorder %s35, 1
          %s583 = scalar_select %p582, %s35, 1
          %s584 = smul.addr %s583, 8
          %s585 = scalar_lea.vmem %s0, %s584
        $region20: #{decoder_forward.1} parent=15 // pred_fallthru
          _
        // Predicated region
        $region21: #{decoder_forward.1} parent=15 // pred_check
          %p586 = pneg %p86
        $region22: #{decoder_forward.1} parent=15 // pred_check_branch
          %588 = sbr.rel (%p586) target = $region24
        $region23: #{decoder_forward.1} parent=15 // pred_region
          %p589 = scmp.lt.s32.totalorder %s35, 1
          %s590 = scalar_select %p589, %s35, 1
          %s591 = smul.addr %s590, 8
          %s592 = scalar_lea.vmem %s1, %s591
        $region24: #{decoder_forward.1} parent=15 // pred_fallthru
          _
        // Predicated region
        $region25: #{decoder_forward.1} parent=15 // pred_check
          %p593 = pneg %p112
        $region26: #{decoder_forward.1} parent=15 // pred_check_branch
          %595 = sbr.rel (%p593) target = $region28
        $region27: #{decoder_forward.1} parent=15 // pred_region
          %p596 = scmp.lt.s32.totalorder %s35, 1
          %s597 = scalar_select %p596, %s35, 1
          %s598 = smul.addr %s597, 8
          %s599 = scalar_lea.vmem %s2, %s598
        $region28: #{decoder_forward.1} parent=15 // pred_fallthru
          _
        // Predicated region
        $region29: #{decoder_forward.1} parent=15 // pred_check
          %p600 = pneg %p138
        $region30: #{decoder_forward.1} parent=15 // pred_check_branch
          %602 = sbr.rel (%p600) target = $region32
        $region31: #{decoder_forward.1} parent=15 // pred_region
          %p603 = scmp.lt.s32.totalorder %s35, 1
          %s604 = scalar_select %p603, %s35, 1
          %s605 = smul.addr %s604, 8
          %s606 = scalar_lea.vmem %s3, %s605
        $region32: #{decoder_forward.1} parent=15 // pred_fallthru
          _
        // Predicated region
        $region33: #{decoder_forward.1} parent=15 // pred_check
          %p607 = pneg %p164
        $region34: #{decoder_forward.1} parent=15 // pred_check_branch
          %609 = sbr.rel (%p607) target = $region36
        $region35: #{decoder_forward.1} parent=15 // pred_region
          %p610 = scmp.lt.s32.totalorder %s36, 1
          %s611 = scalar_select %p610, %s36, 1
          %s612 = smul.addr %s611, 4
          %s613 = smul.addr %s612, 4
          %s614 = scalar_lea.vmem %s4, %s613
        $region36: #{decoder_forward.1} parent=15 // pred_fallthru
          _
        // Predicated region
        $region37: #{decoder_forward.1} parent=15 // pred_check
          %p615 = pneg %p190
        $region38: #{decoder_forward.1} parent=15 // pred_check_branch
          %617 = sbr.rel (%p615) target = $region40
        $region39: #{decoder_forward.1} parent=15 // pred_region
          %p618 = scmp.lt.s32.totalorder %s36, 1
          %s619 = scalar_select %p618, %s36, 1
          %s620 = scalar_lea.vmem %s5, %s619
        $region40: #{decoder_forward.1} parent=15 // pred_fallthru
          _
        // Predicated region
        $region41: #{decoder_forward.1} parent=15 // pred_check
          %p621 = pneg %p216
        $region42: #{decoder_forward.1} parent=15 // pred_check_branch
          %623 = sbr.rel (%p621) target = $region44
        $region43: #{decoder_forward.1} parent=15 // pred_region
          %p624 = scmp.lt.s32.totalorder %s36, 1
          %s625 = scalar_select %p624, %s36, 1
          %s626 = smul.addr %s625, 4
          %s627 = smul.addr %s626, 4
          %s628 = scalar_lea.vmem %s6, %s627
        $region44: #{decoder_forward.1} parent=15 // pred_fallthru
          _
        // Predicated region
        $region45: #{decoder_forward.1} parent=15 // pred_check
          %p629 = pneg %p242
        $region46: #{decoder_forward.1} parent=15 // pred_check_branch
          %631 = sbr.rel (%p629) target = $region48
        $region47: #{decoder_forward.1} parent=15 // pred_region
          %p632 = scmp.lt.s32.totalorder %s36, 1
          %s633 = scalar_select %p632, %s36, 1
          %s634 = scalar_lea.vmem %s7, %s633
        $region48: #{decoder_forward.1} parent=15 // pred_fallthru
          _
        // Predicated region
        $region49: #{decoder_forward.1} parent=15 // pred_check
          %p635 = pneg %p268
        $region50: #{decoder_forward.1} parent=15 // pred_check_branch
          %637 = sbr.rel (%p635) target = $region52
        $region51: #{decoder_forward.1} parent=15 // pred_region
          %p638 = scmp.lt.s32.totalorder %s36, 1
          %s639 = scalar_select %p638, %s36, 1
          %s640 = smul.addr %s639, 4
          %s641 = smul.addr %s640, 4
          %s642 = scalar_lea.vmem %s8, %s641
        $region52: #{decoder_forward.1} parent=15 // pred_fallthru
          _
        // Predicated region
        $region53: #{decoder_forward.1} parent=15 // pred_check
          %p643 = pneg %p294
        $region54: #{decoder_forward.1} parent=15 // pred_check_branch
          %645 = sbr.rel (%p643) target = $region56
        $region55: #{decoder_forward.1} parent=15 // pred_region
          %p646 = scmp.lt.s32.totalorder %s36, 1
          %s647 = scalar_select %p646, %s36, 1
          %s648 = scalar_lea.vmem %s9, %s647
        $region56: #{decoder_forward.1} parent=15 // pred_fallthru
          _
        // Predicated region
        $region57: #{decoder_forward.1} parent=15 // pred_check
          %p649 = pneg %p320
        $region58: #{decoder_forward.1} parent=15 // pred_check_branch
          %651 = sbr.rel (%p649) target = $region60
        $region59: #{decoder_forward.1} parent=15 // pred_region
          %p652 = scmp.lt.s32.totalorder %s36, 1
          %s653 = scalar_select %p652, %s36, 1
          %s654 = smul.addr %s653, 4
          %s655 = smul.addr %s654, 4
          %s656 = scalar_lea.vmem %s10, %s655
        $region60: #{decoder_forward.1} parent=15 // pred_fallthru
          _
        // Predicated region
        $region61: #{decoder_forward.1} parent=15 // pred_check
          %p657 = pneg %p346
        $region62: #{decoder_forward.1} parent=15 // pred_check_branch
          %659 = sbr.rel (%p657) target = $region64
        $region63: #{decoder_forward.1} parent=15 // pred_region
          %p660 = scmp.lt.s32.totalorder %s36, 1
          %s661 = scalar_select %p660, %s36, 1
          %s662 = scalar_lea.vmem %s11, %s661
        $region64: #{decoder_forward.1} parent=15 // pred_fallthru
          _
        // Predicated region
        $region65: #{decoder_forward.1} parent=15 // pred_check
          %p663 = pneg %p372
        $region66: #{decoder_forward.1} parent=15 // pred_check_branch
          %665 = sbr.rel (%p663) target = $region68
        $region67: #{decoder_forward.1} parent=15 // pred_region
          %p666 = scmp.lt.s32.totalorder %s36, 1
          %s667 = scalar_select %p666, %s36, 1
          %s668 = smul.addr %s667, 4
          %s669 = smul.addr %s668, 4
          %s670 = scalar_lea.vmem %s12, %s669
        $region68: #{decoder_forward.1} parent=15 // pred_fallthru
          _
        // Predicated region
        $region69: #{decoder_forward.1} parent=15 // pred_check
          %p671 = pneg %p398
        $region70: #{decoder_forward.1} parent=15 // pred_check_branch
          %673 = sbr.rel (%p671) target = $region72
        $region71: #{decoder_forward.1} parent=15 // pred_region
          %p674 = scmp.lt.s32.totalorder %s36, 1
          %s675 = scalar_select %p674, %s36, 1
          %s676 = scalar_lea.vmem %s13, %s675
        $region72: #{decoder_forward.1} parent=15 // pred_fallthru
          _
        // Predicated region
        $region73: #{decoder_forward.1} parent=15 // pred_check
          %p677 = pneg %p424
        $region74: #{decoder_forward.1} parent=15 // pred_check_branch
          %679 = sbr.rel (%p677) target = $region76
        $region75: #{decoder_forward.1} parent=15 // pred_region
          %p680 = scmp.lt.s32.totalorder %s36, 1
          %s681 = scalar_select %p680, %s36, 1
          %s682 = smul.addr %s681, 4
          %s683 = smul.addr %s682, 4
          %s684 = scalar_lea.vmem %s14, %s683
        $region76: #{decoder_forward.1} parent=15 // pred_fallthru
          _
        // Predicated region
        $region77: #{decoder_forward.1} parent=15 // pred_check
          %p685 = pneg %p450
        $region78: #{decoder_forward.1} parent=15 // pred_check_branch
          %687 = sbr.rel (%p685) target = $region80
        $region79: #{decoder_forward.1} parent=15 // pred_region
          %p688 = scmp.lt.s32.totalorder %s36, 1
          %s689 = scalar_select %p688, %s36, 1
          %s690 = scalar_lea.vmem %s15, %s689
        $region80: #{decoder_forward.1} parent=15 // pred_fallthru
          _
        // Predicated region
        $region81: #{decoder_forward.1} parent=15 // pred_check
          %p691 = pneg %p476
        $region82: #{decoder_forward.1} parent=15 // pred_check_branch
          %693 = sbr.rel (%p691) target = $region84
        $region83: #{decoder_forward.1} parent=15 // pred_region
          %p694 = scmp.lt.s32.totalorder %s36, 1
          %s695 = scalar_select %p694, %s36, 1
          %s696 = smul.addr %s695, 8
          %s697 = smul.addr %s696, 4
          %s698 = scalar_lea.vmem %s16, %s697
        $region84: #{decoder_forward.1} parent=15 // pred_fallthru
          _
        // Predicated region
        $region85: #{decoder_forward.1} parent=15 // pred_check
          %p699 = pneg %p502
        $region86: #{decoder_forward.1} parent=15 // pred_check_branch
          %701 = sbr.rel (%p699) target = $region88
        $region87: #{decoder_forward.1} parent=15 // pred_region
          %p702 = scmp.lt.s32.totalorder %s36, 1
          %s703 = scalar_select %p702, %s36, 1
          %s704 = scalar_lea.vmem %s17, %s703
        $region88: #{decoder_forward.1} parent=15 // pred_fallthru
          _
        // Predicated region
        $region89: #{decoder_forward.1} parent=15 // pred_check
          %p705 = pneg %p528
        $region90: #{decoder_forward.1} parent=15 // pred_check_branch
          %707 = sbr.rel (%p705) target = $region92
        $region91: #{decoder_forward.1} parent=15 // pred_region
          %p708 = scmp.lt.s32.totalorder %s36, 1
          %s709 = scalar_select %p708, %s36, 1
          %s710 = smul.addr %s709, 8
          %s711 = scalar_lea.vmem %s18, %s710
        $region92: #{decoder_forward.1} parent=15 // pred_fallthru
          _
      $region16: #{decoder_forward.1} parent=5 // pred_fallthru
        _
      %p712 = scmp.le.s32.totalorder 1, %s28
      %p713 = scmp.lt.s32.totalorder %s28, 5
      %p714 = pnand %p712, %p713
      %p715 = pneg %p714
      // Predicated region
      $region93: #{decoder_forward.1} parent=5 // pred_check
        _
      $region94: #{decoder_forward.1} parent=5 // pred_check_branch
        %717 = sbr.rel (%p714) target = $region96
      $region95: #{decoder_forward.1} parent=5 // pred_region
        %s718 = ssub.s32 %s28, 1
        %p719 = scmp.lt.s32.totalorder %s37, 1
        %s720 = scalar_select %p719, %s37, 1
        %s721 = smul.addr %s720, 8
        %s722 = scalar_lea.vmem %s0, %s721
        %p723 = pneg %p66
        %p724 = pneg %p63
        %p725 = scmp.lt.s32.totalorder %s37, 1
        %s726 = scalar_select %p725, %s37, 1
        %s727 = smul.addr %s726, 8
        %s728 = scalar_lea.vmem %s1, %s727
        %p729 = pneg %p92
        %p730 = pneg %p89
        %p731 = scmp.lt.s32.totalorder %s37, 1
        %s732 = scalar_select %p731, %s37, 1
        %s733 = smul.addr %s732, 8
        %s734 = scalar_lea.vmem %s2, %s733
        %p735 = pneg %p118
        %p736 = pneg %p115
        %p737 = scmp.lt.s32.totalorder %s37, 1
        %s738 = scalar_select %p737, %s37, 1
        %s739 = smul.addr %s738, 8
        %s740 = scalar_lea.vmem %s3, %s739
        %p741 = pneg %p144
        %p742 = pneg %p141
        %p743 = scmp.lt.s32.totalorder %s38, 1
        %s744 = scalar_select %p743, %s38, 1
        %s745 = smul.addr %s744, 4
        %s746 = smul.addr %s745, 4
        %s747 = scalar_lea.vmem %s4, %s746
        %p748 = pneg %p170
        %p749 = pneg %p167
        %p750 = scmp.lt.s32.totalorder %s38, 1
        %s751 = scalar_select %p750, %s38, 1
        %s752 = scalar_lea.vmem %s5, %s751
        %p753 = pneg %p196
        %p754 = pneg %p193
        %p755 = scmp.lt.s32.totalorder %s38, 1
        %s756 = scalar_select %p755, %s38, 1
        %s757 = smul.addr %s756, 4
        %s758 = smul.addr %s757, 4
        %s759 = scalar_lea.vmem %s6, %s758
        %p760 = pneg %p222
        %p761 = pneg %p219
        %p762 = scmp.lt.s32.totalorder %s38, 1
        %s763 = scalar_select %p762, %s38, 1
        %s764 = scalar_lea.vmem %s7, %s763
        %p765 = pneg %p248
        %p766 = pneg %p245
        %p767 = scmp.lt.s32.totalorder %s38, 1
        %s768 = scalar_select %p767, %s38, 1
        %s769 = smul.addr %s768, 4
        %s770 = smul.addr %s769, 4
        %s771 = scalar_lea.vmem %s8, %s770
        %p772 = pneg %p274
        %p773 = pneg %p271
        %p774 = scmp.lt.s32.totalorder %s38, 1
        %s775 = scalar_select %p774, %s38, 1
        %s776 = scalar_lea.vmem %s9, %s775
        %p777 = pneg %p300
        %p778 = pneg %p297
        %p779 = scmp.lt.s32.totalorder %s38, 1
        %s780 = scalar_select %p779, %s38, 1
        %s781 = smul.addr %s780, 4
        %s782 = smul.addr %s781, 4
        %s783 = scalar_lea.vmem %s10, %s782
        %p784 = pneg %p326
        %p785 = pneg %p323
        %p786 = scmp.lt.s32.totalorder %s38, 1
        %s787 = scalar_select %p786, %s38, 1
        %s788 = scalar_lea.vmem %s11, %s787
        %p789 = pneg %p352
        %p790 = pneg %p349
        %p791 = scmp.lt.s32.totalorder %s38, 1
        %s792 = scalar_select %p791, %s38, 1
        %s793 = smul.addr %s792, 4
        %s794 = smul.addr %s793, 4
        %s795 = scalar_lea.vmem %s12, %s794
        %p796 = pneg %p378
        %p797 = pneg %p375
        %p798 = scmp.lt.s32.totalorder %s38, 1
        %s799 = scalar_select %p798, %s38, 1
        %s800 = scalar_lea.vmem %s13, %s799
        %p801 = pneg %p404
        %p802 = pneg %p401
        %p803 = scmp.lt.s32.totalorder %s38, 1
        %s804 = scalar_select %p803, %s38, 1
        %s805 = smul.addr %s804, 4
        %s806 = smul.addr %s805, 4
        %s807 = scalar_lea.vmem %s14, %s806
        %p808 = pneg %p430
        %p809 = pneg %p427
        %p810 = scmp.lt.s32.totalorder %s38, 1
        %s811 = scalar_select %p810, %s38, 1
        %s812 = scalar_lea.vmem %s15, %s811
        %p813 = pneg %p456
        %p814 = pneg %p453
        %p815 = scmp.lt.s32.totalorder %s38, 1
        %s816 = scalar_select %p815, %s38, 1
        %s817 = smul.addr %s816, 8
        %s818 = smul.addr %s817, 4
        %s819 = scalar_lea.vmem %s16, %s818
        %p820 = pneg %p482
        %p821 = pneg %p479
        %p822 = scmp.lt.s32.totalorder %s38, 1
        %s823 = scalar_select %p822, %s38, 1
        %s824 = scalar_lea.vmem %s17, %s823
        %p825 = pneg %p508
        %p826 = pneg %p505
        %p827 = scmp.lt.s32.totalorder %s38, 1
        %s828 = scalar_select %p827, %s38, 1
        %s829 = smul.addr %s828, 8
        %s830 = scalar_lea.vmem %s18, %s829
        %p831 = pneg %p534
        %p832 = pneg %p531
        %p833 = pneg %p560
        %p834 = pneg %p557
        %s835 = sand.u32 %s547, 1
        %s836 = scalar_lea.sflag [#allocation3], %s835
        %s837 = sand.u32 %s547, 1
        %s838 = smul.addr %s837, 8
        %s839 = scalar_lea.vmem [#allocation2], %s838
        %p840 = scmp.lt.s32.totalorder %s37, 1
        %s841 = scalar_select %p840, %s37, 1
        %s842 = smul.addr %s841, 8
        %s843 = scalar_lea.vmem %s0, %s842
        %p844 = scmp.lt.s32.totalorder %s37, 1
        %s845 = scalar_select %p844, %s37, 1
        %s846 = smul.addr %s845, 8
        %s847 = scalar_lea.vmem %s1, %s846
        %p848 = scmp.lt.s32.totalorder %s37, 1
        %s849 = scalar_select %p848, %s37, 1
        %s850 = smul.addr %s849, 8
        %s851 = scalar_lea.vmem %s2, %s850
        %p852 = scmp.lt.s32.totalorder %s37, 1
        %s853 = scalar_select %p852, %s37, 1
        %s854 = smul.addr %s853, 8
        %s855 = scalar_lea.vmem %s3, %s854
        %p856 = scmp.lt.s32.totalorder %s38, 1
        %s857 = scalar_select %p856, %s38, 1
        %s858 = smul.addr %s857, 4
        %s859 = smul.addr %s858, 4
        %s860 = scalar_lea.vmem %s4, %s859
        %p861 = scmp.lt.s32.totalorder %s38, 1
        %s862 = scalar_select %p861, %s38, 1
        %s863 = scalar_lea.vmem %s5, %s862
        %p864 = scmp.lt.s32.totalorder %s38, 1
        %s865 = scalar_select %p864, %s38, 1
        %s866 = smul.addr %s865, 4
        %s867 = smul.addr %s866, 4
        %s868 = scalar_lea.vmem %s6, %s867
        %p869 = scmp.lt.s32.totalorder %s38, 1
        %s870 = scalar_select %p869, %s38, 1
        %s871 = scalar_lea.vmem %s7, %s870
        %p872 = scmp.lt.s32.totalorder %s38, 1
        %s873 = scalar_select %p872, %s38, 1
        %s874 = smul.addr %s873, 4
        %s875 = smul.addr %s874, 4
        %s876 = scalar_lea.vmem %s8, %s875
        %p877 = scmp.lt.s32.totalorder %s38, 1
        %s878 = scalar_select %p877, %s38, 1
        %s879 = scalar_lea.vmem %s9, %s878
        %p880 = scmp.lt.s32.totalorder %s38, 1
        %s881 = scalar_select %p880, %s38, 1
        %s882 = smul.addr %s881, 4
        %s883 = smul.addr %s882, 4
        %s884 = scalar_lea.vmem %s10, %s883
        %p885 = scmp.lt.s32.totalorder %s38, 1
        %s886 = scalar_select %p885, %s38, 1
        %s887 = scalar_lea.vmem %s11, %s886
        %p888 = scmp.lt.s32.totalorder %s38, 1
        %s889 = scalar_select %p888, %s38, 1
        %s890 = smul.addr %s889, 4
        %s891 = smul.addr %s890, 4
        %s892 = scalar_lea.vmem %s12, %s891
        %p893 = scmp.lt.s32.totalorder %s38, 1
        %s894 = scalar_select %p893, %s38, 1
        %s895 = scalar_lea.vmem %s13, %s894
        %p896 = scmp.lt.s32.totalorder %s38, 1
        %s897 = scalar_select %p896, %s38, 1
        %s898 = smul.addr %s897, 4
        %s899 = smul.addr %s898, 4
        %s900 = scalar_lea.vmem %s14, %s899
        %p901 = scmp.lt.s32.totalorder %s38, 1
        %s902 = scalar_select %p901, %s38, 1
        %s903 = scalar_lea.vmem %s15, %s902
        %p904 = scmp.lt.s32.totalorder %s38, 1
        %s905 = scalar_select %p904, %s38, 1
        %s906 = smul.addr %s905, 8
        %s907 = smul.addr %s906, 4
        %s908 = scalar_lea.vmem %s16, %s907
        %p909 = scmp.lt.s32.totalorder %s38, 1
        %s910 = scalar_select %p909, %s38, 1
        %s911 = scalar_lea.vmem %s17, %s910
        %p912 = scmp.lt.s32.totalorder %s38, 1
        %s913 = scalar_select %p912, %s38, 1
        %s914 = smul.addr %s913, 8
        %s915 = scalar_lea.vmem %s18, %s914
        %p917 = scmp.eq.s32.totalorder %s38, 0
        // Predicated region
        $region97: #{decoder_forward.1} parent=95 // pred_check
          %p918 = pneg %p917
        $region98: #{decoder_forward.1} parent=95 // pred_check_branch
          %920 = sbr.rel (%p918) target = $region100
        $region99: #{decoder_forward.1} parent=95 // pred_region
          %v921 = vld [vmem:[%s843] sm:$0xff]
          %vm922 = vcmask 261120
          %923 = vst.msk [vmem:[%s839] sm:$0xff] %vm922, %v921
        $region100: #{decoder_forward.1} parent=95 // pred_fallthru
          _
        %v924 = vld [vmem:[%s839] sm:$0xff]
        %v925 = vld [vmem:[%s847] sm:$0xff]
        %v926 = vld [vmem:[%s851] sm:$0xff]
        %v927 = vld [vmem:[%s855] sm:$0xff]
        %v928 = vld [vmem:[%s915] sm:$0x3f]
        %v929 = vpack.c.bf16 %v924, %v924
        %v930 = vld [vmem:[%s860] sm:$0xf]
        %v931 = vld [vmem:[%s860 + $0x4] sm:$0xf]
        %v932 = vld [vmem:[%s860 + $0x8] sm:$0xf]
        %v933 = vld [vmem:[%s860 + $0xc] sm:$0xf]
        %v934 = vld [vmem:[%s863] sm:$0x1]
        %v936 = vlaneseq
        %v937 = vshrl.u32 %v936, 7
        %v938 = vsub.s32 0, %v937
        %v939 = vrot.slane %v934, %v938
        %v945 = vunpack.c.l.b16 %v930
        %v946 = vunpack.c.l.b16 %v931
        %v947 = vunpack.c.l.b16 %v932
        %v948 = vunpack.c.l.b16 %v933
        %v949 = vpack.c.b16 %v946, %v945
        %v950 = vpack.c.b16 %v948, %v947
        %vm953 = vcmask 261120
        %v955 = vsel %vm953, %v929, 0
        %957 = vmatprep.subr.bf16.mxu0 0
        %958 = vmatpush1.bf16.msra.mxu0 0
        %959 = vmatprep.subr.bf16.mxu0 0
        %960 = vmatpush1.bf16.msra.mxu0 0
        %961 = vmatprep.subr.bf16.mxu0 0
        %962 = vmatpush1.bf16.msra.mxu0 0
        %963 = vmatprep.subr.bf16.mxu0 0
        %964 = vmatpush1.bf16.msra.mxu0 0
        %965 = vmatprep.subr.bf16.mxu0 0
        %966 = vmatpush1.bf16.msra.mxu0 0
        %967 = vmatprep.subr.bf16.mxu0 0
        %968 = vmatpush1.bf16.msra.mxu0 0
        %969 = vmatprep.subr.bf16.mxu0 0
        %970 = vmatpush1.bf16.msra.mxu0 %v950
        %971 = vmatprep.subr.bf16.mxu0 0
        %972 = vmatpush1.bf16.msra.mxu0 %v949
        %973 = vmatprep.subr.bf16.mxu0 0
        %974 = vmatpush2.bf16.msra.mxu0 0
        %975 = vmatprep.subr.bf16.mxu0 0
        %976 = vmatpush2.bf16.msra.mxu0 0
        %977 = vmatprep.subr.bf16.mxu0 0
        %978 = vmatpush2.bf16.msra.mxu0 0
        %979 = vmatprep.subr.bf16.mxu0 0
        %980 = vmatpush2.bf16.msra.mxu0 0
        %981 = vmatprep.subr.bf16.mxu0 0
        %982 = vmatpush2.bf16.msra.mxu0 0
        %983 = vmatprep.subr.bf16.mxu0 0
        %984 = vmatpush2.bf16.msra.mxu0 0
        %985 = vmatprep.subr.bf16.mxu0 0
        %986 = vmatpush2.bf16.msra.mxu0 0
        %987 = vmatprep.subr.bf16.mxu0 0
        %988 = vmatpush2.bf16.msra.mxu0 0
        %989 = vmatprep.mubr.bf16.mxu0 0
        %990 = vmatmul.mubr.bf16.gmra.mxu0 %v955
        %v991 = vpop.f32.mrf.mxu0
        %v992 = vadd.f32 %v939, %v991
        %v993 = vpop.f32.mrf.mxu0
        %v994 = vpop.f32.mrf.mxu0
        %v995 = vpop.f32.mrf.mxu0
        %996 = vdwg.mxu0
        %998 = vrot.lane.b32.xlu0 %v992, 96
        %v999 = vpop.permute.xlu0 %998
        %vm1000 = vcmask 64512
        %v1001 = vsel %vm1000, %v992, 0
        %v1003 = vsel %vm1000, %v999, 0
        %1005 = vmatprep.subr.mxu0 0.0
        %1006 = vmatpush1.xpose.msra.mxu0 0.0
        %1007 = vmatprep.subr.mxu0 0.0
        %1008 = vmatpush1.xpose.msra.mxu0 0.0
        %1009 = vmatprep.subr.mxu0 0.0
        %1010 = vmatpush1.xpose.msra.mxu0 0.0
        %1011 = vmatprep.subr.mxu0 0.0
        %1012 = vmatpush1.xpose.msra.mxu0 0.0
        %1013 = vmatprep.subr.mxu0 0.0
        %1014 = vmatpush1.xpose.msra.mxu0 0.0
        %1015 = vmatprep.subr.mxu0 0.0
        %1016 = vmatpush1.xpose.msra.mxu0 0.0
        %1017 = vmatprep.subr.mxu0 0.0
        %1018 = vmatpush1.xpose.msra.mxu0 0.0
        %1019 = vmatprep.subr.mxu0 0.0
        %1020 = vmatpush1.xpose.msra.mxu0 0.0
        %1021 = vmatprep.subr.mxu0 0.0
        %1022 = vmatpush1.xpose.msra.mxu0 0.0
        %1023 = vmatprep.subr.mxu0 0.0
        %1024 = vmatpush1.xpose.msra.mxu0 0.0
        %1025 = vmatprep.subr.mxu0 0.0
        %1026 = vmatpush1.xpose.msra.mxu0 0.0
        %1027 = vmatprep.subr.mxu0 0.0
        %1028 = vmatpush1.xpose.msra.mxu0 0.0
        %1029 = vmatprep.subr.mxu0 0.0
        %1030 = vmatpush1.xpose.msra.mxu0 0.0
        %1031 = vmatprep.subr.mxu0 0.0
        %1032 = vmatpush1.xpose.msra.mxu0 0.0
        %1033 = vmatprep.subr.mxu0 0.0
        %1034 = vmatpush1.xpose.msra.mxu0 0.0
        %1035 = vmatprep.subr.mxu0 0.0
        %1036 = vmatpush1.xpose.msra.mxu0 %v1003
        %1037 = vmatprep.subr.mxu0 0.0
        %1038 = vmatpush2.xpose.msra.mxu0 0.0
        %1039 = vmatprep.subr.mxu0 0.0
        %1040 = vmatpush2.xpose.msra.mxu0 0.0
        %1041 = vmatprep.subr.mxu0 0.0
        %1042 = vmatpush2.xpose.msra.mxu0 0.0
        %1043 = vmatprep.subr.mxu0 0.0
        %1044 = vmatpush2.xpose.msra.mxu0 0.0
        %1045 = vmatprep.subr.mxu0 0.0
        %1046 = vmatpush2.xpose.msra.mxu0 0.0
        %1047 = vmatprep.subr.mxu0 0.0
        %1048 = vmatpush2.xpose.msra.mxu0 0.0
        %1049 = vmatprep.subr.mxu0 0.0
        %1050 = vmatpush2.xpose.msra.mxu0 0.0
        %1051 = vmatprep.subr.mxu0 0.0
        %1052 = vmatpush2.xpose.msra.mxu0 0.0
        %1053 = vmatprep.subr.mxu0 0.0
        %1054 = vmatpush2.xpose.msra.mxu0 0.0
        %1055 = vmatprep.subr.mxu0 0.0
        %1056 = vmatpush2.xpose.msra.mxu0 0.0
        %1057 = vmatprep.subr.mxu0 0.0
        %1058 = vmatpush2.xpose.msra.mxu0 0.0
        %1059 = vmatprep.subr.mxu0 0.0
        %1060 = vmatpush2.xpose.msra.mxu0 0.0
        %1061 = vmatprep.subr.mxu0 0.0
        %1062 = vmatpush2.xpose.msra.mxu0 0.0
        %1063 = vmatprep.subr.mxu0 0.0
        %1064 = vmatpush2.xpose.msra.mxu0 0.0
        %1065 = vmatprep.subr.mxu0 0.0
        %1066 = vmatpush2.xpose.msra.mxu0 0.0
        %1067 = vmatprep.subr.mxu0 0.0
        %1068 = vmatpush2.xpose.msra.mxu0 0.0
        %1069 = vmatprep.mubr.f32.mxu0 0.0
        %1070 = vmatmul.mubr.f32.gmra.mxu0 %v1001
        %v1071 = vpop.f32.mrf.mxu0
        %v1072 = vadd.f32 0.0, %v1071
        %v1073 = vpop.f32.mrf.mxu0
        %1074 = vdwg.mxu0
        %v1075 = vmul.f32 %v1072, 0.35355338
        %vm1076 = vcmp.gt.f32.partialorder %v926, 0.5
        %v1077 = vsel %vm1076, -10000.0, %v1075
        %v1078 = vsel %vm1000, %v1077, -inf
        %1079 = vmax.xlane.f32.xlu0 %v1078
        %v1080 = vpop.xlane.xlu0 %1079
        %v1081 = vsub.f32 %v1077, %v1080
        %v1082 = vmul.f32 %v1081, 1.442695
        %v1083 = vpow.pop %v1082
        %v1084 = vsel %vm1000, %v1083, 0.0
        %1085 = vadd.xlane.f32.xlu0 %v1084
        %v1086 = vpop.xlane.xlu0 %1085
        %v1087 = vrcp.pop %v1086
        %v1088 = vmul.f32 %v1083, %v1087
        %1089 = vrot.lane.b32.xlu0 %v992, 64
        %v1090 = vpop.permute.xlu0 %1089
        %v1093 = vsel %vm1000, %v1088, 0
        %1095 = vmatprep.subr.mxu0 0.0
        %1096 = vmatpush1.msra.mxu0 0.0
        %1097 = vmatprep.subr.mxu0 0.0
        %1098 = vmatpush1.msra.mxu0 0.0
        %1099 = vmatprep.subr.mxu0 0.0
        %1100 = vmatpush1.msra.mxu0 0.0
        %1101 = vmatprep.subr.mxu0 0.0
        %1102 = vmatpush1.msra.mxu0 0.0
        %1103 = vmatprep.subr.mxu0 0.0
        %1104 = vmatpush1.msra.mxu0 0.0
        %1105 = vmatprep.subr.mxu0 0.0
        %1106 = vmatpush1.msra.mxu0 0.0
        %1107 = vmatprep.subr.mxu0 0.0
        %1108 = vmatpush1.msra.mxu0 0.0
        %1109 = vmatprep.subr.mxu0 0.0
        %1110 = vmatpush1.msra.mxu0 0.0
        %1111 = vmatprep.subr.mxu0 0.0
        %1112 = vmatpush1.msra.mxu0 0.0
        %1113 = vmatprep.subr.mxu0 0.0
        %1114 = vmatpush1.msra.mxu0 0.0
        %1115 = vmatprep.subr.mxu0 0.0
        %1116 = vmatpush1.msra.mxu0 0.0
        %1117 = vmatprep.subr.mxu0 0.0
        %1118 = vmatpush1.msra.mxu0 0.0
        %1119 = vmatprep.subr.mxu0 0.0
        %1120 = vmatpush1.msra.mxu0 0.0
        %1121 = vmatprep.subr.mxu0 0.0
        %1122 = vmatpush1.msra.mxu0 0.0
        %1123 = vmatprep.subr.mxu0 0.0
        %1124 = vmatpush1.msra.mxu0 0.0
        %1125 = vmatprep.subr.mxu0 0.0
        %1126 = vmatpush1.msra.mxu0 %v1090
        %1127 = vmatprep.subr.mxu0 0.0
        %1128 = vmatpush2.msra.mxu0 0.0
        %1129 = vmatprep.subr.mxu0 0.0
        %1130 = vmatpush2.msra.mxu0 0.0
        %1131 = vmatprep.subr.mxu0 0.0
        %1132 = vmatpush2.msra.mxu0 0.0
        %1133 = vmatprep.subr.mxu0 0.0
        %1134 = vmatpush2.msra.mxu0 0.0
        %1135 = vmatprep.subr.mxu0 0.0
        %1136 = vmatpush2.msra.mxu0 0.0
        %1137 = vmatprep.subr.mxu0 0.0
        %1138 = vmatpush2.msra.mxu0 0.0
        %1139 = vmatprep.subr.mxu0 0.0
        %1140 = vmatpush2.msra.mxu0 0.0
        %1141 = vmatprep.subr.mxu0 0.0
        %1142 = vmatpush2.msra.mxu0 0.0
        %1143 = vmatprep.subr.mxu0 0.0
        %1144 = vmatpush2.msra.mxu0 0.0
        %1145 = vmatprep.subr.mxu0 0.0
        %1146 = vmatpush2.msra.mxu0 0.0
        %1147 = vmatprep.subr.mxu0 0.0
        %1148 = vmatpush2.msra.mxu0 0.0
        %1149 = vmatprep.subr.mxu0 0.0
        %1150 = vmatpush2.msra.mxu0 0.0
        %1151 = vmatprep.subr.mxu0 0.0
        %1152 = vmatpush2.msra.mxu0 0.0
        %1153 = vmatprep.subr.mxu0 0.0
        %1154 = vmatpush2.msra.mxu0 0.0
        %1155 = vmatprep.subr.mxu0 0.0
        %1156 = vmatpush2.msra.mxu0 0.0
        %1157 = vmatprep.subr.mxu0 0.0
        %1158 = vmatpush2.msra.mxu0 0.0
        %1159 = vmatprep.mubr.f32.mxu0 0.0
        %1160 = vmatmul.mubr.f32.gmra.mxu0 %v1093
        %v1161 = vpop.f32.mrf.mxu0
        %v1162 = vadd.f32 0.0, %v1161
        %v1163 = vpop.f32.mrf.mxu0
        %1164 = vdwg.mxu0
        %1165 = vrot.lane.b32.xlu0 %v992, 120
        %v1166 = vpop.permute.xlu0 %1165
        %1167 = vrot.lane.b32.xlu0 %v992, 88
        %v1168 = vpop.permute.xlu0 %1167
        %v1169 = vsel %vm1000, %v1166, 0
        %v1171 = vsel %vm1000, %v1168, 0
        %1173 = vmatprep.subr.mxu0 0.0
        %1174 = vmatpush1.xpose.msra.mxu0 0.0
        %1175 = vmatprep.subr.mxu0 0.0
        %1176 = vmatpush1.xpose.msra.mxu0 0.0
        %1177 = vmatprep.subr.mxu0 0.0
        %1178 = vmatpush1.xpose.msra.mxu0 0.0
        %1179 = vmatprep.subr.mxu0 0.0
        %1180 = vmatpush1.xpose.msra.mxu0 0.0
        %1181 = vmatprep.subr.mxu0 0.0
        %1182 = vmatpush1.xpose.msra.mxu0 0.0
        %1183 = vmatprep.subr.mxu0 0.0
        %1184 = vmatpush1.xpose.msra.mxu0 0.0
        %1185 = vmatprep.subr.mxu0 0.0
        %1186 = vmatpush1.xpose.msra.mxu0 0.0
        %1187 = vmatprep.subr.mxu0 0.0
        %1188 = vmatpush1.xpose.msra.mxu0 0.0
        %1189 = vmatprep.subr.mxu0 0.0
        %1190 = vmatpush1.xpose.msra.mxu0 0.0
        %1191 = vmatprep.subr.mxu0 0.0
        %1192 = vmatpush1.xpose.msra.mxu0 0.0
        %1193 = vmatprep.subr.mxu0 0.0
        %1194 = vmatpush1.xpose.msra.mxu0 0.0
        %1195 = vmatprep.subr.mxu0 0.0
        %1196 = vmatpush1.xpose.msra.mxu0 0.0
        %1197 = vmatprep.subr.mxu0 0.0
        %1198 = vmatpush1.xpose.msra.mxu0 0.0
        %1199 = vmatprep.subr.mxu0 0.0
        %1200 = vmatpush1.xpose.msra.mxu0 0.0
        %1201 = vmatprep.subr.mxu0 0.0
        %1202 = vmatpush1.xpose.msra.mxu0 0.0
        %1203 = vmatprep.subr.mxu0 0.0
        %1204 = vmatpush1.xpose.msra.mxu0 %v1171
        %1205 = vmatprep.subr.mxu0 0.0
        %1206 = vmatpush2.xpose.msra.mxu0 0.0
        %1207 = vmatprep.subr.mxu0 0.0
        %1208 = vmatpush2.xpose.msra.mxu0 0.0
        %1209 = vmatprep.subr.mxu0 0.0
        %1210 = vmatpush2.xpose.msra.mxu0 0.0
        %1211 = vmatprep.subr.mxu0 0.0
        %1212 = vmatpush2.xpose.msra.mxu0 0.0
        %1213 = vmatprep.subr.mxu0 0.0
        %1214 = vmatpush2.xpose.msra.mxu0 0.0
        %1215 = vmatprep.subr.mxu0 0.0
        %1216 = vmatpush2.xpose.msra.mxu0 0.0
        %1217 = vmatprep.subr.mxu0 0.0
        %1218 = vmatpush2.xpose.msra.mxu0 0.0
        %1219 = vmatprep.subr.mxu0 0.0
        %1220 = vmatpush2.xpose.msra.mxu0 0.0
        %1221 = vmatprep.subr.mxu0 0.0
        %1222 = vmatpush2.xpose.msra.mxu0 0.0
        %1223 = vmatprep.subr.mxu0 0.0
        %1224 = vmatpush2.xpose.msra.mxu0 0.0
        %1225 = vmatprep.subr.mxu0 0.0
        %1226 = vmatpush2.xpose.msra.mxu0 0.0
        %1227 = vmatprep.subr.mxu0 0.0
        %1228 = vmatpush2.xpose.msra.mxu0 0.0
        %1229 = vmatprep.subr.mxu0 0.0
        %1230 = vmatpush2.xpose.msra.mxu0 0.0
        %1231 = vmatprep.subr.mxu0 0.0
        %1232 = vmatpush2.xpose.msra.mxu0 0.0
        %1233 = vmatprep.subr.mxu0 0.0
        %1234 = vmatpush2.xpose.msra.mxu0 0.0
        %1235 = vmatprep.subr.mxu0 0.0
        %1236 = vmatpush2.xpose.msra.mxu0 0.0
        %1237 = vmatprep.mubr.f32.mxu0 0.0
        %1238 = vmatmul.mubr.f32.gmra.mxu0 %v1169
        %v1239 = vpop.f32.mrf.mxu0
        %v1240 = vadd.f32 0.0, %v1239
        %v1241 = vpop.f32.mrf.mxu0
        %1242 = vdwg.mxu0
        %v1243 = vmul.f32 %v1240, 0.35355338
        %v1244 = vsel %vm1076, -10000.0, %v1243
        %v1245 = vsel %vm1000, %v1244, -inf
        %1246 = vmax.xlane.f32.xlu0 %v1245
        %v1247 = vpop.xlane.xlu0 %1246
        %v1248 = vsub.f32 %v1244, %v1247
        %v1249 = vmul.f32 %v1248, 1.442695
        %v1250 = vpow.pop %v1249
        %v1251 = vsel %vm1000, %v1250, 0.0
        %1252 = vadd.xlane.f32.xlu0 %v1251
        %v1253 = vpop.xlane.xlu0 %1252
        %v1254 = vrcp.pop %v1253
        %v1255 = vmul.f32 %v1250, %v1254
        %1256 = vrot.lane.b32.xlu0 %v992, 56
        %v1257 = vpop.permute.xlu0 %1256
        %v1260 = vsel %vm1000, %v1255, 0
        %1262 = vmatprep.subr.mxu0 0.0
        %1263 = vmatpush1.msra.mxu0 0.0
        %1264 = vmatprep.subr.mxu0 0.0
        %1265 = vmatpush1.msra.mxu0 0.0
        %1266 = vmatprep.subr.mxu0 0.0
        %1267 = vmatpush1.msra.mxu0 0.0
        %1268 = vmatprep.subr.mxu0 0.0
        %1269 = vmatpush1.msra.mxu0 0.0
        %1270 = vmatprep.subr.mxu0 0.0
        %1271 = vmatpush1.msra.mxu0 0.0
        %1272 = vmatprep.subr.mxu0 0.0
        %1273 = vmatpush1.msra.mxu0 0.0
        %1274 = vmatprep.subr.mxu0 0.0
        %1275 = vmatpush1.msra.mxu0 0.0
        %1276 = vmatprep.subr.mxu0 0.0
        %1277 = vmatpush1.msra.mxu0 0.0
        %1278 = vmatprep.subr.mxu0 0.0
        %1279 = vmatpush1.msra.mxu0 0.0
        %1280 = vmatprep.subr.mxu0 0.0
        %1281 = vmatpush1.msra.mxu0 0.0
        %1282 = vmatprep.subr.mxu0 0.0
        %1283 = vmatpush1.msra.mxu0 0.0
        %1284 = vmatprep.subr.mxu0 0.0
        %1285 = vmatpush1.msra.mxu0 0.0
        %1286 = vmatprep.subr.mxu0 0.0
        %1287 = vmatpush1.msra.mxu0 0.0
        %1288 = vmatprep.subr.mxu0 0.0
        %1289 = vmatpush1.msra.mxu0 0.0
        %1290 = vmatprep.subr.mxu0 0.0
        %1291 = vmatpush1.msra.mxu0 0.0
        %1292 = vmatprep.subr.mxu0 0.0
        %1293 = vmatpush1.msra.mxu0 %v1257
        %1294 = vmatprep.subr.mxu0 0.0
        %1295 = vmatpush2.msra.mxu0 0.0
        %1296 = vmatprep.subr.mxu0 0.0
        %1297 = vmatpush2.msra.mxu0 0.0
        %1298 = vmatprep.subr.mxu0 0.0
        %1299 = vmatpush2.msra.mxu0 0.0
        %1300 = vmatprep.subr.mxu0 0.0
        %1301 = vmatpush2.msra.mxu0 0.0
        %1302 = vmatprep.subr.mxu0 0.0
        %1303 = vmatpush2.msra.mxu0 0.0
        %1304 = vmatprep.subr.mxu0 0.0
        %1305 = vmatpush2.msra.mxu0 0.0
        %1306 = vmatprep.subr.mxu0 0.0
        %1307 = vmatpush2.msra.mxu0 0.0
        %1308 = vmatprep.subr.mxu0 0.0
        %1309 = vmatpush2.msra.mxu0 0.0
        %1310 = vmatprep.subr.mxu0 0.0
        %1311 = vmatpush2.msra.mxu0 0.0
        %1312 = vmatprep.subr.mxu0 0.0
        %1313 = vmatpush2.msra.mxu0 0.0
        %1314 = vmatprep.subr.mxu0 0.0
        %1315 = vmatpush2.msra.mxu0 0.0
        %1316 = vmatprep.subr.mxu0 0.0
        %1317 = vmatpush2.msra.mxu0 0.0
        %1318 = vmatprep.subr.mxu0 0.0
        %1319 = vmatpush2.msra.mxu0 0.0
        %1320 = vmatprep.subr.mxu0 0.0
        %1321 = vmatpush2.msra.mxu0 0.0
        %1322 = vmatprep.subr.mxu0 0.0
        %1323 = vmatpush2.msra.mxu0 0.0
        %1324 = vmatprep.subr.mxu0 0.0
        %1325 = vmatpush2.msra.mxu0 0.0
        %1326 = vmatprep.mubr.f32.mxu0 0.0
        %1327 = vmatmul.mubr.f32.gmra.mxu0 %v1260
        %v1328 = vpop.f32.mrf.mxu0
        %v1329 = vadd.f32 0.0, %v1328
        %v1330 = vpop.f32.mrf.mxu0
        %1331 = vdwg.mxu0
        %1332 = vrot.lane.b32.xlu0 %v992, 112
        %v1333 = vpop.permute.xlu0 %1332
        %1334 = vrot.lane.b32.xlu0 %v992, 80
        %v1335 = vpop.permute.xlu0 %1334
        %v1336 = vsel %vm1000, %v1333, 0
        %v1338 = vsel %vm1000, %v1335, 0
        %1340 = vmatprep.subr.mxu0 0.0
        %1341 = vmatpush1.xpose.msra.mxu0 0.0
        %1342 = vmatprep.subr.mxu0 0.0
        %1343 = vmatpush1.xpose.msra.mxu0 0.0
        %1344 = vmatprep.subr.mxu0 0.0
        %1345 = vmatpush1.xpose.msra.mxu0 0.0
        %1346 = vmatprep.subr.mxu0 0.0
        %1347 = vmatpush1.xpose.msra.mxu0 0.0
        %1348 = vmatprep.subr.mxu0 0.0
        %1349 = vmatpush1.xpose.msra.mxu0 0.0
        %1350 = vmatprep.subr.mxu0 0.0
        %1351 = vmatpush1.xpose.msra.mxu0 0.0
        %1352 = vmatprep.subr.mxu0 0.0
        %1353 = vmatpush1.xpose.msra.mxu0 0.0
        %1354 = vmatprep.subr.mxu0 0.0
        %1355 = vmatpush1.xpose.msra.mxu0 0.0
        %1356 = vmatprep.subr.mxu0 0.0
        %1357 = vmatpush1.xpose.msra.mxu0 0.0
        %1358 = vmatprep.subr.mxu0 0.0
        %1359 = vmatpush1.xpose.msra.mxu0 0.0
        %1360 = vmatprep.subr.mxu0 0.0
        %1361 = vmatpush1.xpose.msra.mxu0 0.0
        %1362 = vmatprep.subr.mxu0 0.0
        %1363 = vmatpush1.xpose.msra.mxu0 0.0
        %1364 = vmatprep.subr.mxu0 0.0
        %1365 = vmatpush1.xpose.msra.mxu0 0.0
        %1366 = vmatprep.subr.mxu0 0.0
        %1367 = vmatpush1.xpose.msra.mxu0 0.0
        %1368 = vmatprep.subr.mxu0 0.0
        %1369 = vmatpush1.xpose.msra.mxu0 0.0
        %1370 = vmatprep.subr.mxu0 0.0
        %1371 = vmatpush1.xpose.msra.mxu0 %v1338
        %1372 = vmatprep.subr.mxu0 0.0
        %1373 = vmatpush2.xpose.msra.mxu0 0.0
        %1374 = vmatprep.subr.mxu0 0.0
        %1375 = vmatpush2.xpose.msra.mxu0 0.0
        %1376 = vmatprep.subr.mxu0 0.0
        %1377 = vmatpush2.xpose.msra.mxu0 0.0
        %1378 = vmatprep.subr.mxu0 0.0
        %1379 = vmatpush2.xpose.msra.mxu0 0.0
        %1380 = vmatprep.subr.mxu0 0.0
        %1381 = vmatpush2.xpose.msra.mxu0 0.0
        %1382 = vmatprep.subr.mxu0 0.0
        %1383 = vmatpush2.xpose.msra.mxu0 0.0
        %1384 = vmatprep.subr.mxu0 0.0
        %1385 = vmatpush2.xpose.msra.mxu0 0.0
        %1386 = vmatprep.subr.mxu0 0.0
        %1387 = vmatpush2.xpose.msra.mxu0 0.0
        %1388 = vmatprep.subr.mxu0 0.0
        %1389 = vmatpush2.xpose.msra.mxu0 0.0
        %1390 = vmatprep.subr.mxu0 0.0
        %1391 = vmatpush2.xpose.msra.mxu0 0.0
        %1392 = vmatprep.subr.mxu0 0.0
        %1393 = vmatpush2.xpose.msra.mxu0 0.0
        %1394 = vmatprep.subr.mxu0 0.0
        %1395 = vmatpush2.xpose.msra.mxu0 0.0
        %1396 = vmatprep.subr.mxu0 0.0
        %1397 = vmatpush2.xpose.msra.mxu0 0.0
        %1398 = vmatprep.subr.mxu0 0.0
        %1399 = vmatpush2.xpose.msra.mxu0 0.0
        %1400 = vmatprep.subr.mxu0 0.0
        %1401 = vmatpush2.xpose.msra.mxu0 0.0
        %1402 = vmatprep.subr.mxu0 0.0
        %1403 = vmatpush2.xpose.msra.mxu0 0.0
        %1404 = vmatprep.mubr.f32.mxu0 0.0
        %1405 = vmatmul.mubr.f32.gmra.mxu0 %v1336
        %v1406 = vpop.f32.mrf.mxu0
        %v1407 = vadd.f32 0.0, %v1406
        %v1408 = vpop.f32.mrf.mxu0
        %1409 = vdwg.mxu0
        %v1410 = vmul.f32 %v1407, 0.35355338
        %v1411 = vsel %vm1076, -10000.0, %v1410
        %v1412 = vsel %vm1000, %v1411, -inf
        %1413 = vmax.xlane.f32.xlu0 %v1412
        %v1414 = vpop.xlane.xlu0 %1413
        %v1415 = vsub.f32 %v1411, %v1414
        %v1416 = vmul.f32 %v1415, 1.442695
        %v1417 = vpow.pop %v1416
        %v1418 = vsel %vm1000, %v1417, 0.0
        %1419 = vadd.xlane.f32.xlu0 %v1418
        %v1420 = vpop.xlane.xlu0 %1419
        %v1421 = vrcp.pop %v1420
        %v1422 = vmul.f32 %v1417, %v1421
        %1423 = vrot.lane.b32.xlu0 %v992, 48
        %v1424 = vpop.permute.xlu0 %1423
        %v1427 = vsel %vm1000, %v1422, 0
        %1429 = vmatprep.subr.mxu0 0.0
        %1430 = vmatpush1.msra.mxu0 0.0
        %1431 = vmatprep.subr.mxu0 0.0
        %1432 = vmatpush1.msra.mxu0 0.0
        %1433 = vmatprep.subr.mxu0 0.0
        %1434 = vmatpush1.msra.mxu0 0.0
        %1435 = vmatprep.subr.mxu0 0.0
        %1436 = vmatpush1.msra.mxu0 0.0
        %1437 = vmatprep.subr.mxu0 0.0
        %1438 = vmatpush1.msra.mxu0 0.0
        %1439 = vmatprep.subr.mxu0 0.0
        %1440 = vmatpush1.msra.mxu0 0.0
        %1441 = vmatprep.subr.mxu0 0.0
        %1442 = vmatpush1.msra.mxu0 0.0
        %1443 = vmatprep.subr.mxu0 0.0
        %1444 = vmatpush1.msra.mxu0 0.0
        %1445 = vmatprep.subr.mxu0 0.0
        %1446 = vmatpush1.msra.mxu0 0.0
        %1447 = vmatprep.subr.mxu0 0.0
        %1448 = vmatpush1.msra.mxu0 0.0
        %1449 = vmatprep.subr.mxu0 0.0
        %1450 = vmatpush1.msra.mxu0 0.0
        %1451 = vmatprep.subr.mxu0 0.0
        %1452 = vmatpush1.msra.mxu0 0.0
        %1453 = vmatprep.subr.mxu0 0.0
        %1454 = vmatpush1.msra.mxu0 0.0
        %1455 = vmatprep.subr.mxu0 0.0
        %1456 = vmatpush1.msra.mxu0 0.0
        %1457 = vmatprep.subr.mxu0 0.0
        %1458 = vmatpush1.msra.mxu0 0.0
        %1459 = vmatprep.subr.mxu0 0.0
        %1460 = vmatpush1.msra.mxu0 %v1424
        %1461 = vmatprep.subr.mxu0 0.0
        %1462 = vmatpush2.msra.mxu0 0.0
        %1463 = vmatprep.subr.mxu0 0.0
        %1464 = vmatpush2.msra.mxu0 0.0
        %1465 = vmatprep.subr.mxu0 0.0
        %1466 = vmatpush2.msra.mxu0 0.0
        %1467 = vmatprep.subr.mxu0 0.0
        %1468 = vmatpush2.msra.mxu0 0.0
        %1469 = vmatprep.subr.mxu0 0.0
        %1470 = vmatpush2.msra.mxu0 0.0
        %1471 = vmatprep.subr.mxu0 0.0
        %1472 = vmatpush2.msra.mxu0 0.0
        %1473 = vmatprep.subr.mxu0 0.0
        %1474 = vmatpush2.msra.mxu0 0.0
        %1475 = vmatprep.subr.mxu0 0.0
        %1476 = vmatpush2.msra.mxu0 0.0
        %1477 = vmatprep.subr.mxu0 0.0
        %1478 = vmatpush2.msra.mxu0 0.0
        %1479 = vmatprep.subr.mxu0 0.0
        %1480 = vmatpush2.msra.mxu0 0.0
        %1481 = vmatprep.subr.mxu0 0.0
        %1482 = vmatpush2.msra.mxu0 0.0
        %1483 = vmatprep.subr.mxu0 0.0
        %1484 = vmatpush2.msra.mxu0 0.0
        %1485 = vmatprep.subr.mxu0 0.0
        %1486 = vmatpush2.msra.mxu0 0.0
        %1487 = vmatprep.subr.mxu0 0.0
        %1488 = vmatpush2.msra.mxu0 0.0
        %1489 = vmatprep.subr.mxu0 0.0
        %1490 = vmatpush2.msra.mxu0 0.0
        %1491 = vmatprep.subr.mxu0 0.0
        %1492 = vmatpush2.msra.mxu0 0.0
        %1493 = vmatprep.mubr.f32.mxu0 0.0
        %1494 = vmatmul.mubr.f32.gmra.mxu0 %v1427
        %v1495 = vpop.f32.mrf.mxu0
        %v1496 = vadd.f32 0.0, %v1495
        %v1497 = vpop.f32.mrf.mxu0
        %1498 = vdwg.mxu0
        %1499 = vrot.lane.b32.xlu0 %v992, 104
        %v1500 = vpop.permute.xlu0 %1499
        %1501 = vrot.lane.b32.xlu0 %v992, 72
        %v1502 = vpop.permute.xlu0 %1501
        %v1503 = vsel %vm1000, %v1500, 0
        %v1505 = vsel %vm1000, %v1502, 0
        %1507 = vmatprep.subr.mxu0 0.0
        %1508 = vmatpush1.xpose.msra.mxu0 0.0
        %1509 = vmatprep.subr.mxu0 0.0
        %1510 = vmatpush1.xpose.msra.mxu0 0.0
        %1511 = vmatprep.subr.mxu0 0.0
        %1512 = vmatpush1.xpose.msra.mxu0 0.0
        %1513 = vmatprep.subr.mxu0 0.0
        %1514 = vmatpush1.xpose.msra.mxu0 0.0
        %1515 = vmatprep.subr.mxu0 0.0
        %1516 = vmatpush1.xpose.msra.mxu0 0.0
        %1517 = vmatprep.subr.mxu0 0.0
        %1518 = vmatpush1.xpose.msra.mxu0 0.0
        %1519 = vmatprep.subr.mxu0 0.0
        %1520 = vmatpush1.xpose.msra.mxu0 0.0
        %1521 = vmatprep.subr.mxu0 0.0
        %1522 = vmatpush1.xpose.msra.mxu0 0.0
        %1523 = vmatprep.subr.mxu0 0.0
        %1524 = vmatpush1.xpose.msra.mxu0 0.0
        %1525 = vmatprep.subr.mxu0 0.0
        %1526 = vmatpush1.xpose.msra.mxu0 0.0
        %1527 = vmatprep.subr.mxu0 0.0
        %1528 = vmatpush1.xpose.msra.mxu0 0.0
        %1529 = vmatprep.subr.mxu0 0.0
        %1530 = vmatpush1.xpose.msra.mxu0 0.0
        %1531 = vmatprep.subr.mxu0 0.0
        %1532 = vmatpush1.xpose.msra.mxu0 0.0
        %1533 = vmatprep.subr.mxu0 0.0
        %1534 = vmatpush1.xpose.msra.mxu0 0.0
        %1535 = vmatprep.subr.mxu0 0.0
        %1536 = vmatpush1.xpose.msra.mxu0 0.0
        %1537 = vmatprep.subr.mxu0 0.0
        %1538 = vmatpush1.xpose.msra.mxu0 %v1505
        %1539 = vmatprep.subr.mxu0 0.0
        %1540 = vmatpush2.xpose.msra.mxu0 0.0
        %1541 = vmatprep.subr.mxu0 0.0
        %1542 = vmatpush2.xpose.msra.mxu0 0.0
        %1543 = vmatprep.subr.mxu0 0.0
        %1544 = vmatpush2.xpose.msra.mxu0 0.0
        %1545 = vmatprep.subr.mxu0 0.0
        %1546 = vmatpush2.xpose.msra.mxu0 0.0
        %1547 = vmatprep.subr.mxu0 0.0
        %1548 = vmatpush2.xpose.msra.mxu0 0.0
        %1549 = vmatprep.subr.mxu0 0.0
        %1550 = vmatpush2.xpose.msra.mxu0 0.0
        %1551 = vmatprep.subr.mxu0 0.0
        %1552 = vmatpush2.xpose.msra.mxu0 0.0
        %1553 = vmatprep.subr.mxu0 0.0
        %1554 = vmatpush2.xpose.msra.mxu0 0.0
        %1555 = vmatprep.subr.mxu0 0.0
        %1556 = vmatpush2.xpose.msra.mxu0 0.0
        %1557 = vmatprep.subr.mxu0 0.0
        %1558 = vmatpush2.xpose.msra.mxu0 0.0
        %1559 = vmatprep.subr.mxu0 0.0
        %1560 = vmatpush2.xpose.msra.mxu0 0.0
        %1561 = vmatprep.subr.mxu0 0.0
        %1562 = vmatpush2.xpose.msra.mxu0 0.0
        %1563 = vmatprep.subr.mxu0 0.0
        %1564 = vmatpush2.xpose.msra.mxu0 0.0
        %1565 = vmatprep.subr.mxu0 0.0
        %1566 = vmatpush2.xpose.msra.mxu0 0.0
        %1567 = vmatprep.subr.mxu0 0.0
        %1568 = vmatpush2.xpose.msra.mxu0 0.0
        %1569 = vmatprep.subr.mxu0 0.0
        %1570 = vmatpush2.xpose.msra.mxu0 0.0
        %1571 = vmatprep.mubr.f32.mxu0 0.0
        %1572 = vmatmul.mubr.f32.gmra.mxu0 %v1503
        %v1573 = vpop.f32.mrf.mxu0
        %v1574 = vadd.f32 0.0, %v1573
        %v1575 = vpop.f32.mrf.mxu0
        %1576 = vdwg.mxu0
        %v1577 = vmul.f32 %v1574, 0.35355338
        %v1578 = vsel %vm1076, -10000.0, %v1577
        %v1579 = vsel %vm1000, %v1578, -inf
        %1580 = vmax.xlane.f32.xlu0 %v1579
        %v1581 = vpop.xlane.xlu0 %1580
        %v1582 = vsub.f32 %v1578, %v1581
        %v1583 = vmul.f32 %v1582, 1.442695
        %v1584 = vpow.pop %v1583
        %v1585 = vsel %vm1000, %v1584, 0.0
        %1586 = vadd.xlane.f32.xlu0 %v1585
        %v1587 = vpop.xlane.xlu0 %1586
        %v1588 = vrcp.pop %v1587
        %v1589 = vmul.f32 %v1584, %v1588
        %1590 = vrot.lane.b32.xlu0 %v992, 40
        %v1591 = vpop.permute.xlu0 %1590
        %v1594 = vsel %vm1000, %v1589, 0
        %1596 = vmatprep.subr.mxu0 0.0
        %1597 = vmatpush1.msra.mxu0 0.0
        %1598 = vmatprep.subr.mxu0 0.0
        %1599 = vmatpush1.msra.mxu0 0.0
        %1600 = vmatprep.subr.mxu0 0.0
        %1601 = vmatpush1.msra.mxu0 0.0
        %1602 = vmatprep.subr.mxu0 0.0
        %1603 = vmatpush1.msra.mxu0 0.0
        %1604 = vmatprep.subr.mxu0 0.0
        %1605 = vmatpush1.msra.mxu0 0.0
        %1606 = vmatprep.subr.mxu0 0.0
        %1607 = vmatpush1.msra.mxu0 0.0
        %1608 = vmatprep.subr.mxu0 0.0
        %1609 = vmatpush1.msra.mxu0 0.0
        %1610 = vmatprep.subr.mxu0 0.0
        %1611 = vmatpush1.msra.mxu0 0.0
        %1612 = vmatprep.subr.mxu0 0.0
        %1613 = vmatpush1.msra.mxu0 0.0
        %1614 = vmatprep.subr.mxu0 0.0
        %1615 = vmatpush1.msra.mxu0 0.0
        %1616 = vmatprep.subr.mxu0 0.0
        %1617 = vmatpush1.msra.mxu0 0.0
        %1618 = vmatprep.subr.mxu0 0.0
        %1619 = vmatpush1.msra.mxu0 0.0
        %1620 = vmatprep.subr.mxu0 0.0
        %1621 = vmatpush1.msra.mxu0 0.0
        %1622 = vmatprep.subr.mxu0 0.0
        %1623 = vmatpush1.msra.mxu0 0.0
        %1624 = vmatprep.subr.mxu0 0.0
        %1625 = vmatpush1.msra.mxu0 0.0
        %1626 = vmatprep.subr.mxu0 0.0
        %1627 = vmatpush1.msra.mxu0 %v1591
        %1628 = vmatprep.subr.mxu0 0.0
        %1629 = vmatpush2.msra.mxu0 0.0
        %1630 = vmatprep.subr.mxu0 0.0
        %1631 = vmatpush2.msra.mxu0 0.0
        %1632 = vmatprep.subr.mxu0 0.0
        %1633 = vmatpush2.msra.mxu0 0.0
        %1634 = vmatprep.subr.mxu0 0.0
        %1635 = vmatpush2.msra.mxu0 0.0
        %1636 = vmatprep.subr.mxu0 0.0
        %1637 = vmatpush2.msra.mxu0 0.0
        %1638 = vmatprep.subr.mxu0 0.0
        %1639 = vmatpush2.msra.mxu0 0.0
        %1640 = vmatprep.subr.mxu0 0.0
        %1641 = vmatpush2.msra.mxu0 0.0
        %1642 = vmatprep.subr.mxu0 0.0
        %1643 = vmatpush2.msra.mxu0 0.0
        %1644 = vmatprep.subr.mxu0 0.0
        %1645 = vmatpush2.msra.mxu0 0.0
        %1646 = vmatprep.subr.mxu0 0.0
        %1647 = vmatpush2.msra.mxu0 0.0
        %1648 = vmatprep.subr.mxu0 0.0
        %1649 = vmatpush2.msra.mxu0 0.0
        %1650 = vmatprep.subr.mxu0 0.0
        %1651 = vmatpush2.msra.mxu0 0.0
        %1652 = vmatprep.subr.mxu0 0.0
        %1653 = vmatpush2.msra.mxu0 0.0
        %1654 = vmatprep.subr.mxu0 0.0
        %1655 = vmatpush2.msra.mxu0 0.0
        %1656 = vmatprep.subr.mxu0 0.0
        %1657 = vmatpush2.msra.mxu0 0.0
        %1658 = vmatprep.subr.mxu0 0.0
        %1659 = vmatpush2.msra.mxu0 0.0
        %1660 = vmatprep.mubr.f32.mxu0 0.0
        %1661 = vmatmul.mubr.f32.gmra.mxu0 %v1594
        %v1662 = vpop.f32.mrf.mxu0
        %v1663 = vadd.f32 0.0, %v1662
        %v1664 = vpop.f32.mrf.mxu0
        %1665 = vdwg.mxu0
        %1667 = vrot.lane.b32.xlu0 %v1329, 8
        %v1668 = vpop.permute.xlu0 %1667
        %1671 = vrot.lane.b32.xlu0 %v1496, 16
        %v1672 = vpop.permute.xlu0 %1671
        %1675 = vrot.lane.b32.xlu0 %v1663, 24
        %v1676 = vpop.permute.xlu0 %1675
        %v1678 = vsel %vm1000, %v1162, %v1668
        %vm1679 = vcmask 130048
        %v1680 = vsel %vm1679, %v1678, %v1672
        %vm1681 = vcmask 195584
        %v1682 = vsel %vm1681, %v1680, %v1676
        %v1683 = vpack.c.bf16 %v1682, %v1682
        %v1684 = vld [vmem:[%s868] sm:$0xf]
        %v1685 = vld [vmem:[%s868 + $0x4] sm:$0xf]
        %v1686 = vld [vmem:[%s868 + $0x8] sm:$0xf]
        %v1687 = vld [vmem:[%s868 + $0xc] sm:$0xf]
        %v1688 = vld [vmem:[%s871] sm:$0x1]
        %v1690 = vlaneseq
        %v1691 = vshrl.u32 %v1690, 7
        %v1692 = vsub.s32 0, %v1691
        %v1693 = vrot.slane %v1688, %v1692
        %v1699 = vunpack.c.l.b16 %v1684
        %v1700 = vunpack.c.l.b16 %v1685
        %v1701 = vunpack.c.l.b16 %v1686
        %v1702 = vunpack.c.l.b16 %v1687
        %v1703 = vpack.c.b16 %v1700, %v1699
        %v1704 = vpack.c.b16 %v1702, %v1701
        %v1708 = vsel %vm953, %v1683, 0
        %1710 = vmatprep.subr.bf16.mxu0 0
        %1711 = vmatpush1.bf16.msra.mxu0 0
        %1712 = vmatprep.subr.bf16.mxu0 0
        %1713 = vmatpush1.bf16.msra.mxu0 0
        %1714 = vmatprep.subr.bf16.mxu0 0
        %1715 = vmatpush1.bf16.msra.mxu0 0
        %1716 = vmatprep.subr.bf16.mxu0 0
        %1717 = vmatpush1.bf16.msra.mxu0 0
        %1718 = vmatprep.subr.bf16.mxu0 0
        %1719 = vmatpush1.bf16.msra.mxu0 0
        %1720 = vmatprep.subr.bf16.mxu0 0
        %1721 = vmatpush1.bf16.msra.mxu0 0
        %1722 = vmatprep.subr.bf16.mxu0 0
        %1723 = vmatpush1.bf16.msra.mxu0 %v1704
        %1724 = vmatprep.subr.bf16.mxu0 0
        %1725 = vmatpush1.bf16.msra.mxu0 %v1703
        %1726 = vmatprep.subr.bf16.mxu0 0
        %1727 = vmatpush2.bf16.msra.mxu0 0
        %1728 = vmatprep.subr.bf16.mxu0 0
        %1729 = vmatpush2.bf16.msra.mxu0 0
        %1730 = vmatprep.subr.bf16.mxu0 0
        %1731 = vmatpush2.bf16.msra.mxu0 0
        %1732 = vmatprep.subr.bf16.mxu0 0
        %1733 = vmatpush2.bf16.msra.mxu0 0
        %1734 = vmatprep.subr.bf16.mxu0 0
        %1735 = vmatpush2.bf16.msra.mxu0 0
        %1736 = vmatprep.subr.bf16.mxu0 0
        %1737 = vmatpush2.bf16.msra.mxu0 0
        %1738 = vmatprep.subr.bf16.mxu0 0
        %1739 = vmatpush2.bf16.msra.mxu0 0
        %1740 = vmatprep.subr.bf16.mxu0 0
        %1741 = vmatpush2.bf16.msra.mxu0 0
        %1742 = vmatprep.mubr.bf16.mxu0 0
        %1743 = vmatmul.mubr.bf16.gmra.mxu0 %v1708
        %v1744 = vpop.f32.mrf.mxu0
        %v1745 = vadd.f32 %v1693, %v1744
        %v1746 = vpop.f32.mrf.mxu0
        %v1747 = vpop.f32.mrf.mxu0
        %v1748 = vpop.f32.mrf.mxu0
        %1749 = vdwg.mxu0
        %v1750 = vadd.f32 %v924, %v1745
        %v1751 = vsel %vm953, %v1750, 0.0
        %1752 = vadd.xlane.f32.xlu0 %v1751
        %v1753 = vpop.xlane.xlu0 %1752
        %v1754 = vrcp.pop 32.0
        %v1755 = vmul.f32 %v1753, %v1754
        %v1756 = vsub.f32 %v1750, %v1755
        %v1757 = vmul.f32 %v1756, %v1756
        %v1758 = vsel %vm953, %v1757, 0.0
        %1759 = vadd.xlane.f32.xlu0 %v1758
        %v1760 = vpop.xlane.xlu0 %1759
        %v1761 = vmul.f32 %v1760, %v1754
        %v1762 = vadd.f32 %v1761, 1e-05
        %v1763 = vrsqrt.pop %v1762
        %v1764 = vmul.f32 %v1756, %v1763
        %v1765 = vlaneseq
        %v1766 = vshrl.u32 %v1765, 7
        %v1767 = vsub.s32 0, %v1766
        %v1768 = vrot.slane %v928, %v1767
        %v1769 = vmul.f32 %v1764, %v1768
        %v1770 = vlaneseq
        %v1771 = vshrl.u32 %v1770, 7
        %v1772 = vsub.s32 1, %v1771
        %v1773 = vrot.slane %v928, %v1772
        %v1774 = vadd.f32 %v1769, %v1773
        %v1775 = vpack.c.bf16 %v1774, %v1774
        %v1776 = vld [vmem:[%s876] sm:$0xf]
        %v1777 = vld [vmem:[%s876 + $0x4] sm:$0xf]
        %v1778 = vld [vmem:[%s876 + $0x8] sm:$0xf]
        %v1779 = vld [vmem:[%s876 + $0xc] sm:$0xf]
        %v1780 = vld [vmem:[%s879] sm:$0x1]
        %v1782 = vlaneseq
        %v1783 = vshrl.u32 %v1782, 7
        %v1784 = vsub.s32 0, %v1783
        %v1785 = vrot.slane %v1780, %v1784
        %v1791 = vunpack.c.l.b16 %v1776
        %v1792 = vunpack.c.l.b16 %v1777
        %v1793 = vunpack.c.l.b16 %v1778
        %v1794 = vunpack.c.l.b16 %v1779
        %v1795 = vpack.c.b16 %v1792, %v1791
        %v1796 = vpack.c.b16 %v1794, %v1793
        %v1800 = vsel %vm953, %v1775, 0
        %1802 = vmatprep.subr.bf16.mxu0 0
        %1803 = vmatpush1.bf16.msra.mxu0 0
        %1804 = vmatprep.subr.bf16.mxu0 0
        %1805 = vmatpush1.bf16.msra.mxu0 0
        %1806 = vmatprep.subr.bf16.mxu0 0
        %1807 = vmatpush1.bf16.msra.mxu0 0
        %1808 = vmatprep.subr.bf16.mxu0 0
        %1809 = vmatpush1.bf16.msra.mxu0 0
        %1810 = vmatprep.subr.bf16.mxu0 0
        %1811 = vmatpush1.bf16.msra.mxu0 0
        %1812 = vmatprep.subr.bf16.mxu0 0
        %1813 = vmatpush1.bf16.msra.mxu0 0
        %1814 = vmatprep.subr.bf16.mxu0 0
        %1815 = vmatpush1.bf16.msra.mxu0 %v1796
        %1816 = vmatprep.subr.bf16.mxu0 0
        %1817 = vmatpush1.bf16.msra.mxu0 %v1795
        %1818 = vmatprep.subr.bf16.mxu0 0
        %1819 = vmatpush2.bf16.msra.mxu0 0
        %1820 = vmatprep.subr.bf16.mxu0 0
        %1821 = vmatpush2.bf16.msra.mxu0 0
        %1822 = vmatprep.subr.bf16.mxu0 0
        %1823 = vmatpush2.bf16.msra.mxu0 0
        %1824 = vmatprep.subr.bf16.mxu0 0
        %1825 = vmatpush2.bf16.msra.mxu0 0
        %1826 = vmatprep.subr.bf16.mxu0 0
        %1827 = vmatpush2.bf16.msra.mxu0 0
        %1828 = vmatprep.subr.bf16.mxu0 0
        %1829 = vmatpush2.bf16.msra.mxu0 0
        %1830 = vmatprep.subr.bf16.mxu0 0
        %1831 = vmatpush2.bf16.msra.mxu0 0
        %1832 = vmatprep.subr.bf16.mxu0 0
        %1833 = vmatpush2.bf16.msra.mxu0 0
        %1834 = vmatprep.mubr.bf16.mxu0 0
        %1835 = vmatmul.mubr.bf16.gmra.mxu0 %v1800
        %v1836 = vpop.f32.mrf.mxu0
        %v1837 = vadd.f32 %v1785, %v1836
        %v1838 = vpop.f32.mrf.mxu0
        %v1839 = vpop.f32.mrf.mxu0
        %v1840 = vpop.f32.mrf.mxu0
        %1841 = vdwg.mxu0
        %v1842 = vpack.c.bf16 %v925, %v925
        %v1843 = vld [vmem:[%s884] sm:$0xf]
        %v1844 = vld [vmem:[%s884 + $0x4] sm:$0xf]
        %v1845 = vld [vmem:[%s884 + $0x8] sm:$0xf]
        %v1846 = vld [vmem:[%s884 + $0xc] sm:$0xf]
        %v1847 = vld [vmem:[%s887] sm:$0x1]
        %v1849 = vlaneseq
        %v1850 = vshrl.u32 %v1849, 7
        %v1851 = vsub.s32 0, %v1850
        %v1852 = vrot.slane %v1847, %v1851
        %v1858 = vunpack.c.l.b16 %v1843
        %v1859 = vunpack.c.l.b16 %v1844
        %v1860 = vunpack.c.l.b16 %v1845
        %v1861 = vunpack.c.l.b16 %v1846
        %v1862 = vpack.c.b16 %v1859, %v1858
        %v1863 = vpack.c.b16 %v1861, %v1860
        %v1867 = vsel %vm953, %v1842, 0
        %1869 = vmatprep.subr.bf16.mxu0 0
        %1870 = vmatpush1.bf16.msra.mxu0 0
        %1871 = vmatprep.subr.bf16.mxu0 0
        %1872 = vmatpush1.bf16.msra.mxu0 0
        %1873 = vmatprep.subr.bf16.mxu0 0
        %1874 = vmatpush1.bf16.msra.mxu0 0
        %1875 = vmatprep.subr.bf16.mxu0 0
        %1876 = vmatpush1.bf16.msra.mxu0 0
        %1877 = vmatprep.subr.bf16.mxu0 0
        %1878 = vmatpush1.bf16.msra.mxu0 0
        %1879 = vmatprep.subr.bf16.mxu0 0
        %1880 = vmatpush1.bf16.msra.mxu0 0
        %1881 = vmatprep.subr.bf16.mxu0 0
        %1882 = vmatpush1.bf16.msra.mxu0 %v1863
        %1883 = vmatprep.subr.bf16.mxu0 0
        %1884 = vmatpush1.bf16.msra.mxu0 %v1862
        %1885 = vmatprep.subr.bf16.mxu0 0
        %1886 = vmatpush2.bf16.msra.mxu0 0
        %1887 = vmatprep.subr.bf16.mxu0 0
        %1888 = vmatpush2.bf16.msra.mxu0 0
        %1889 = vmatprep.subr.bf16.mxu0 0
        %1890 = vmatpush2.bf16.msra.mxu0 0
        %1891 = vmatprep.subr.bf16.mxu0 0
        %1892 = vmatpush2.bf16.msra.mxu0 0
        %1893 = vmatprep.subr.bf16.mxu0 0
        %1894 = vmatpush2.bf16.msra.mxu0 0
        %1895 = vmatprep.subr.bf16.mxu0 0
        %1896 = vmatpush2.bf16.msra.mxu0 0
        %1897 = vmatprep.subr.bf16.mxu0 0
        %1898 = vmatpush2.bf16.msra.mxu0 0
        %1899 = vmatprep.subr.bf16.mxu0 0
        %1900 = vmatpush2.bf16.msra.mxu0 0
        %1901 = vmatprep.mubr.bf16.mxu0 0
        %1902 = vmatmul.mubr.bf16.gmra.mxu0 %v1867
        %v1903 = vpop.f32.mrf.mxu0
        %v1904 = vadd.f32 %v1852, %v1903
        %v1905 = vpop.f32.mrf.mxu0
        %v1906 = vpop.f32.mrf.mxu0
        %v1907 = vpop.f32.mrf.mxu0
        %1908 = vdwg.mxu0
        %v1910 = vsel %vm1000, %v1837, 0
        %v1913 = vsel %vm1000, %v1904, 0
        %1915 = vmatprep.subr.mxu0 0.0
        %1916 = vmatpush1.xpose.msra.mxu0 0.0
        %1917 = vmatprep.subr.mxu0 0.0
        %1918 = vmatpush1.xpose.msra.mxu0 0.0
        %1919 = vmatprep.subr.mxu0 0.0
        %1920 = vmatpush1.xpose.msra.mxu0 0.0
        %1921 = vmatprep.subr.mxu0 0.0
        %1922 = vmatpush1.xpose.msra.mxu0 0.0
        %1923 = vmatprep.subr.mxu0 0.0
        %1924 = vmatpush1.xpose.msra.mxu0 0.0
        %1925 = vmatprep.subr.mxu0 0.0
        %1926 = vmatpush1.xpose.msra.mxu0 0.0
        %1927 = vmatprep.subr.mxu0 0.0
        %1928 = vmatpush1.xpose.msra.mxu0 0.0
        %1929 = vmatprep.subr.mxu0 0.0
        %1930 = vmatpush1.xpose.msra.mxu0 0.0
        %1931 = vmatprep.subr.mxu0 0.0
        %1932 = vmatpush1.xpose.msra.mxu0 0.0
        %1933 = vmatprep.subr.mxu0 0.0
        %1934 = vmatpush1.xpose.msra.mxu0 0.0
        %1935 = vmatprep.subr.mxu0 0.0
        %1936 = vmatpush1.xpose.msra.mxu0 0.0
        %1937 = vmatprep.subr.mxu0 0.0
        %1938 = vmatpush1.xpose.msra.mxu0 0.0
        %1939 = vmatprep.subr.mxu0 0.0
        %1940 = vmatpush1.xpose.msra.mxu0 0.0
        %1941 = vmatprep.subr.mxu0 0.0
        %1942 = vmatpush1.xpose.msra.mxu0 0.0
        %1943 = vmatprep.subr.mxu0 0.0
        %1944 = vmatpush1.xpose.msra.mxu0 0.0
        %1945 = vmatprep.subr.mxu0 0.0
        %1946 = vmatpush1.xpose.msra.mxu0 %v1913
        %1947 = vmatprep.subr.mxu0 0.0
        %1948 = vmatpush2.xpose.msra.mxu0 0.0
        %1949 = vmatprep.subr.mxu0 0.0
        %1950 = vmatpush2.xpose.msra.mxu0 0.0
        %1951 = vmatprep.subr.mxu0 0.0
        %1952 = vmatpush2.xpose.msra.mxu0 0.0
        %1953 = vmatprep.subr.mxu0 0.0
        %1954 = vmatpush2.xpose.msra.mxu0 0.0
        %1955 = vmatprep.subr.mxu0 0.0
        %1956 = vmatpush2.xpose.msra.mxu0 0.0
        %1957 = vmatprep.subr.mxu0 0.0
        %1958 = vmatpush2.xpose.msra.mxu0 0.0
        %1959 = vmatprep.subr.mxu0 0.0
        %1960 = vmatpush2.xpose.msra.mxu0 0.0
        %1961 = vmatprep.subr.mxu0 0.0
        %1962 = vmatpush2.xpose.msra.mxu0 0.0
        %1963 = vmatprep.subr.mxu0 0.0
        %1964 = vmatpush2.xpose.msra.mxu0 0.0
        %1965 = vmatprep.subr.mxu0 0.0
        %1966 = vmatpush2.xpose.msra.mxu0 0.0
        %1967 = vmatprep.subr.mxu0 0.0
        %1968 = vmatpush2.xpose.msra.mxu0 0.0
        %1969 = vmatprep.subr.mxu0 0.0
        %1970 = vmatpush2.xpose.msra.mxu0 0.0
        %1971 = vmatprep.subr.mxu0 0.0
        %1972 = vmatpush2.xpose.msra.mxu0 0.0
        %1973 = vmatprep.subr.mxu0 0.0
        %1974 = vmatpush2.xpose.msra.mxu0 0.0
        %1975 = vmatprep.subr.mxu0 0.0
        %1976 = vmatpush2.xpose.msra.mxu0 0.0
        %1977 = vmatprep.subr.mxu0 0.0
        %1978 = vmatpush2.xpose.msra.mxu0 0.0
        %1979 = vmatprep.mubr.f32.mxu0 0.0
        %1980 = vmatmul.mubr.f32.gmra.mxu0 %v1910
        %v1981 = vpop.f32.mrf.mxu0
        %v1982 = vadd.f32 0.0, %v1981
        %v1983 = vpop.f32.mrf.mxu0
        %1984 = vdwg.mxu0
        %v1985 = vmul.f32 %v1982, 0.35355338
        %vm1986 = vcmp.gt.f32.partialorder %v927, 0.5
        %v1987 = vsel %vm1986, -10000.0, %v1985
        %v1988 = vsel %vm1000, %v1987, -inf
        %1989 = vmax.xlane.f32.xlu0 %v1988
        %v1990 = vpop.xlane.xlu0 %1989
        %v1991 = vsub.f32 %v1987, %v1990
        %v1992 = vmul.f32 %v1991, 1.442695
        %v1993 = vpow.pop %v1992
        %v1994 = vsel %vm1000, %v1993, 0.0
        %1995 = vadd.xlane.f32.xlu0 %v1994
        %v1996 = vpop.xlane.xlu0 %1995
        %v1997 = vrcp.pop %v1996
        %v1998 = vmul.f32 %v1993, %v1997
        %1999 = vrot.lane.b32.xlu0 %v1904, 96
        %v2000 = vpop.permute.xlu0 %1999
        %v2003 = vsel %vm1000, %v1998, 0
        %2005 = vmatprep.subr.mxu0 0.0
        %2006 = vmatpush1.msra.mxu0 0.0
        %2007 = vmatprep.subr.mxu0 0.0
        %2008 = vmatpush1.msra.mxu0 0.0
        %2009 = vmatprep.subr.mxu0 0.0
        %2010 = vmatpush1.msra.mxu0 0.0
        %2011 = vmatprep.subr.mxu0 0.0
        %2012 = vmatpush1.msra.mxu0 0.0
        %2013 = vmatprep.subr.mxu0 0.0
        %2014 = vmatpush1.msra.mxu0 0.0
        %2015 = vmatprep.subr.mxu0 0.0
        %2016 = vmatpush1.msra.mxu0 0.0
        %2017 = vmatprep.subr.mxu0 0.0
        %2018 = vmatpush1.msra.mxu0 0.0
        %2019 = vmatprep.subr.mxu0 0.0
        %2020 = vmatpush1.msra.mxu0 0.0
        %2021 = vmatprep.subr.mxu0 0.0
        %2022 = vmatpush1.msra.mxu0 0.0
        %2023 = vmatprep.subr.mxu0 0.0
        %2024 = vmatpush1.msra.mxu0 0.0
        %2025 = vmatprep.subr.mxu0 0.0
        %2026 = vmatpush1.msra.mxu0 0.0
        %2027 = vmatprep.subr.mxu0 0.0
        %2028 = vmatpush1.msra.mxu0 0.0
        %2029 = vmatprep.subr.mxu0 0.0
        %2030 = vmatpush1.msra.mxu0 0.0
        %2031 = vmatprep.subr.mxu0 0.0
        %2032 = vmatpush1.msra.mxu0 0.0
        %2033 = vmatprep.subr.mxu0 0.0
        %2034 = vmatpush1.msra.mxu0 0.0
        %2035 = vmatprep.subr.mxu0 0.0
        %2036 = vmatpush1.msra.mxu0 %v2000
        %2037 = vmatprep.subr.mxu0 0.0
        %2038 = vmatpush2.msra.mxu0 0.0
        %2039 = vmatprep.subr.mxu0 0.0
        %2040 = vmatpush2.msra.mxu0 0.0
        %2041 = vmatprep.subr.mxu0 0.0
        %2042 = vmatpush2.msra.mxu0 0.0
        %2043 = vmatprep.subr.mxu0 0.0
        %2044 = vmatpush2.msra.mxu0 0.0
        %2045 = vmatprep.subr.mxu0 0.0
        %2046 = vmatpush2.msra.mxu0 0.0
        %2047 = vmatprep.subr.mxu0 0.0
        %2048 = vmatpush2.msra.mxu0 0.0
        %2049 = vmatprep.subr.mxu0 0.0
        %2050 = vmatpush2.msra.mxu0 0.0
        %2051 = vmatprep.subr.mxu0 0.0
        %2052 = vmatpush2.msra.mxu0 0.0
        %2053 = vmatprep.subr.mxu0 0.0
        %2054 = vmatpush2.msra.mxu0 0.0
        %2055 = vmatprep.subr.mxu0 0.0
        %2056 = vmatpush2.msra.mxu0 0.0
        %2057 = vmatprep.subr.mxu0 0.0
        %2058 = vmatpush2.msra.mxu0 0.0
        %2059 = vmatprep.subr.mxu0 0.0
        %2060 = vmatpush2.msra.mxu0 0.0
        %2061 = vmatprep.subr.mxu0 0.0
        %2062 = vmatpush2.msra.mxu0 0.0
        %2063 = vmatprep.subr.mxu0 0.0
        %2064 = vmatpush2.msra.mxu0 0.0
        %2065 = vmatprep.subr.mxu0 0.0
        %2066 = vmatpush2.msra.mxu0 0.0
        %2067 = vmatprep.subr.mxu0 0.0
        %2068 = vmatpush2.msra.mxu0 0.0
        %2069 = vmatprep.mubr.f32.mxu0 0.0
        %2070 = vmatmul.mubr.f32.gmra.mxu0 %v2003
        %v2071 = vpop.f32.mrf.mxu0
        %v2072 = vadd.f32 0.0, %v2071
        %v2073 = vpop.f32.mrf.mxu0
        %2074 = vdwg.mxu0
        %2075 = vrot.lane.b32.xlu0 %v1837, 120
        %v2076 = vpop.permute.xlu0 %2075
        %2077 = vrot.lane.b32.xlu0 %v1904, 120
        %v2078 = vpop.permute.xlu0 %2077
        %v2079 = vsel %vm1000, %v2076, 0
        %v2081 = vsel %vm1000, %v2078, 0
        %2083 = vmatprep.subr.mxu0 0.0
        %2084 = vmatpush1.xpose.msra.mxu0 0.0
        %2085 = vmatprep.subr.mxu0 0.0
        %2086 = vmatpush1.xpose.msra.mxu0 0.0
        %2087 = vmatprep.subr.mxu0 0.0
        %2088 = vmatpush1.xpose.msra.mxu0 0.0
        %2089 = vmatprep.subr.mxu0 0.0
        %2090 = vmatpush1.xpose.msra.mxu0 0.0
        %2091 = vmatprep.subr.mxu0 0.0
        %2092 = vmatpush1.xpose.msra.mxu0 0.0
        %2093 = vmatprep.subr.mxu0 0.0
        %2094 = vmatpush1.xpose.msra.mxu0 0.0
        %2095 = vmatprep.subr.mxu0 0.0
        %2096 = vmatpush1.xpose.msra.mxu0 0.0
        %2097 = vmatprep.subr.mxu0 0.0
        %2098 = vmatpush1.xpose.msra.mxu0 0.0
        %2099 = vmatprep.subr.mxu0 0.0
        %2100 = vmatpush1.xpose.msra.mxu0 0.0
        %2101 = vmatprep.subr.mxu0 0.0
        %2102 = vmatpush1.xpose.msra.mxu0 0.0
        %2103 = vmatprep.subr.mxu0 0.0
        %2104 = vmatpush1.xpose.msra.mxu0 0.0
        %2105 = vmatprep.subr.mxu0 0.0
        %2106 = vmatpush1.xpose.msra.mxu0 0.0
        %2107 = vmatprep.subr.mxu0 0.0
        %2108 = vmatpush1.xpose.msra.mxu0 0.0
        %2109 = vmatprep.subr.mxu0 0.0
        %2110 = vmatpush1.xpose.msra.mxu0 0.0
        %2111 = vmatprep.subr.mxu0 0.0
        %2112 = vmatpush1.xpose.msra.mxu0 0.0
        %2113 = vmatprep.subr.mxu0 0.0
        %2114 = vmatpush1.xpose.msra.mxu0 %v2081
        %2115 = vmatprep.subr.mxu0 0.0
        %2116 = vmatpush2.xpose.msra.mxu0 0.0
        %2117 = vmatprep.subr.mxu0 0.0
        %2118 = vmatpush2.xpose.msra.mxu0 0.0
        %2119 = vmatprep.subr.mxu0 0.0
        %2120 = vmatpush2.xpose.msra.mxu0 0.0
        %2121 = vmatprep.subr.mxu0 0.0
        %2122 = vmatpush2.xpose.msra.mxu0 0.0
        %2123 = vmatprep.subr.mxu0 0.0
        %2124 = vmatpush2.xpose.msra.mxu0 0.0
        %2125 = vmatprep.subr.mxu0 0.0
        %2126 = vmatpush2.xpose.msra.mxu0 0.0
        %2127 = vmatprep.subr.mxu0 0.0
        %2128 = vmatpush2.xpose.msra.mxu0 0.0
        %2129 = vmatprep.subr.mxu0 0.0
        %2130 = vmatpush2.xpose.msra.mxu0 0.0
        %2131 = vmatprep.subr.mxu0 0.0
        %2132 = vmatpush2.xpose.msra.mxu0 0.0
        %2133 = vmatprep.subr.mxu0 0.0
        %2134 = vmatpush2.xpose.msra.mxu0 0.0
        %2135 = vmatprep.subr.mxu0 0.0
        %2136 = vmatpush2.xpose.msra.mxu0 0.0
        %2137 = vmatprep.subr.mxu0 0.0
        %2138 = vmatpush2.xpose.msra.mxu0 0.0
        %2139 = vmatprep.subr.mxu0 0.0
        %2140 = vmatpush2.xpose.msra.mxu0 0.0
        %2141 = vmatprep.subr.mxu0 0.0
        %2142 = vmatpush2.xpose.msra.mxu0 0.0
        %2143 = vmatprep.subr.mxu0 0.0
        %2144 = vmatpush2.xpose.msra.mxu0 0.0
        %2145 = vmatprep.subr.mxu0 0.0
        %2146 = vmatpush2.xpose.msra.mxu0 0.0
        %2147 = vmatprep.mubr.f32.mxu0 0.0
        %2148 = vmatmul.mubr.f32.gmra.mxu0 %v2079
        %v2149 = vpop.f32.mrf.mxu0
        %v2150 = vadd.f32 0.0, %v2149
        %v2151 = vpop.f32.mrf.mxu0
        %2152 = vdwg.mxu0
        %v2153 = vmul.f32 %v2150, 0.35355338
        %v2154 = vsel %vm1986, -10000.0, %v2153
        %v2155 = vsel %vm1000, %v2154, -inf
        %2156 = vmax.xlane.f32.xlu0 %v2155
        %v2157 = vpop.xlane.xlu0 %2156
        %v2158 = vsub.f32 %v2154, %v2157
        %v2159 = vmul.f32 %v2158, 1.442695
        %v2160 = vpow.pop %v2159
        %v2161 = vsel %vm1000, %v2160, 0.0
        %2162 = vadd.xlane.f32.xlu0 %v2161
        %v2163 = vpop.xlane.xlu0 %2162
        %v2164 = vrcp.pop %v2163
        %v2165 = vmul.f32 %v2160, %v2164
        %2166 = vrot.lane.b32.xlu0 %v1904, 88
        %v2167 = vpop.permute.xlu0 %2166
        %v2170 = vsel %vm1000, %v2165, 0
        %2172 = vmatprep.subr.mxu0 0.0
        %2173 = vmatpush1.msra.mxu0 0.0
        %2174 = vmatprep.subr.mxu0 0.0
        %2175 = vmatpush1.msra.mxu0 0.0
        %2176 = vmatprep.subr.mxu0 0.0
        %2177 = vmatpush1.msra.mxu0 0.0
        %2178 = vmatprep.subr.mxu0 0.0
        %2179 = vmatpush1.msra.mxu0 0.0
        %2180 = vmatprep.subr.mxu0 0.0
        %2181 = vmatpush1.msra.mxu0 0.0
        %2182 = vmatprep.subr.mxu0 0.0
        %2183 = vmatpush1.msra.mxu0 0.0
        %2184 = vmatprep.subr.mxu0 0.0
        %2185 = vmatpush1.msra.mxu0 0.0
        %2186 = vmatprep.subr.mxu0 0.0
        %2187 = vmatpush1.msra.mxu0 0.0
        %2188 = vmatprep.subr.mxu0 0.0
        %2189 = vmatpush1.msra.mxu0 0.0
        %2190 = vmatprep.subr.mxu0 0.0
        %2191 = vmatpush1.msra.mxu0 0.0
        %2192 = vmatprep.subr.mxu0 0.0
        %2193 = vmatpush1.msra.mxu0 0.0
        %2194 = vmatprep.subr.mxu0 0.0
        %2195 = vmatpush1.msra.mxu0 0.0
        %2196 = vmatprep.subr.mxu0 0.0
        %2197 = vmatpush1.msra.mxu0 0.0
        %2198 = vmatprep.subr.mxu0 0.0
        %2199 = vmatpush1.msra.mxu0 0.0
        %2200 = vmatprep.subr.mxu0 0.0
        %2201 = vmatpush1.msra.mxu0 0.0
        %2202 = vmatprep.subr.mxu0 0.0
        %2203 = vmatpush1.msra.mxu0 %v2167
        %2204 = vmatprep.subr.mxu0 0.0
        %2205 = vmatpush2.msra.mxu0 0.0
        %2206 = vmatprep.subr.mxu0 0.0
        %2207 = vmatpush2.msra.mxu0 0.0
        %2208 = vmatprep.subr.mxu0 0.0
        %2209 = vmatpush2.msra.mxu0 0.0
        %2210 = vmatprep.subr.mxu0 0.0
        %2211 = vmatpush2.msra.mxu0 0.0
        %2212 = vmatprep.subr.mxu0 0.0
        %2213 = vmatpush2.msra.mxu0 0.0
        %2214 = vmatprep.subr.mxu0 0.0
        %2215 = vmatpush2.msra.mxu0 0.0
        %2216 = vmatprep.subr.mxu0 0.0
        %2217 = vmatpush2.msra.mxu0 0.0
        %2218 = vmatprep.subr.mxu0 0.0
        %2219 = vmatpush2.msra.mxu0 0.0
        %2220 = vmatprep.subr.mxu0 0.0
        %2221 = vmatpush2.msra.mxu0 0.0
        %2222 = vmatprep.subr.mxu0 0.0
        %2223 = vmatpush2.msra.mxu0 0.0
        %2224 = vmatprep.subr.mxu0 0.0
        %2225 = vmatpush2.msra.mxu0 0.0
        %2226 = vmatprep.subr.mxu0 0.0
        %2227 = vmatpush2.msra.mxu0 0.0
        %2228 = vmatprep.subr.mxu0 0.0
        %2229 = vmatpush2.msra.mxu0 0.0
        %2230 = vmatprep.subr.mxu0 0.0
        %2231 = vmatpush2.msra.mxu0 0.0
        %2232 = vmatprep.subr.mxu0 0.0
        %2233 = vmatpush2.msra.mxu0 0.0
        %2234 = vmatprep.subr.mxu0 0.0
        %2235 = vmatpush2.msra.mxu0 0.0
        %2236 = vmatprep.mubr.f32.mxu0 0.0
        %2237 = vmatmul.mubr.f32.gmra.mxu0 %v2170
        %v2238 = vpop.f32.mrf.mxu0
        %v2239 = vadd.f32 0.0, %v2238
        %v2240 = vpop.f32.mrf.mxu0
        %2241 = vdwg.mxu0
        %2242 = vrot.lane.b32.xlu0 %v1837, 112
        %v2243 = vpop.permute.xlu0 %2242
        %2244 = vrot.lane.b32.xlu0 %v1904, 112
        %v2245 = vpop.permute.xlu0 %2244
        %v2246 = vsel %vm1000, %v2243, 0
        %v2248 = vsel %vm1000, %v2245, 0
        %2250 = vmatprep.subr.mxu0 0.0
        %2251 = vmatpush1.xpose.msra.mxu0 0.0
        %2252 = vmatprep.subr.mxu0 0.0
        %2253 = vmatpush1.xpose.msra.mxu0 0.0
        %2254 = vmatprep.subr.mxu0 0.0
        %2255 = vmatpush1.xpose.msra.mxu0 0.0
        %2256 = vmatprep.subr.mxu0 0.0
        %2257 = vmatpush1.xpose.msra.mxu0 0.0
        %2258 = vmatprep.subr.mxu0 0.0
        %2259 = vmatpush1.xpose.msra.mxu0 0.0
        %2260 = vmatprep.subr.mxu0 0.0
        %2261 = vmatpush1.xpose.msra.mxu0 0.0
        %2262 = vmatprep.subr.mxu0 0.0
        %2263 = vmatpush1.xpose.msra.mxu0 0.0
        %2264 = vmatprep.subr.mxu0 0.0
        %2265 = vmatpush1.xpose.msra.mxu0 0.0
        %2266 = vmatprep.subr.mxu0 0.0
        %2267 = vmatpush1.xpose.msra.mxu0 0.0
        %2268 = vmatprep.subr.mxu0 0.0
        %2269 = vmatpush1.xpose.msra.mxu0 0.0
        %2270 = vmatprep.subr.mxu0 0.0
        %2271 = vmatpush1.xpose.msra.mxu0 0.0
        %2272 = vmatprep.subr.mxu0 0.0
        %2273 = vmatpush1.xpose.msra.mxu0 0.0
        %2274 = vmatprep.subr.mxu0 0.0
        %2275 = vmatpush1.xpose.msra.mxu0 0.0
        %2276 = vmatprep.subr.mxu0 0.0
        %2277 = vmatpush1.xpose.msra.mxu0 0.0
        %2278 = vmatprep.subr.mxu0 0.0
        %2279 = vmatpush1.xpose.msra.mxu0 0.0
        %2280 = vmatprep.subr.mxu0 0.0
        %2281 = vmatpush1.xpose.msra.mxu0 %v2248
        %2282 = vmatprep.subr.mxu0 0.0
        %2283 = vmatpush2.xpose.msra.mxu0 0.0
        %2284 = vmatprep.subr.mxu0 0.0
        %2285 = vmatpush2.xpose.msra.mxu0 0.0
        %2286 = vmatprep.subr.mxu0 0.0
        %2287 = vmatpush2.xpose.msra.mxu0 0.0
        %2288 = vmatprep.subr.mxu0 0.0
        %2289 = vmatpush2.xpose.msra.mxu0 0.0
        %2290 = vmatprep.subr.mxu0 0.0
        %2291 = vmatpush2.xpose.msra.mxu0 0.0
        %2292 = vmatprep.subr.mxu0 0.0
        %2293 = vmatpush2.xpose.msra.mxu0 0.0
        %2294 = vmatprep.subr.mxu0 0.0
        %2295 = vmatpush2.xpose.msra.mxu0 0.0
        %2296 = vmatprep.subr.mxu0 0.0
        %2297 = vmatpush2.xpose.msra.mxu0 0.0
        %2298 = vmatprep.subr.mxu0 0.0
        %2299 = vmatpush2.xpose.msra.mxu0 0.0
        %2300 = vmatprep.subr.mxu0 0.0
        %2301 = vmatpush2.xpose.msra.mxu0 0.0
        %2302 = vmatprep.subr.mxu0 0.0
        %2303 = vmatpush2.xpose.msra.mxu0 0.0
        %2304 = vmatprep.subr.mxu0 0.0
        %2305 = vmatpush2.xpose.msra.mxu0 0.0
        %2306 = vmatprep.subr.mxu0 0.0
        %2307 = vmatpush2.xpose.msra.mxu0 0.0
        %2308 = vmatprep.subr.mxu0 0.0
        %2309 = vmatpush2.xpose.msra.mxu0 0.0
        %2310 = vmatprep.subr.mxu0 0.0
        %2311 = vmatpush2.xpose.msra.mxu0 0.0
        %2312 = vmatprep.subr.mxu0 0.0
        %2313 = vmatpush2.xpose.msra.mxu0 0.0
        %2314 = vmatprep.mubr.f32.mxu0 0.0
        %2315 = vmatmul.mubr.f32.gmra.mxu0 %v2246
        %v2316 = vpop.f32.mrf.mxu0
        %v2317 = vadd.f32 0.0, %v2316
        %v2318 = vpop.f32.mrf.mxu0
        %2319 = vdwg.mxu0
        %v2320 = vmul.f32 %v2317, 0.35355338
        %v2321 = vsel %vm1986, -10000.0, %v2320
        %v2322 = vsel %vm1000, %v2321, -inf
        %2323 = vmax.xlane.f32.xlu0 %v2322
        %v2324 = vpop.xlane.xlu0 %2323
        %v2325 = vsub.f32 %v2321, %v2324
        %v2326 = vmul.f32 %v2325, 1.442695
        %v2327 = vpow.pop %v2326
        %v2328 = vsel %vm1000, %v2327, 0.0
        %2329 = vadd.xlane.f32.xlu0 %v2328
        %v2330 = vpop.xlane.xlu0 %2329
        %v2331 = vrcp.pop %v2330
        %v2332 = vmul.f32 %v2327, %v2331
        %2333 = vrot.lane.b32.xlu0 %v1904, 80
        %v2334 = vpop.permute.xlu0 %2333
        %v2337 = vsel %vm1000, %v2332, 0
        %2339 = vmatprep.subr.mxu0 0.0
        %2340 = vmatpush1.msra.mxu0 0.0
        %2341 = vmatprep.subr.mxu0 0.0
        %2342 = vmatpush1.msra.mxu0 0.0
        %2343 = vmatprep.subr.mxu0 0.0
        %2344 = vmatpush1.msra.mxu0 0.0
        %2345 = vmatprep.subr.mxu0 0.0
        %2346 = vmatpush1.msra.mxu0 0.0
        %2347 = vmatprep.subr.mxu0 0.0
        %2348 = vmatpush1.msra.mxu0 0.0
        %2349 = vmatprep.subr.mxu0 0.0
        %2350 = vmatpush1.msra.mxu0 0.0
        %2351 = vmatprep.subr.mxu0 0.0
        %2352 = vmatpush1.msra.mxu0 0.0
        %2353 = vmatprep.subr.mxu0 0.0
        %2354 = vmatpush1.msra.mxu0 0.0
        %2355 = vmatprep.subr.mxu0 0.0
        %2356 = vmatpush1.msra.mxu0 0.0
        %2357 = vmatprep.subr.mxu0 0.0
        %2358 = vmatpush1.msra.mxu0 0.0
        %2359 = vmatprep.subr.mxu0 0.0
        %2360 = vmatpush1.msra.mxu0 0.0
        %2361 = vmatprep.subr.mxu0 0.0
        %2362 = vmatpush1.msra.mxu0 0.0
        %2363 = vmatprep.subr.mxu0 0.0
        %2364 = vmatpush1.msra.mxu0 0.0
        %2365 = vmatprep.subr.mxu0 0.0
        %2366 = vmatpush1.msra.mxu0 0.0
        %2367 = vmatprep.subr.mxu0 0.0
        %2368 = vmatpush1.msra.mxu0 0.0
        %2369 = vmatprep.subr.mxu0 0.0
        %2370 = vmatpush1.msra.mxu0 %v2334
        %2371 = vmatprep.subr.mxu0 0.0
        %2372 = vmatpush2.msra.mxu0 0.0
        %2373 = vmatprep.subr.mxu0 0.0
        %2374 = vmatpush2.msra.mxu0 0.0
        %2375 = vmatprep.subr.mxu0 0.0
        %2376 = vmatpush2.msra.mxu0 0.0
        %2377 = vmatprep.subr.mxu0 0.0
        %2378 = vmatpush2.msra.mxu0 0.0
        %2379 = vmatprep.subr.mxu0 0.0
        %2380 = vmatpush2.msra.mxu0 0.0
        %2381 = vmatprep.subr.mxu0 0.0
        %2382 = vmatpush2.msra.mxu0 0.0
        %2383 = vmatprep.subr.mxu0 0.0
        %2384 = vmatpush2.msra.mxu0 0.0
        %2385 = vmatprep.subr.mxu0 0.0
        %2386 = vmatpush2.msra.mxu0 0.0
        %2387 = vmatprep.subr.mxu0 0.0
        %2388 = vmatpush2.msra.mxu0 0.0
        %2389 = vmatprep.subr.mxu0 0.0
        %2390 = vmatpush2.msra.mxu0 0.0
        %2391 = vmatprep.subr.mxu0 0.0
        %2392 = vmatpush2.msra.mxu0 0.0
        %2393 = vmatprep.subr.mxu0 0.0
        %2394 = vmatpush2.msra.mxu0 0.0
        %2395 = vmatprep.subr.mxu0 0.0
        %2396 = vmatpush2.msra.mxu0 0.0
        %2397 = vmatprep.subr.mxu0 0.0
        %2398 = vmatpush2.msra.mxu0 0.0
        %2399 = vmatprep.subr.mxu0 0.0
        %2400 = vmatpush2.msra.mxu0 0.0
        %2401 = vmatprep.subr.mxu0 0.0
        %2402 = vmatpush2.msra.mxu0 0.0
        %2403 = vmatprep.mubr.f32.mxu0 0.0
        %2404 = vmatmul.mubr.f32.gmra.mxu0 %v2337
        %v2405 = vpop.f32.mrf.mxu0
        %v2406 = vadd.f32 0.0, %v2405
        %v2407 = vpop.f32.mrf.mxu0
        %2408 = vdwg.mxu0
        %2409 = vrot.lane.b32.xlu0 %v1837, 104
        %v2410 = vpop.permute.xlu0 %2409
        %2411 = vrot.lane.b32.xlu0 %v1904, 104
        %v2412 = vpop.permute.xlu0 %2411
        %v2413 = vsel %vm1000, %v2410, 0
        %v2415 = vsel %vm1000, %v2412, 0
        %2417 = vmatprep.subr.mxu0 0.0
        %2418 = vmatpush1.xpose.msra.mxu0 0.0
        %2419 = vmatprep.subr.mxu0 0.0
        %2420 = vmatpush1.xpose.msra.mxu0 0.0
        %2421 = vmatprep.subr.mxu0 0.0
        %2422 = vmatpush1.xpose.msra.mxu0 0.0
        %2423 = vmatprep.subr.mxu0 0.0
        %2424 = vmatpush1.xpose.msra.mxu0 0.0
        %2425 = vmatprep.subr.mxu0 0.0
        %2426 = vmatpush1.xpose.msra.mxu0 0.0
        %2427 = vmatprep.subr.mxu0 0.0
        %2428 = vmatpush1.xpose.msra.mxu0 0.0
        %2429 = vmatprep.subr.mxu0 0.0
        %2430 = vmatpush1.xpose.msra.mxu0 0.0
        %2431 = vmatprep.subr.mxu0 0.0
        %2432 = vmatpush1.xpose.msra.mxu0 0.0
        %2433 = vmatprep.subr.mxu0 0.0
        %2434 = vmatpush1.xpose.msra.mxu0 0.0
        %2435 = vmatprep.subr.mxu0 0.0
        %2436 = vmatpush1.xpose.msra.mxu0 0.0
        %2437 = vmatprep.subr.mxu0 0.0
        %2438 = vmatpush1.xpose.msra.mxu0 0.0
        %2439 = vmatprep.subr.mxu0 0.0
        %2440 = vmatpush1.xpose.msra.mxu0 0.0
        %2441 = vmatprep.subr.mxu0 0.0
        %2442 = vmatpush1.xpose.msra.mxu0 0.0
        %2443 = vmatprep.subr.mxu0 0.0
        %2444 = vmatpush1.xpose.msra.mxu0 0.0
        %2445 = vmatprep.subr.mxu0 0.0
        %2446 = vmatpush1.xpose.msra.mxu0 0.0
        %2447 = vmatprep.subr.mxu0 0.0
        %2448 = vmatpush1.xpose.msra.mxu0 %v2415
        %2449 = vmatprep.subr.mxu0 0.0
        %2450 = vmatpush2.xpose.msra.mxu0 0.0
        %2451 = vmatprep.subr.mxu0 0.0
        %2452 = vmatpush2.xpose.msra.mxu0 0.0
        %2453 = vmatprep.subr.mxu0 0.0
        %2454 = vmatpush2.xpose.msra.mxu0 0.0
        %2455 = vmatprep.subr.mxu0 0.0
        %2456 = vmatpush2.xpose.msra.mxu0 0.0
        %2457 = vmatprep.subr.mxu0 0.0
        %2458 = vmatpush2.xpose.msra.mxu0 0.0
        %2459 = vmatprep.subr.mxu0 0.0
        %2460 = vmatpush2.xpose.msra.mxu0 0.0
        %2461 = vmatprep.subr.mxu0 0.0
        %2462 = vmatpush2.xpose.msra.mxu0 0.0
        %2463 = vmatprep.subr.mxu0 0.0
        %2464 = vmatpush2.xpose.msra.mxu0 0.0
        %2465 = vmatprep.subr.mxu0 0.0
        %2466 = vmatpush2.xpose.msra.mxu0 0.0
        %2467 = vmatprep.subr.mxu0 0.0
        %2468 = vmatpush2.xpose.msra.mxu0 0.0
        %2469 = vmatprep.subr.mxu0 0.0
        %2470 = vmatpush2.xpose.msra.mxu0 0.0
        %2471 = vmatprep.subr.mxu0 0.0
        %2472 = vmatpush2.xpose.msra.mxu0 0.0
        %2473 = vmatprep.subr.mxu0 0.0
        %2474 = vmatpush2.xpose.msra.mxu0 0.0
        %2475 = vmatprep.subr.mxu0 0.0
        %2476 = vmatpush2.xpose.msra.mxu0 0.0
        %2477 = vmatprep.subr.mxu0 0.0
        %2478 = vmatpush2.xpose.msra.mxu0 0.0
        %2479 = vmatprep.subr.mxu0 0.0
        %2480 = vmatpush2.xpose.msra.mxu0 0.0
        %2481 = vmatprep.mubr.f32.mxu0 0.0
        %2482 = vmatmul.mubr.f32.gmra.mxu0 %v2413
        %v2483 = vpop.f32.mrf.mxu0
        %v2484 = vadd.f32 0.0, %v2483
        %v2485 = vpop.f32.mrf.mxu0
        %2486 = vdwg.mxu0
        %v2487 = vmul.f32 %v2484, 0.35355338
        %v2488 = vsel %vm1986, -10000.0, %v2487
        %v2489 = vsel %vm1000, %v2488, -inf
        %2490 = vmax.xlane.f32.xlu0 %v2489
        %v2491 = vpop.xlane.xlu0 %2490
        %v2492 = vsub.f32 %v2488, %v2491
        %v2493 = vmul.f32 %v2492, 1.442695
        %v2494 = vpow.pop %v2493
        %v2495 = vsel %vm1000, %v2494, 0.0
        %2496 = vadd.xlane.f32.xlu0 %v2495
        %v2497 = vpop.xlane.xlu0 %2496
        %v2498 = vrcp.pop %v2497
        %v2499 = vmul.f32 %v2494, %v2498
        %2500 = vrot.lane.b32.xlu0 %v1904, 72
        %v2501 = vpop.permute.xlu0 %2500
        %v2504 = vsel %vm1000, %v2499, 0
        %2506 = vmatprep.subr.mxu0 0.0
        %2507 = vmatpush1.msra.mxu0 0.0
        %2508 = vmatprep.subr.mxu0 0.0
        %2509 = vmatpush1.msra.mxu0 0.0
        %2510 = vmatprep.subr.mxu0 0.0
        %2511 = vmatpush1.msra.mxu0 0.0
        %2512 = vmatprep.subr.mxu0 0.0
        %2513 = vmatpush1.msra.mxu0 0.0
        %2514 = vmatprep.subr.mxu0 0.0
        %2515 = vmatpush1.msra.mxu0 0.0
        %2516 = vmatprep.subr.mxu0 0.0
        %2517 = vmatpush1.msra.mxu0 0.0
        %2518 = vmatprep.subr.mxu0 0.0
        %2519 = vmatpush1.msra.mxu0 0.0
        %2520 = vmatprep.subr.mxu0 0.0
        %2521 = vmatpush1.msra.mxu0 0.0
        %2522 = vmatprep.subr.mxu0 0.0
        %2523 = vmatpush1.msra.mxu0 0.0
        %2524 = vmatprep.subr.mxu0 0.0
        %2525 = vmatpush1.msra.mxu0 0.0
        %2526 = vmatprep.subr.mxu0 0.0
        %2527 = vmatpush1.msra.mxu0 0.0
        %2528 = vmatprep.subr.mxu0 0.0
        %2529 = vmatpush1.msra.mxu0 0.0
        %2530 = vmatprep.subr.mxu0 0.0
        %2531 = vmatpush1.msra.mxu0 0.0
        %2532 = vmatprep.subr.mxu0 0.0
        %2533 = vmatpush1.msra.mxu0 0.0
        %2534 = vmatprep.subr.mxu0 0.0
        %2535 = vmatpush1.msra.mxu0 0.0
        %2536 = vmatprep.subr.mxu0 0.0
        %2537 = vmatpush1.msra.mxu0 %v2501
        %2538 = vmatprep.subr.mxu0 0.0
        %2539 = vmatpush2.msra.mxu0 0.0
        %2540 = vmatprep.subr.mxu0 0.0
        %2541 = vmatpush2.msra.mxu0 0.0
        %2542 = vmatprep.subr.mxu0 0.0
        %2543 = vmatpush2.msra.mxu0 0.0
        %2544 = vmatprep.subr.mxu0 0.0
        %2545 = vmatpush2.msra.mxu0 0.0
        %2546 = vmatprep.subr.mxu0 0.0
        %2547 = vmatpush2.msra.mxu0 0.0
        %2548 = vmatprep.subr.mxu0 0.0
        %2549 = vmatpush2.msra.mxu0 0.0
        %2550 = vmatprep.subr.mxu0 0.0
        %2551 = vmatpush2.msra.mxu0 0.0
        %2552 = vmatprep.subr.mxu0 0.0
        %2553 = vmatpush2.msra.mxu0 0.0
        %2554 = vmatprep.subr.mxu0 0.0
        %2555 = vmatpush2.msra.mxu0 0.0
        %2556 = vmatprep.subr.mxu0 0.0
        %2557 = vmatpush2.msra.mxu0 0.0
        %2558 = vmatprep.subr.mxu0 0.0
        %2559 = vmatpush2.msra.mxu0 0.0
        %2560 = vmatprep.subr.mxu0 0.0
        %2561 = vmatpush2.msra.mxu0 0.0
        %2562 = vmatprep.subr.mxu0 0.0
        %2563 = vmatpush2.msra.mxu0 0.0
        %2564 = vmatprep.subr.mxu0 0.0
        %2565 = vmatpush2.msra.mxu0 0.0
        %2566 = vmatprep.subr.mxu0 0.0
        %2567 = vmatpush2.msra.mxu0 0.0
        %2568 = vmatprep.subr.mxu0 0.0
        %2569 = vmatpush2.msra.mxu0 0.0
        %2570 = vmatprep.mubr.f32.mxu0 0.0
        %2571 = vmatmul.mubr.f32.gmra.mxu0 %v2504
        %v2572 = vpop.f32.mrf.mxu0
        %v2573 = vadd.f32 0.0, %v2572
        %v2574 = vpop.f32.mrf.mxu0
        %2575 = vdwg.mxu0
        %2577 = vrot.lane.b32.xlu0 %v2239, 8
        %v2578 = vpop.permute.xlu0 %2577
        %2581 = vrot.lane.b32.xlu0 %v2406, 16
        %v2582 = vpop.permute.xlu0 %2581
        %2585 = vrot.lane.b32.xlu0 %v2573, 24
        %v2586 = vpop.permute.xlu0 %2585
        %v2588 = vsel %vm1000, %v2072, %v2578
        %v2589 = vsel %vm1679, %v2588, %v2582
        %v2590 = vsel %vm1681, %v2589, %v2586
        %v2591 = vpack.c.bf16 %v2590, %v2590
        %v2592 = vld [vmem:[%s892] sm:$0xf]
        %v2593 = vld [vmem:[%s892 + $0x4] sm:$0xf]
        %v2594 = vld [vmem:[%s892 + $0x8] sm:$0xf]
        %v2595 = vld [vmem:[%s892 + $0xc] sm:$0xf]
        %v2596 = vld [vmem:[%s895] sm:$0x1]
        %v2598 = vlaneseq
        %v2599 = vshrl.u32 %v2598, 7
        %v2600 = vsub.s32 0, %v2599
        %v2601 = vrot.slane %v2596, %v2600
        %v2607 = vunpack.c.l.b16 %v2592
        %v2608 = vunpack.c.l.b16 %v2593
        %v2609 = vunpack.c.l.b16 %v2594
        %v2610 = vunpack.c.l.b16 %v2595
        %v2611 = vpack.c.b16 %v2608, %v2607
        %v2612 = vpack.c.b16 %v2610, %v2609
        %v2616 = vsel %vm953, %v2591, 0
        %2618 = vmatprep.subr.bf16.mxu0 0
        %2619 = vmatpush1.bf16.msra.mxu0 0
        %2620 = vmatprep.subr.bf16.mxu0 0
        %2621 = vmatpush1.bf16.msra.mxu0 0
        %2622 = vmatprep.subr.bf16.mxu0 0
        %2623 = vmatpush1.bf16.msra.mxu0 0
        %2624 = vmatprep.subr.bf16.mxu0 0
        %2625 = vmatpush1.bf16.msra.mxu0 0
        %2626 = vmatprep.subr.bf16.mxu0 0
        %2627 = vmatpush1.bf16.msra.mxu0 0
        %2628 = vmatprep.subr.bf16.mxu0 0
        %2629 = vmatpush1.bf16.msra.mxu0 0
        %2630 = vmatprep.subr.bf16.mxu0 0
        %2631 = vmatpush1.bf16.msra.mxu0 %v2612
        %2632 = vmatprep.subr.bf16.mxu0 0
        %2633 = vmatpush1.bf16.msra.mxu0 %v2611
        %2634 = vmatprep.subr.bf16.mxu0 0
        %2635 = vmatpush2.bf16.msra.mxu0 0
        %2636 = vmatprep.subr.bf16.mxu0 0
        %2637 = vmatpush2.bf16.msra.mxu0 0
        %2638 = vmatprep.subr.bf16.mxu0 0
        %2639 = vmatpush2.bf16.msra.mxu0 0
        %2640 = vmatprep.subr.bf16.mxu0 0
        %2641 = vmatpush2.bf16.msra.mxu0 0
        %2642 = vmatprep.subr.bf16.mxu0 0
        %2643 = vmatpush2.bf16.msra.mxu0 0
        %2644 = vmatprep.subr.bf16.mxu0 0
        %2645 = vmatpush2.bf16.msra.mxu0 0
        %2646 = vmatprep.subr.bf16.mxu0 0
        %2647 = vmatpush2.bf16.msra.mxu0 0
        %2648 = vmatprep.subr.bf16.mxu0 0
        %2649 = vmatpush2.bf16.msra.mxu0 0
        %2650 = vmatprep.mubr.bf16.mxu0 0
        %2651 = vmatmul.mubr.bf16.gmra.mxu0 %v2616
        %v2652 = vpop.f32.mrf.mxu0
        %v2653 = vadd.f32 %v2601, %v2652
        %v2654 = vpop.f32.mrf.mxu0
        %v2655 = vpop.f32.mrf.mxu0
        %v2656 = vpop.f32.mrf.mxu0
        %2657 = vdwg.mxu0
        %v2658 = vadd.f32 %v1774, %v2653
        %v2659 = vsel %vm953, %v2658, 0.0
        %2660 = vadd.xlane.f32.xlu0 %v2659
        %v2661 = vpop.xlane.xlu0 %2660
        %v2662 = vmul.f32 %v2661, %v1754
        %v2663 = vsub.f32 %v2658, %v2662
        %v2664 = vmul.f32 %v2663, %v2663
        %v2665 = vsel %vm953, %v2664, 0.0
        %2666 = vadd.xlane.f32.xlu0 %v2665
        %v2667 = vpop.xlane.xlu0 %2666
        %v2668 = vmul.f32 %v2667, %v1754
        %v2669 = vadd.f32 %v2668, 1e-05
        %v2670 = vrsqrt.pop %v2669
        %v2671 = vmul.f32 %v2663, %v2670
        %v2672 = vlaneseq
        %v2673 = vshrl.u32 %v2672, 7
        %v2674 = vsub.s32 2, %v2673
        %v2675 = vrot.slane %v928, %v2674
        %v2676 = vmul.f32 %v2671, %v2675
        %v2677 = vlaneseq
        %v2678 = vshrl.u32 %v2677, 7
        %v2679 = vsub.s32 3, %v2678
        %v2680 = vrot.slane %v928, %v2679
        %v2681 = vadd.f32 %v2676, %v2680
        %v2682 = vpack.c.bf16 %v2681, %v2681
        %v2683 = vld [vmem:[%s900] sm:$0xf]
        %v2684 = vld [vmem:[%s900 + $0x4] sm:$0xf]
        %v2685 = vld [vmem:[%s900 + $0x8] sm:$0xf]
        %v2686 = vld [vmem:[%s900 + $0xc] sm:$0xf]
        %v2687 = vld [vmem:[%s903] sm:$0x1]
        %v2689 = vlaneseq
        %v2690 = vshrl.u32 %v2689, 7
        %v2691 = vsub.s32 0, %v2690
        %v2692 = vrot.slane %v2687, %v2691
        %v2698 = vunpack.c.l.b16 %v2683
        %v2699 = vunpack.c.l.b16 %v2684
        %v2700 = vunpack.c.l.b16 %v2685
        %v2701 = vunpack.c.l.b16 %v2686
        %v2702 = vpack.c.b16 %v2699, %v2698
        %v2703 = vpack.c.b16 %v2701, %v2700
        %v2707 = vsel %vm953, %v2682, 0
        %2709 = vmatprep.subr.bf16.mxu0 0
        %2710 = vmatpush1.bf16.msra.mxu0 0
        %2711 = vmatprep.subr.bf16.mxu0 0
        %2712 = vmatpush1.bf16.msra.mxu0 0
        %2713 = vmatprep.subr.bf16.mxu0 0
        %2714 = vmatpush1.bf16.msra.mxu0 0
        %2715 = vmatprep.subr.bf16.mxu0 0
        %2716 = vmatpush1.bf16.msra.mxu0 0
        %2717 = vmatprep.subr.bf16.mxu0 0
        %2718 = vmatpush1.bf16.msra.mxu0 0
        %2719 = vmatprep.subr.bf16.mxu0 0
        %2720 = vmatpush1.bf16.msra.mxu0 0
        %2721 = vmatprep.subr.bf16.mxu0 0
        %2722 = vmatpush1.bf16.msra.mxu0 %v2703
        %2723 = vmatprep.subr.bf16.mxu0 0
        %2724 = vmatpush1.bf16.msra.mxu0 %v2702
        %2725 = vmatprep.subr.bf16.mxu0 0
        %2726 = vmatpush2.bf16.msra.mxu0 0
        %2727 = vmatprep.subr.bf16.mxu0 0
        %2728 = vmatpush2.bf16.msra.mxu0 0
        %2729 = vmatprep.subr.bf16.mxu0 0
        %2730 = vmatpush2.bf16.msra.mxu0 0
        %2731 = vmatprep.subr.bf16.mxu0 0
        %2732 = vmatpush2.bf16.msra.mxu0 0
        %2733 = vmatprep.subr.bf16.mxu0 0
        %2734 = vmatpush2.bf16.msra.mxu0 0
        %2735 = vmatprep.subr.bf16.mxu0 0
        %2736 = vmatpush2.bf16.msra.mxu0 0
        %2737 = vmatprep.subr.bf16.mxu0 0
        %2738 = vmatpush2.bf16.msra.mxu0 0
        %2739 = vmatprep.subr.bf16.mxu0 0
        %2740 = vmatpush2.bf16.msra.mxu0 0
        %2741 = vmatprep.mubr.bf16.mxu0 0
        %2742 = vmatmul.mubr.bf16.gmra.mxu0 %v2707
        %v2743 = vpop.f32.mrf.mxu0
        %v2744 = vadd.f32 %v2692, %v2743
        %v2745 = vpop.f32.mrf.mxu0
        %v2746 = vpop.f32.mrf.mxu0
        %v2747 = vpop.f32.mrf.mxu0
        %2748 = vdwg.mxu0
        %v2749 = vmax.f32 %v2744, 0.0
        %v2750 = vpack.c.bf16 %v2749, %v2749
        %v2751 = vld [vmem:[%s908] sm:$0xf]
        %v2752 = vld [vmem:[%s908 + $0x4] sm:$0xf]
        %v2753 = vld [vmem:[%s908 + $0x8] sm:$0xf]
        %v2754 = vld [vmem:[%s908 + $0xc] sm:$0xf]
        %v2755 = vld [vmem:[%s908 + $0x10] sm:$0xf]
        %v2756 = vld [vmem:[%s908 + $0x14] sm:$0xf]
        %v2757 = vld [vmem:[%s908 + $0x18] sm:$0xf]
        %v2758 = vld [vmem:[%s908 + $0x1c] sm:$0xf]
        %v2759 = vld [vmem:[%s911] sm:$0x1]
        %v2761 = vlaneseq
        %v2762 = vshrl.u32 %v2761, 7
        %v2763 = vsub.s32 0, %v2762
        %v2764 = vrot.slane %v2759, %v2763
        %v2774 = vunpack.c.l.b16 %v2751
        %v2775 = vunpack.c.l.b16 %v2752
        %v2776 = vunpack.c.l.b16 %v2753
        %v2777 = vunpack.c.l.b16 %v2754
        %v2778 = vunpack.c.l.b16 %v2755
        %v2779 = vunpack.c.l.b16 %v2756
        %v2780 = vunpack.c.l.b16 %v2757
        %v2781 = vunpack.c.l.b16 %v2758
        %v2782 = vpack.c.b16 %v2775, %v2774
        %v2783 = vpack.c.b16 %v2777, %v2776
        %v2784 = vpack.c.b16 %v2779, %v2778
        %v2785 = vpack.c.b16 %v2781, %v2780
        %vm2790 = vcmask 523264
        %v2792 = vsel %vm2790, %v2750, 0
        %2794 = vmatprep.subr.bf16.mxu0 0
        %2795 = vmatpush1.bf16.msra.mxu0 0
        %2796 = vmatprep.subr.bf16.mxu0 0
        %2797 = vmatpush1.bf16.msra.mxu0 0
        %2798 = vmatprep.subr.bf16.mxu0 0
        %2799 = vmatpush1.bf16.msra.mxu0 0
        %2800 = vmatprep.subr.bf16.mxu0 0
        %2801 = vmatpush1.bf16.msra.mxu0 0
        %2802 = vmatprep.subr.bf16.mxu0 0
        %2803 = vmatpush1.bf16.msra.mxu0 %v2785
        %2804 = vmatprep.subr.bf16.mxu0 0
        %2805 = vmatpush1.bf16.msra.mxu0 %v2784
        %2806 = vmatprep.subr.bf16.mxu0 0
        %2807 = vmatpush1.bf16.msra.mxu0 %v2783
        %2808 = vmatprep.subr.bf16.mxu0 0
        %2809 = vmatpush1.bf16.msra.mxu0 %v2782
        %2810 = vmatprep.subr.bf16.mxu0 0
        %2811 = vmatpush2.bf16.msra.mxu0 0
        %2812 = vmatprep.subr.bf16.mxu0 0
        %2813 = vmatpush2.bf16.msra.mxu0 0
        %2814 = vmatprep.subr.bf16.mxu0 0
        %2815 = vmatpush2.bf16.msra.mxu0 0
        %2816 = vmatprep.subr.bf16.mxu0 0
        %2817 = vmatpush2.bf16.msra.mxu0 0
        %2818 = vmatprep.subr.bf16.mxu0 0
        %2819 = vmatpush2.bf16.msra.mxu0 0
        %2820 = vmatprep.subr.bf16.mxu0 0
        %2821 = vmatpush2.bf16.msra.mxu0 0
        %2822 = vmatprep.subr.bf16.mxu0 0
        %2823 = vmatpush2.bf16.msra.mxu0 0
        %2824 = vmatprep.subr.bf16.mxu0 0
        %2825 = vmatpush2.bf16.msra.mxu0 0
        %2826 = vmatprep.mubr.bf16.mxu0 0
        %2827 = vmatmul.mubr.bf16.gmra.mxu0 %v2792
        %v2828 = vpop.f32.mrf.mxu0
        %v2829 = vadd.f32 %v2764, %v2828
        %v2830 = vpop.f32.mrf.mxu0
        %v2831 = vpop.f32.mrf.mxu0
        %v2832 = vpop.f32.mrf.mxu0
        %2833 = vdwg.mxu0
        %v2834 = vadd.f32 %v2681, %v2829
        %v2835 = vsel %vm953, %v2834, 0.0
        %2836 = vadd.xlane.f32.xlu0 %v2835
        %v2837 = vpop.xlane.xlu0 %2836
        %v2838 = vmul.f32 %v2837, %v1754
        %v2839 = vsub.f32 %v2834, %v2838
        %v2840 = vmul.f32 %v2839, %v2839
        %v2841 = vsel %vm953, %v2840, 0.0
        %2842 = vadd.xlane.f32.xlu0 %v2841
        %v2843 = vpop.xlane.xlu0 %2842
        %v2844 = vmul.f32 %v2843, %v1754
        %v2845 = vadd.f32 %v2844, 1e-05
        %v2846 = vrsqrt.pop %v2845
        %v2847 = vmul.f32 %v2839, %v2846
        %v2848 = vlaneseq
        %v2849 = vshrl.u32 %v2848, 7
        %v2850 = vsub.s32 4, %v2849
        %v2851 = vrot.slane %v928, %v2850
        %v2852 = vmul.f32 %v2847, %v2851
        %v2853 = vlaneseq
        %v2854 = vshrl.u32 %v2853, 7
        %v2855 = vsub.s32 5, %v2854
        %v2856 = vrot.slane %v928, %v2855
        %v2857 = vadd.f32 %v2852, %v2856
        %2858 = vst.msk [vmem:[%s839] sm:$0xff] %vm953, %v2857
        %s2859 = sand.u32 %s547, 1
        %s2860 = scalar_lea.sflag [#allocation3], %s2859
        %s2861 = sand.u32 %s547, 1
        %s2862 = smul.addr %s2861, 8
        %s2863 = scalar_lea.vmem [#allocation2], %s2862
        // Predicated region
        $region101: #{decoder_forward.1} parent=95 // pred_check
          %p2864 = pneg %p557
        $region102: #{decoder_forward.1} parent=95 // pred_check_branch
          %2866 = sbr.rel (%p2864) target = $region104
        $region103: #{decoder_forward.1} parent=95 // pred_region
          %s2868 = ssub.s32 128, 128
          %2869 = vsyncadd %s2860, %s2868
          %s2870 = smul.addr %s37, 128
          %s2871 = scalar_lea.hbm %s19, %s2870
          %s2873 = sshll.u32 %s2863, 4
          %s2874 = int_to_ptr.vmem [resolvable:$true] %s2873
          %2876 = dma.vmem_to_hbm [thread:$0]  %s2874, 128, %s2871, %s2860
        $region104: #{decoder_forward.1} parent=95 // pred_fallthru
          _
      $region96: #{decoder_forward.1} parent=5 // pred_fallthru
        _
      %p2877 = scmp.le.s32.totalorder 2, %s28
      // Predicated region
      $region105: #{decoder_forward.1} parent=5 // pred_check
        %p2878 = pneg %p2877
      $region106: #{decoder_forward.1} parent=5 // pred_check_branch
        %2880 = sbr.rel (%p2878) target = $region108
      $region107: #{decoder_forward.1} parent=5 // pred_region
        %s2881 = ssub.s32 %s28, 2
        // Predicated region
        $region109: #{decoder_forward.1} parent=107 // pred_check
          %p2882 = pneg %p563
        $region110: #{decoder_forward.1} parent=107 // pred_check_branch
          %2884 = sbr.rel (%p2882) target = $region112
        $region111: #{decoder_forward.1} parent=107 // pred_region
          %s2885 = sand.u32 %s548, 1
          %s2886 = scalar_lea.sflag [#allocation3], %s2885
          %s2887 = sand.u32 %s548, 1
          %s2888 = smul.addr %s2887, 8
          %s2889 = scalar_lea.vmem [#allocation2], %s2888
          %2890 = dma.done %s2886, 128
        $region112: #{decoder_forward.1} parent=107 // pred_fallthru
          _
      $region108: #{decoder_forward.1} parent=5 // pred_fallthru
        _
    $region6: #{decoder_forward.1} parent=1 // loop_footer
      %s32 = sadd.s32 1, %s28
    $region7: #{decoder_forward.1} parent=1 // loop_footer_branch
      %27 = sbr.rel target = $region3
    $region8: #{decoder_forward.1} parent=1 // loop_exit
      _
    %2891 = vsyncpa [#allocation3], 1
    %s2892 = scalar_lea.sflag [#allocation3], 1
    %2893 = vsyncpa %s2892, 1

</llo_original>
